<compile_context>
chip_gen: v7x
topology: tpu7x:2x2x1
jax: 0.10.0
libtpu: 0.0.40
codegen_flags: <defaults>
</compile_context>

<pallas_src>
import functools

import numpy as np
import jax
import jax.numpy as jnp
from jax.experimental import pallas as pl
from jax.experimental.pallas import tpu as pltpu


# ----------------------------------------------------------------------------
# Pallas kernel: full forward pass (both GRU directions + fused output head)
# ----------------------------------------------------------------------------
def _disc_kernel(x2d_ref,                    # (T*BP, D)   time-major, flattened
                 w_in_ref,                   # (D, 6G)     [r_f z_f n_f r_b z_b n_b], lane-padded
                 b_in_ref,                   # (1, 6G)     b_ih (+ b_hh for r,z), lane-padded
                 wh_ref,                     # (2, G, 3G)  gate-concatenated hidden weights
                 bhn_ref,                    # (2, 1, 3G)  b_hh for n gate only (in n lane-block)
                 woutf_ref, woutb_ref,       # (T, 1, G)   output-head rows, lane-dense & padded
                 bout_ref,                   # (1, 1)      SMEM scalar
                 o_ref,                      # (BP, 1)
                 gi_ref,                     # (T*BP, 6G)  VMEM scratch for input projections
                 *, G, T, BP):
    G3 = 3 * G

    # ---- Prologue: one MXU pass covers every input projection (both
    # directions, all time steps). Staged in VMEM scratch so only the active
    # step's tiles are live inside the recurrence (keeps vreg pressure low).
    gi_ref[...] = (jnp.dot(x2d_ref[...], w_in_ref[...],
                           preferred_element_type=jnp.float32)
                   + b_in_ref[...])

    bhn_f = bhn_ref[0]                        # (1, 3G)
    bhn_b = bhn_ref[1]
    bout = bout_ref[0, 0]

    def leaky(v):
        return jnp.where(v >= 0.0, v, 0.2 * v)

    def cell(h, gi, wh, bhn):
        # One gate-concatenated hidden matmul per direction per step; each
        # gate is then a full 128-lane block -> no in-loop lane extracts.
        # bhn only populates the n-block, so the n-gate b_hh stays inside r*(...).
        gh = jnp.dot(h, wh, preferred_element_type=jnp.float32) + bhn
        r = jax.nn.sigmoid(gi[:, 0:G] + gh[:, 0:G])
        z = jax.nn.sigmoid(gi[:, G:2 * G] + gh[:, G:2 * G])
        n = jnp.tanh(gi[:, 2 * G:3 * G] + r * gh[:, 2 * G:3 * G])
        return n + z * (h - n)                # == (1-z)*n + z*h, one fewer VPU op

    h_f = jnp.zeros((BP, G), jnp.float32)
    h_b = jnp.zeros((BP, G), jnp.float32)
    acc = jnp.zeros((BP, G), jnp.float32)

    # Fused forward/backward recurrence, fully unrolled (T static & small):
    # the two direction chains are independent so one direction's MXU/EUP
    # latency hides behind the other's.
    for i in range(T):
        j = T - 1 - i
        gi_f = gi_ref[pl.ds(i * BP, BP), pl.ds(0, G3)]     # (BP, 3G) sublane-aligned tile
        gi_b = gi_ref[pl.ds(j * BP, BP), pl.ds(G3, G3)]
        h_f = cell(h_f, gi_f, wh_ref[0], bhn_f)
        h_b = cell(h_b, gi_b, wh_ref[1], bhn_b)
        # Fused LeakyReLU + Linear head as VPU FMAs against lane-dense rows.
        # NOTE: nn.Dropout is identity at inference time (module.eval()).
        # TODO(synk): training-mode dropout (random masking) is not implemented.
        acc = acc + leaky(h_f) * woutf_ref[i] + leaky(h_b) * woutb_ref[j]

    # Single cross-lane reduce (XLU), then sigmoid.
    logit = jnp.sum(acc, axis=-1, keepdims=True) + bout     # (BP, 1)
    o_ref[...] = jax.nn.sigmoid(logit)


# ----------------------------------------------------------------------------
# One-time parameter packing (hoisted out of the per-call path)
# ----------------------------------------------------------------------------
def pack_params(params, model_size, input_dim, hidden_dim):
    T, D, H = model_size, input_dim, hidden_dim
    G = ((H + 127) // 128) * 128              # lane-padded gate / hidden width
    f32 = jnp.float32

    def gates_T(w):                           # (3H, X) -> [ (X,H) x3 ] transposed (r,z,n)
        w = w.astype(f32)
        return [w[g * H:(g + 1) * H].T for g in range(3)]

    wih_f = gates_T(params["w_ih_f"])         # each (D, H)
    wih_b = gates_T(params["w_ih_b"])
    whh_f = gates_T(params["w_hh_f"])         # each (H, H)
    whh_b = gates_T(params["w_hh_b"])

    def padc(m):                              # pad columns to G
        return jnp.pad(m, ((0, 0), (0, G - m.shape[1])))

    def padrc(m):                             # pad rows and columns to (G, G)
        return jnp.pad(m, ((0, G - m.shape[0]), (0, G - m.shape[1])))

    def padb(v):                              # (H,) -> (1, G)
        return jnp.pad(v.astype(f32), (0, G - H)).reshape(1, G)

    # Input projection, both directions, each gate lane-block-padded: (D, 6G)
    w_in = jnp.concatenate([padc(m) for m in (wih_f + wih_b)], axis=1)

    bif, bhf = params["b_ih_f"].astype(f32), params["b_hh_f"].astype(f32)
    bib, bhb = params["b_ih_b"].astype(f32), params["b_hh_b"].astype(f32)
    # Fold b_hh into gi for r and z gates (n gate's b_hh multiplies by r, kept separate).
    b_in = jnp.concatenate([
        padb(bif[0:H] + bhf[0:H]), padb(bif[H:2 * H] + bhf[H:2 * H]), padb(bif[2 * H:3 * H]),
        padb(bib[0:H] + bhb[0:H]), padb(bib[H:2 * H] + bhb[H:2 * H]), padb(bib[2 * H:3 * H]),
    ], axis=1)                                 # (1, 6G)

    # Gate-concatenated hidden weights, zero-padded to (G, 3G) per direction.
    wh_f = jnp.concatenate([padrc(m) for m in whh_f], axis=1)
    wh_b = jnp.concatenate([padrc(m) for m in whh_b], axis=1)
    wh = jnp.stack([wh_f, wh_b])               # (2, G, 3G)

    # n-gate b_hh placed in the n lane-block (added to gh before the r*(...) product).
    zero_g = jnp.zeros((1, G), f32)
    bhn = jnp.stack([
        jnp.concatenate([zero_g, zero_g, padb(bhf[2 * H:3 * H])], axis=1),
        jnp.concatenate([zero_g, zero_g, padb(bhb[2 * H:3 * H])], axis=1),
    ])                                         # (2, 1, 3G)

    # Output head: (1, T*2H) -> (T, 2, H); per-time rows lane-dense & padded to G.
    w_out = params["w_out"].astype(f32).reshape(T, 2, H)
    woutf = jnp.pad(w_out[:, 0, :], ((0, 0), (0, G - H))).reshape(T, 1, G)
    woutb = jnp.pad(w_out[:, 1, :], ((0, 0), (0, G - H))).reshape(T, 1, G)
    bout = params["b_out"].astype(f32).reshape(1, 1)

    return dict(w_in=w_in, b_in=b_in, wh=wh, bhn=bhn,
                woutf=woutf, woutb=woutb, bout=bout)


# ----------------------------------------------------------------------------
# Per-call wrapper: only x layout + pallas_call
# ----------------------------------------------------------------------------
def discriminator_forward(x, packed):
    B, T, D = x.shape
    G = packed["w_in"].shape[1] // 6
    BP = max(8, ((B + 7) // 8) * 8)            # pad batch to a full sublane tile
    f32 = jnp.float32

    xt = jnp.transpose(x, (1, 0, 2)).astype(f32)            # (T, B, D) time-major
    xt = jnp.pad(xt, ((0, 0), (0, BP - B), (0, 0)))         # (T, BP, D)
    x2d = xt.reshape(T * BP, D)

    kernel = functools.partial(_disc_kernel, G=G, T=T, BP=BP)
    vmem = pl.BlockSpec(memory_space=pltpu.MemorySpace.VMEM)
    smem = pl.BlockSpec(memory_space=pltpu.MemorySpace.SMEM)

    out = pl.pallas_call(
        kernel,
        out_shape=jax.ShapeDtypeStruct((BP, 1), f32),
        in_specs=[vmem, vmem, vmem, vmem, vmem, vmem, vmem, smem],
        out_specs=vmem,
        scratch_shapes=[pltpu.VMEM((T * BP, 6 * G), f32)],
    )(x2d, packed["w_in"], packed["b_in"], packed["wh"], packed["bhn"],
      packed["woutf"], packed["woutb"], packed["bout"])
    return out[:B]


# ----------------------------------------------------------------------------
# Pure-JAX reference (mirrors the PyTorch forward) for correctness checking
# ----------------------------------------------------------------------------
def reference_forward(x, params, hidden_dim):
    B, T, D = x.shape
    H = hidden_dim

    def cell(xt, h, w_ih, w_hh, b_ih, b_hh):
        gi = xt @ w_ih.T + b_ih
        gh = h @ w_hh.T + b_hh
        r = jax.nn.sigmoid(gi[:, :H] + gh[:, :H])
        z = jax.nn.sigmoid(gi[:, H:2 * H] + gh[:, H:2 * H])
        n = jnp.tanh(gi[:, 2 * H:] + r * gh[:, 2 * H:])
        return (1.0 - z) * n + z * h

    hf = jnp.zeros((B, H), jnp.float32)
    outs_f = []
    for t in range(T):
        hf = cell(x[:, t], hf, params["w_ih_f"], params["w_hh_f"],
                  params["b_ih_f"], params["b_hh_f"])
        outs_f.append(hf)
    hb = jnp.zeros((B, H), jnp.float32)
    outs_b = [None] * T
    for t in reversed(range(T)):
        hb = cell(x[:, t], hb, params["w_ih_b"], params["w_hh_b"],
                  params["b_ih_b"], params["b_hh_b"])
        outs_b[t] = hb

    gru_out = jnp.concatenate(
        [jnp.stack(outs_f, axis=1), jnp.stack(outs_b, axis=1)], axis=-1)  # (B,T,2H)
    act = jnp.where(gru_out >= 0.0, gru_out, 0.2 * gru_out)               # dropout=id (eval)
    mlp_in = act.reshape(B, -1)
    logit = mlp_in @ params["w_out"].T + params["b_out"]
    return jax.nn.sigmoid(logit)


# ----------------------------------------------------------------------------
# Deterministic parameter init (shapes match nn.GRU / nn.Linear in __init__)
# ----------------------------------------------------------------------------
def init_params(key, model_size, input_dim, hidden_dim):
    H, D, T = hidden_dim, input_dim, model_size
    ks = jax.random.split(key, 10)
    s = 1.0 / np.sqrt(H)
    u = lambda k, shape: jax.random.uniform(k, shape, jnp.float32, -s, s)
    return dict(
        w_ih_f=u(ks[0], (3 * H, D)), w_hh_f=u(ks[1], (3 * H, H)),
        b_ih_f=u(ks[2], (3 * H,)),   b_hh_f=u(ks[3], (3 * H,)),
        w_ih_b=u(ks[4], (3 * H, D)), w_hh_b=u(ks[5], (3 * H, H)),
        b_ih_b=u(ks[6], (3 * H,)),   b_hh_b=u(ks[7], (3 * H,)),
        w_out=u(ks[8], (1, T * 2 * H)), b_out=u(ks[9], (1,)),
    )


if __name__ == "__main__":
    # Small shapes consistent with the module: model_size (= seq len) 8,
    # input_dim 4, hidden_dim 32, batch 2.
    MODEL_SIZE, INPUT_DIM, HIDDEN_DIM, BATCH = 8, 4, 32, 2

    root = jax.random.PRNGKey(0)
    kx, kp = jax.random.split(root)
    x = jax.random.normal(kx, (BATCH, MODEL_SIZE, INPUT_DIM), jnp.float32)
    params = init_params(kp, MODEL_SIZE, INPUT_DIM, HIDDEN_DIM)

    # Parameter packing happens ONCE (off the per-call path).
    packed = jax.tree_util.tree_map(
        jax.block_until_ready,
        pack_params(params, MODEL_SIZE, INPUT_DIM, HIDDEN_DIM))

    fwd = jax.jit(discriminator_forward)
    out = fwd(x, packed)
    out = jax.block_until_ready(out)

    ref = reference_forward(x, params, HIDDEN_DIM)
    np.testing.assert_allclose(np.asarray(out), np.asarray(ref), rtol=1e-4, atol=1e-5)
    assert out.shape == (BATCH, 1)

    print("KERNEL_OK")
</pallas_src>

<mosaic_0001>
module attributes {stable_mosaic.version = 11 : i64} {
  func.func @_disc_kernel(%arg0: memref<64x4xf32, #tpu.memory_space<vmem>>, %arg1: memref<4x768xf32, #tpu.memory_space<vmem>>, %arg2: memref<1x768xf32, #tpu.memory_space<vmem>>, %arg3: memref<2x128x384xf32, #tpu.memory_space<vmem>>, %arg4: memref<2x1x384xf32, #tpu.memory_space<vmem>>, %arg5: memref<8x1x128xf32, #tpu.memory_space<vmem>>, %arg6: memref<8x1x128xf32, #tpu.memory_space<vmem>>, %arg7: memref<1x1xf32, #tpu.memory_space<smem>>, %arg8: memref<8x1xf32, #tpu.memory_space<vmem>>, %arg9: memref<64x768xf32, #tpu.memory_space<vmem>>) attributes {dimension_semantics = [], scalar_prefetch = 0 : i64, scratch_operands = 1 : i64, tpu.core_type = #tpu.core_type<tc>} {
    %c0 = arith.constant 0 : index
    %c0_0 = arith.constant 0 : index
    %0 = vector.load %arg0[%c0, %c0_0] : memref<64x4xf32, #tpu.memory_space<vmem>>, vector<64x4xf32>
    %c0_1 = arith.constant 0 : index
    %c0_2 = arith.constant 0 : index
    %1 = vector.load %arg1[%c0_1, %c0_2] : memref<4x768xf32, #tpu.memory_space<vmem>>, vector<4x768xf32>
    %cst = arith.constant dense<0.000000e+00> : vector<64x768xf32>
    %2 = tpu.matmul %0, %1, %cst {dimension_numbers = #tpu.dot_dimension_numbers<[1], [0], [0], [1], [0, 0, 1, 1], [], []>} : vector<64x4xf32>, vector<4x768xf32>, vector<64x768xf32> -> vector<64x768xf32>
    %c0_3 = arith.constant 0 : index
    %c0_4 = arith.constant 0 : index
    %3 = vector.load %arg2[%c0_3, %c0_4] : memref<1x768xf32, #tpu.memory_space<vmem>>, vector<1x768xf32>
    %4 = vector.broadcast %3 : vector<1x768xf32> to vector<64x768xf32>
    %5 = arith.addf %2, %4 : vector<64x768xf32>
    %c0_5 = arith.constant 0 : index
    %c0_6 = arith.constant 0 : index
    %6 = vector.load %arg9[%c0_5, %c0_6] : memref<64x768xf32, #tpu.memory_space<vmem>>, vector<64x768xf32>
    tpu.vector_store %arg9[%c0_5, %c0_6], %5 {strides = array<i32>} : memref<64x768xf32, #tpu.memory_space<vmem>>, vector<64x768xf32>,
    %c0_7 = arith.constant 0 : index
    %c0_8 = arith.constant 0 : index
    %c0_9 = arith.constant 0 : index
    %7 = vector.load %arg4[%c0_7, %c0_8, %c0_9] : memref<2x1x384xf32, #tpu.memory_space<vmem>>, vector<1x1x384xf32>
    %8 = vector.shape_cast %7 : vector<1x1x384xf32> to vector<1x384xf32>
    %c1 = arith.constant 1 : index
    %c0_10 = arith.constant 0 : index
    %c0_11 = arith.constant 0 : index
    %9 = vector.load %arg4[%c1, %c0_10, %c0_11] : memref<2x1x384xf32, #tpu.memory_space<vmem>>, vector<1x1x384xf32>
    %10 = vector.shape_cast %9 : vector<1x1x384xf32> to vector<1x384xf32>
    %c0_12 = arith.constant 0 : index
    %c0_13 = arith.constant 0 : index
    %11 = memref.load %arg7[%c0_12, %c0_13] : memref<1x1xf32, #tpu.memory_space<smem>>
    %cst_14 = arith.constant 0.000000e+00 : f32
    %12 = vector.broadcast %cst_14 : f32 to vector<8x128xf32>
    %cst_15 = arith.constant 0.000000e+00 : f32
    %13 = vector.broadcast %cst_15 : f32 to vector<8x128xf32>
    %cst_16 = arith.constant 0.000000e+00 : f32
    %14 = vector.broadcast %cst_16 : f32 to vector<8x128xf32>
    %c0_17 = arith.constant 0 : index
    %c0_18 = arith.constant 0 : index
    %15 = vector.load %arg9[%c0_17, %c0_18] : memref<64x768xf32, #tpu.memory_space<vmem>>, vector<8x384xf32>
    %c56 = arith.constant 56 : index
    %c384 = arith.constant 384 : index
    %16 = vector.load %arg9[%c56, %c384] : memref<64x768xf32, #tpu.memory_space<vmem>>, vector<8x384xf32>
    %c0_19 = arith.constant 0 : index
    %c0_20 = arith.constant 0 : index
    %c0_21 = arith.constant 0 : index
    %17 = vector.load %arg3[%c0_19, %c0_20, %c0_21] : memref<2x128x384xf32, #tpu.memory_space<vmem>>, vector<1x128x384xf32>
    %18 = vector.shape_cast %17 : vector<1x128x384xf32> to vector<128x384xf32>
    %cst_22 = arith.constant dense<0.000000e+00> : vector<8x384xf32>
    %19 = tpu.matmul %12, %18, %cst_22 {dimension_numbers = #tpu.dot_dimension_numbers<[1], [0], [0], [1], [0, 0, 1, 1], [], []>} : vector<8x128xf32>, vector<128x384xf32>, vector<8x384xf32> -> vector<8x384xf32>
    %20 = vector.broadcast %8 : vector<1x384xf32> to vector<8x384xf32>
    %21 = arith.addf %19, %20 : vector<8x384xf32>
    %22 = vector.extract_strided_slice %15 {offsets = [0, 0], sizes = [8, 128], strides = [1, 1]} : vector<8x384xf32> to vector<8x128xf32>
    %23 = vector.extract_strided_slice %21 {offsets = [0, 0], sizes = [8, 128], strides = [1, 1]} : vector<8x384xf32> to vector<8x128xf32>
    %24 = arith.addf %22, %23 : vector<8x128xf32>
    %25 = arith.negf %24 : vector<8x128xf32>
    %26 = math.exp %25 : vector<8x128xf32>
    %cst_23 = arith.constant 1.000000e+00 : f32
    %27 = vector.broadcast %cst_23 : f32 to vector<8x128xf32>
    %28 = arith.addf %27, %26 : vector<8x128xf32>
    %29 = arith.divf %27, %28 : vector<8x128xf32>
    %30 = vector.extract_strided_slice %15 {offsets = [0, 128], sizes = [8, 128], strides = [1, 1]} : vector<8x384xf32> to vector<8x128xf32>
    %31 = vector.extract_strided_slice %21 {offsets = [0, 128], sizes = [8, 128], strides = [1, 1]} : vector<8x384xf32> to vector<8x128xf32>
    %32 = arith.addf %30, %31 : vector<8x128xf32>
    %33 = arith.negf %32 : vector<8x128xf32>
    %34 = math.exp %33 : vector<8x128xf32>
    %cst_24 = arith.constant 1.000000e+00 : f32
    %35 = vector.broadcast %cst_24 : f32 to vector<8x128xf32>
    %36 = arith.addf %35, %34 : vector<8x128xf32>
    %37 = arith.divf %35, %36 : vector<8x128xf32>
    %38 = vector.extract_strided_slice %15 {offsets = [0, 256], sizes = [8, 128], strides = [1, 1]} : vector<8x384xf32> to vector<8x128xf32>
    %39 = vector.extract_strided_slice %21 {offsets = [0, 256], sizes = [8, 128], strides = [1, 1]} : vector<8x384xf32> to vector<8x128xf32>
    %40 = arith.mulf %29, %39 : vector<8x128xf32>
    %41 = arith.addf %38, %40 : vector<8x128xf32>
    %42 = math.tanh %41 : vector<8x128xf32>
    %43 = arith.subf %12, %42 : vector<8x128xf32>
    %44 = arith.mulf %37, %43 : vector<8x128xf32>
    %45 = arith.addf %42, %44 : vector<8x128xf32>
    %c1_25 = arith.constant 1 : index
    %c0_26 = arith.constant 0 : index
    %c0_27 = arith.constant 0 : index
    %46 = vector.load %arg3[%c1_25, %c0_26, %c0_27] : memref<2x128x384xf32, #tpu.memory_space<vmem>>, vector<1x128x384xf32>
    %47 = vector.shape_cast %46 : vector<1x128x384xf32> to vector<128x384xf32>
    %cst_28 = arith.constant dense<0.000000e+00> : vector<8x384xf32>
    %48 = tpu.matmul %13, %47, %cst_28 {dimension_numbers = #tpu.dot_dimension_numbers<[1], [0], [0], [1], [0, 0, 1, 1], [], []>} : vector<8x128xf32>, vector<128x384xf32>, vector<8x384xf32> -> vector<8x384xf32>
    %49 = vector.broadcast %10 : vector<1x384xf32> to vector<8x384xf32>
    %50 = arith.addf %48, %49 : vector<8x384xf32>
    %51 = vector.extract_strided_slice %16 {offsets = [0, 0], sizes = [8, 128], strides = [1, 1]} : vector<8x384xf32> to vector<8x128xf32>
    %52 = vector.extract_strided_slice %50 {offsets = [0, 0], sizes = [8, 128], strides = [1, 1]} : vector<8x384xf32> to vector<8x128xf32>
    %53 = arith.addf %51, %52 : vector<8x128xf32>
    %54 = arith.negf %53 : vector<8x128xf32>
    %55 = math.exp %54 : vector<8x128xf32>
    %cst_29 = arith.constant 1.000000e+00 : f32
    %56 = vector.broadcast %cst_29 : f32 to vector<8x128xf32>
    %57 = arith.addf %56, %55 : vector<8x128xf32>
    %58 = arith.divf %56, %57 : vector<8x128xf32>
    %59 = vector.extract_strided_slice %16 {offsets = [0, 128], sizes = [8, 128], strides = [1, 1]} : vector<8x384xf32> to vector<8x128xf32>
    %60 = vector.extract_strided_slice %50 {offsets = [0, 128], sizes = [8, 128], strides = [1, 1]} : vector<8x384xf32> to vector<8x128xf32>
    %61 = arith.addf %59, %60 : vector<8x128xf32>
    %62 = arith.negf %61 : vector<8x128xf32>
    %63 = math.exp %62 : vector<8x128xf32>
    %cst_30 = arith.constant 1.000000e+00 : f32
    %64 = vector.broadcast %cst_30 : f32 to vector<8x128xf32>
    %65 = arith.addf %64, %63 : vector<8x128xf32>
    %66 = arith.divf %64, %65 : vector<8x128xf32>
    %67 = vector.extract_strided_slice %16 {offsets = [0, 256], sizes = [8, 128], strides = [1, 1]} : vector<8x384xf32> to vector<8x128xf32>
    %68 = vector.extract_strided_slice %50 {offsets = [0, 256], sizes = [8, 128], strides = [1, 1]} : vector<8x384xf32> to vector<8x128xf32>
    %69 = arith.mulf %58, %68 : vector<8x128xf32>
    %70 = arith.addf %67, %69 : vector<8x128xf32>
    %71 = math.tanh %70 : vector<8x128xf32>
    %72 = arith.subf %13, %71 : vector<8x128xf32>
    %73 = arith.mulf %66, %72 : vector<8x128xf32>
    %74 = arith.addf %71, %73 : vector<8x128xf32>
    %cst_31 = arith.constant 0.000000e+00 : f32
    %75 = vector.broadcast %cst_31 : f32 to vector<8x128xf32>
    %76 = arith.cmpf oge, %45, %75 : vector<8x128xf32>
    %cst_32 = arith.constant 2.000000e-01 : f32
    %77 = vector.broadcast %cst_32 : f32 to vector<8x128xf32>
    %78 = arith.mulf %77, %45 : vector<8x128xf32>
    %79 = arith.select %76, %45, %78 : vector<8x128xi1>, vector<8x128xf32>
    %c0_33 = arith.constant 0 : index
    %c0_34 = arith.constant 0 : index
    %c0_35 = arith.constant 0 : index
    %80 = vector.load %arg5[%c0_33, %c0_34, %c0_35] : memref<8x1x128xf32, #tpu.memory_space<vmem>>, vector<1x1x128xf32>
    %81 = vector.shape_cast %80 : vector<1x1x128xf32> to vector<1x128xf32>
    %82 = vector.broadcast %81 : vector<1x128xf32> to vector<8x128xf32>
    %83 = arith.mulf %79, %82 : vector<8x128xf32>
    %84 = arith.addf %14, %83 : vector<8x128xf32>
    %cst_36 = arith.constant 0.000000e+00 : f32
    %85 = vector.broadcast %cst_36 : f32 to vector<8x128xf32>
    %86 = arith.cmpf oge, %74, %85 : vector<8x128xf32>
    %cst_37 = arith.constant 2.000000e-01 : f32
    %87 = vector.broadcast %cst_37 : f32 to vector<8x128xf32>
    %88 = arith.mulf %87, %74 : vector<8x128xf32>
    %89 = arith.select %86, %74, %88 : vector<8x128xi1>, vector<8x128xf32>
    %c7 = arith.constant 7 : index
    %c0_38 = arith.constant 0 : index
    %c0_39 = arith.constant 0 : index
    %90 = vector.load %arg6[%c7, %c0_38, %c0_39] : memref<8x1x128xf32, #tpu.memory_space<vmem>>, vector<1x1x128xf32>
    %91 = vector.shape_cast %90 : vector<1x1x128xf32> to vector<1x128xf32>
    %92 = vector.broadcast %91 : vector<1x128xf32> to vector<8x128xf32>
    %93 = arith.mulf %89, %92 : vector<8x128xf32>
    %94 = arith.addf %84, %93 : vector<8x128xf32>
    %c8 = arith.constant 8 : index
    %c0_40 = arith.constant 0 : index
    %95 = vector.load %arg9[%c8, %c0_40] : memref<64x768xf32, #tpu.memory_space<vmem>>, vector<8x384xf32>
    %c48 = arith.constant 48 : index
    %c384_41 = arith.constant 384 : index
    %96 = vector.load %arg9[%c48, %c384_41] : memref<64x768xf32, #tpu.memory_space<vmem>>, vector<8x384xf32>
    %c0_42 = arith.constant 0 : index
    %c0_43 = arith.constant 0 : index
    %c0_44 = arith.constant 0 : index
    %97 = vector.load %arg3[%c0_42, %c0_43, %c0_44] : memref<2x128x384xf32, #tpu.memory_space<vmem>>, vector<1x128x384xf32>
    %98 = vector.shape_cast %97 : vector<1x128x384xf32> to vector<128x384xf32>
    %cst_45 = arith.constant dense<0.000000e+00> : vector<8x384xf32>
    %99 = tpu.matmul %45, %98, %cst_45 {dimension_numbers = #tpu.dot_dimension_numbers<[1], [0], [0], [1], [0, 0, 1, 1], [], []>} : vector<8x128xf32>, vector<128x384xf32>, vector<8x384xf32> -> vector<8x384xf32>
    %100 = vector.broadcast %8 : vector<1x384xf32> to vector<8x384xf32>
    %101 = arith.addf %99, %100 : vector<8x384xf32>
    %102 = vector.extract_strided_slice %95 {offsets = [0, 0], sizes = [8, 128], strides = [1, 1]} : vector<8x384xf32> to vector<8x128xf32>
    %103 = vector.extract_strided_slice %101 {offsets = [0, 0], sizes = [8, 128], strides = [1, 1]} : vector<8x384xf32> to vector<8x128xf32>
    %104 = arith.addf %102, %103 : vector<8x128xf32>
    %105 = arith.negf %104 : vector<8x128xf32>
    %106 = math.exp %105 : vector<8x128xf32>
    %cst_46 = arith.constant 1.000000e+00 : f32
    %107 = vector.broadcast %cst_46 : f32 to vector<8x128xf32>
    %108 = arith.addf %107, %106 : vector<8x128xf32>
    %109 = arith.divf %107, %108 : vector<8x128xf32>
    %110 = vector.extract_strided_slice %95 {offsets = [0, 128], sizes = [8, 128], strides = [1, 1]} : vector<8x384xf32> to vector<8x128xf32>
    %111 = vector.extract_strided_slice %101 {offsets = [0, 128], sizes = [8, 128], strides = [1, 1]} : vector<8x384xf32> to vector<8x128xf32>
    %112 = arith.addf %110, %111 : vector<8x128xf32>
    %113 = arith.negf %112 : vector<8x128xf32>
    %114 = math.exp %113 : vector<8x128xf32>
    %cst_47 = arith.constant 1.000000e+00 : f32
    %115 = vector.broadcast %cst_47 : f32 to vector<8x128xf32>
    %116 = arith.addf %115, %114 : vector<8x128xf32>
    %117 = arith.divf %115, %116 : vector<8x128xf32>
    %118 = vector.extract_strided_slice %95 {offsets = [0, 256], sizes = [8, 128], strides = [1, 1]} : vector<8x384xf32> to vector<8x128xf32>
    %119 = vector.extract_strided_slice %101 {offsets = [0, 256], sizes = [8, 128], strides = [1, 1]} : vector<8x384xf32> to vector<8x128xf32>
    %120 = arith.mulf %109, %119 : vector<8x128xf32>
    %121 = arith.addf %118, %120 : vector<8x128xf32>
    %122 = math.tanh %121 : vector<8x128xf32>
    %123 = arith.subf %45, %122 : vector<8x128xf32>
    %124 = arith.mulf %117, %123 : vector<8x128xf32>
    %125 = arith.addf %122, %124 : vector<8x128xf32>
    %c1_48 = arith.constant 1 : index
    %c0_49 = arith.constant 0 : index
    %c0_50 = arith.constant 0 : index
    %126 = vector.load %arg3[%c1_48, %c0_49, %c0_50] : memref<2x128x384xf32, #tpu.memory_space<vmem>>, vector<1x128x384xf32>
    %127 = vector.shape_cast %126 : vector<1x128x384xf32> to vector<128x384xf32>
    %cst_51 = arith.constant dense<0.000000e+00> : vector<8x384xf32>
    %128 = tpu.matmul %74, %127, %cst_51 {dimension_numbers = #tpu.dot_dimension_numbers<[1], [0], [0], [1], [0, 0, 1, 1], [], []>} : vector<8x128xf32>, vector<128x384xf32>, vector<8x384xf32> -> vector<8x384xf32>
    %129 = vector.broadcast %10 : vector<1x384xf32> to vector<8x384xf32>
    %130 = arith.addf %128, %129 : vector<8x384xf32>
    %131 = vector.extract_strided_slice %96 {offsets = [0, 0], sizes = [8, 128], strides = [1, 1]} : vector<8x384xf32> to vector<8x128xf32>
    %132 = vector.extract_strided_slice %130 {offsets = [0, 0], sizes = [8, 128], strides = [1, 1]} : vector<8x384xf32> to vector<8x128xf32>
    %133 = arith.addf %131, %132 : vector<8x128xf32>
    %134 = arith.negf %133 : vector<8x128xf32>
    %135 = math.exp %134 : vector<8x128xf32>
    %cst_52 = arith.constant 1.000000e+00 : f32
    %136 = vector.broadcast %cst_52 : f32 to vector<8x128xf32>
    %137 = arith.addf %136, %135 : vector<8x128xf32>
    %138 = arith.divf %136, %137 : vector<8x128xf32>
    %139 = vector.extract_strided_slice %96 {offsets = [0, 128], sizes = [8, 128], strides = [1, 1]} : vector<8x384xf32> to vector<8x128xf32>
    %140 = vector.extract_strided_slice %130 {offsets = [0, 128], sizes = [8, 128], strides = [1, 1]} : vector<8x384xf32> to vector<8x128xf32>
    %141 = arith.addf %139, %140 : vector<8x128xf32>
    %142 = arith.negf %141 : vector<8x128xf32>
    %143 = math.exp %142 : vector<8x128xf32>
    %cst_53 = arith.constant 1.000000e+00 : f32
    %144 = vector.broadcast %cst_53 : f32 to vector<8x128xf32>
    %145 = arith.addf %144, %143 : vector<8x128xf32>
    %146 = arith.divf %144, %145 : vector<8x128xf32>
    %147 = vector.extract_strided_slice %96 {offsets = [0, 256], sizes = [8, 128], strides = [1, 1]} : vector<8x384xf32> to vector<8x128xf32>
    %148 = vector.extract_strided_slice %130 {offsets = [0, 256], sizes = [8, 128], strides = [1, 1]} : vector<8x384xf32> to vector<8x128xf32>
    %149 = arith.mulf %138, %148 : vector<8x128xf32>
    %150 = arith.addf %147, %149 : vector<8x128xf32>
    %151 = math.tanh %150 : vector<8x128xf32>
    %152 = arith.subf %74, %151 : vector<8x128xf32>
    %153 = arith.mulf %146, %152 : vector<8x128xf32>
    %154 = arith.addf %151, %153 : vector<8x128xf32>
    %cst_54 = arith.constant 0.000000e+00 : f32
    %155 = vector.broadcast %cst_54 : f32 to vector<8x128xf32>
    %156 = arith.cmpf oge, %125, %155 : vector<8x128xf32>
    %cst_55 = arith.constant 2.000000e-01 : f32
    %157 = vector.broadcast %cst_55 : f32 to vector<8x128xf32>
    %158 = arith.mulf %157, %125 : vector<8x128xf32>
    %159 = arith.select %156, %125, %158 : vector<8x128xi1>, vector<8x128xf32>
    %c1_56 = arith.constant 1 : index
    %c0_57 = arith.constant 0 : index
    %c0_58 = arith.constant 0 : index
    %160 = vector.load %arg5[%c1_56, %c0_57, %c0_58] : memref<8x1x128xf32, #tpu.memory_space<vmem>>, vector<1x1x128xf32>
    %161 = vector.shape_cast %160 : vector<1x1x128xf32> to vector<1x128xf32>
    %162 = vector.broadcast %161 : vector<1x128xf32> to vector<8x128xf32>
    %163 = arith.mulf %159, %162 : vector<8x128xf32>
    %164 = arith.addf %94, %163 : vector<8x128xf32>
    %cst_59 = arith.constant 0.000000e+00 : f32
    %165 = vector.broadcast %cst_59 : f32 to vector<8x128xf32>
    %166 = arith.cmpf oge, %154, %165 : vector<8x128xf32>
    %cst_60 = arith.constant 2.000000e-01 : f32
    %167 = vector.broadcast %cst_60 : f32 to vector<8x128xf32>
    %168 = arith.mulf %167, %154 : vector<8x128xf32>
    %169 = arith.select %166, %154, %168 : vector<8x128xi1>, vector<8x128xf32>
    %c6 = arith.constant 6 : index
    %c0_61 = arith.constant 0 : index
    %c0_62 = arith.constant 0 : index
    %170 = vector.load %arg6[%c6, %c0_61, %c0_62] : memref<8x1x128xf32, #tpu.memory_space<vmem>>, vector<1x1x128xf32>
    %171 = vector.shape_cast %170 : vector<1x1x128xf32> to vector<1x128xf32>
    %172 = vector.broadcast %171 : vector<1x128xf32> to vector<8x128xf32>
    %173 = arith.mulf %169, %172 : vector<8x128xf32>
    %174 = arith.addf %164, %173 : vector<8x128xf32>
    %c16 = arith.constant 16 : index
    %c0_63 = arith.constant 0 : index
    %175 = vector.load %arg9[%c16, %c0_63] : memref<64x768xf32, #tpu.memory_space<vmem>>, vector<8x384xf32>
    %c40 = arith.constant 40 : index
    %c384_64 = arith.constant 384 : index
    %176 = vector.load %arg9[%c40, %c384_64] : memref<64x768xf32, #tpu.memory_space<vmem>>, vector<8x384xf32>
    %c0_65 = arith.constant 0 : index
    %c0_66 = arith.constant 0 : index
    %c0_67 = arith.constant 0 : index
    %177 = vector.load %arg3[%c0_65, %c0_66, %c0_67] : memref<2x128x384xf32, #tpu.memory_space<vmem>>, vector<1x128x384xf32>
    %178 = vector.shape_cast %177 : vector<1x128x384xf32> to vector<128x384xf32>
    %cst_68 = arith.constant dense<0.000000e+00> : vector<8x384xf32>
    %179 = tpu.matmul %125, %178, %cst_68 {dimension_numbers = #tpu.dot_dimension_numbers<[1], [0], [0], [1], [0, 0, 1, 1], [], []>} : vector<8x128xf32>, vector<128x384xf32>, vector<8x384xf32> -> vector<8x384xf32>
    %180 = vector.broadcast %8 : vector<1x384xf32> to vector<8x384xf32>
    %181 = arith.addf %179, %180 : vector<8x384xf32>
    %182 = vector.extract_strided_slice %175 {offsets = [0, 0], sizes = [8, 128], strides = [1, 1]} : vector<8x384xf32> to vector<8x128xf32>
    %183 = vector.extract_strided_slice %181 {offsets = [0, 0], sizes = [8, 128], strides = [1, 1]} : vector<8x384xf32> to vector<8x128xf32>
    %184 = arith.addf %182, %183 : vector<8x128xf32>
    %185 = arith.negf %184 : vector<8x128xf32>
    %186 = math.exp %185 : vector<8x128xf32>
    %cst_69 = arith.constant 1.000000e+00 : f32
    %187 = vector.broadcast %cst_69 : f32 to vector<8x128xf32>
    %188 = arith.addf %187, %186 : vector<8x128xf32>
    %189 = arith.divf %187, %188 : vector<8x128xf32>
    %190 = vector.extract_strided_slice %175 {offsets = [0, 128], sizes = [8, 128], strides = [1, 1]} : vector<8x384xf32> to vector<8x128xf32>
    %191 = vector.extract_strided_slice %181 {offsets = [0, 128], sizes = [8, 128], strides = [1, 1]} : vector<8x384xf32> to vector<8x128xf32>
    %192 = arith.addf %190, %191 : vector<8x128xf32>
    %193 = arith.negf %192 : vector<8x128xf32>
    %194 = math.exp %193 : vector<8x128xf32>
    %cst_70 = arith.constant 1.000000e+00 : f32
    %195 = vector.broadcast %cst_70 : f32 to vector<8x128xf32>
    %196 = arith.addf %195, %194 : vector<8x128xf32>
    %197 = arith.divf %195, %196 : vector<8x128xf32>
    %198 = vector.extract_strided_slice %175 {offsets = [0, 256], sizes = [8, 128], strides = [1, 1]} : vector<8x384xf32> to vector<8x128xf32>
    %199 = vector.extract_strided_slice %181 {offsets = [0, 256], sizes = [8, 128], strides = [1, 1]} : vector<8x384xf32> to vector<8x128xf32>
    %200 = arith.mulf %189, %199 : vector<8x128xf32>
    %201 = arith.addf %198, %200 : vector<8x128xf32>
    %202 = math.tanh %201 : vector<8x128xf32>
    %203 = arith.subf %125, %202 : vector<8x128xf32>
    %204 = arith.mulf %197, %203 : vector<8x128xf32>
    %205 = arith.addf %202, %204 : vector<8x128xf32>
    %c1_71 = arith.constant 1 : index
    %c0_72 = arith.constant 0 : index
    %c0_73 = arith.constant 0 : index
    %206 = vector.load %arg3[%c1_71, %c0_72, %c0_73] : memref<2x128x384xf32, #tpu.memory_space<vmem>>, vector<1x128x384xf32>
    %207 = vector.shape_cast %206 : vector<1x128x384xf32> to vector<128x384xf32>
    %cst_74 = arith.constant dense<0.000000e+00> : vector<8x384xf32>
    %208 = tpu.matmul %154, %207, %cst_74 {dimension_numbers = #tpu.dot_dimension_numbers<[1], [0], [0], [1], [0, 0, 1, 1], [], []>} : vector<8x128xf32>, vector<128x384xf32>, vector<8x384xf32> -> vector<8x384xf32>
    %209 = vector.broadcast %10 : vector<1x384xf32> to vector<8x384xf32>
    %210 = arith.addf %208, %209 : vector<8x384xf32>
    %211 = vector.extract_strided_slice %176 {offsets = [0, 0], sizes = [8, 128], strides = [1, 1]} : vector<8x384xf32> to vector<8x128xf32>
    %212 = vector.extract_strided_slice %210 {offsets = [0, 0], sizes = [8, 128], strides = [1, 1]} : vector<8x384xf32> to vector<8x128xf32>
    %213 = arith.addf %211, %212 : vector<8x128xf32>
    %214 = arith.negf %213 : vector<8x128xf32>
    %215 = math.exp %214 : vector<8x128xf32>
    %cst_75 = arith.constant 1.000000e+00 : f32
    %216 = vector.broadcast %cst_75 : f32 to vector<8x128xf32>
    %217 = arith.addf %216, %215 : vector<8x128xf32>
    %218 = arith.divf %216, %217 : vector<8x128xf32>
    %219 = vector.extract_strided_slice %176 {offsets = [0, 128], sizes = [8, 128], strides = [1, 1]} : vector<8x384xf32> to vector<8x128xf32>
    %220 = vector.extract_strided_slice %210 {offsets = [0, 128], sizes = [8, 128], strides = [1, 1]} : vector<8x384xf32> to vector<8x128xf32>
    %221 = arith.addf %219, %220 : vector<8x128xf32>
    %222 = arith.negf %221 : vector<8x128xf32>
    %223 = math.exp %222 : vector<8x128xf32>
    %cst_76 = arith.constant 1.000000e+00 : f32
    %224 = vector.broadcast %cst_76 : f32 to vector<8x128xf32>
    %225 = arith.addf %224, %223 : vector<8x128xf32>
    %226 = arith.divf %224, %225 : vector<8x128xf32>
    %227 = vector.extract_strided_slice %176 {offsets = [0, 256], sizes = [8, 128], strides = [1, 1]} : vector<8x384xf32> to vector<8x128xf32>
    %228 = vector.extract_strided_slice %210 {offsets = [0, 256], sizes = [8, 128], strides = [1, 1]} : vector<8x384xf32> to vector<8x128xf32>
    %229 = arith.mulf %218, %228 : vector<8x128xf32>
    %230 = arith.addf %227, %229 : vector<8x128xf32>
    %231 = math.tanh %230 : vector<8x128xf32>
    %232 = arith.subf %154, %231 : vector<8x128xf32>
    %233 = arith.mulf %226, %232 : vector<8x128xf32>
    %234 = arith.addf %231, %233 : vector<8x128xf32>
    %cst_77 = arith.constant 0.000000e+00 : f32
    %235 = vector.broadcast %cst_77 : f32 to vector<8x128xf32>
    %236 = arith.cmpf oge, %205, %235 : vector<8x128xf32>
    %cst_78 = arith.constant 2.000000e-01 : f32
    %237 = vector.broadcast %cst_78 : f32 to vector<8x128xf32>
    %238 = arith.mulf %237, %205 : vector<8x128xf32>
    %239 = arith.select %236, %205, %238 : vector<8x128xi1>, vector<8x128xf32>
    %c2 = arith.constant 2 : index
    %c0_79 = arith.constant 0 : index
    %c0_80 = arith.constant 0 : index
    %240 = vector.load %arg5[%c2, %c0_79, %c0_80] : memref<8x1x128xf32, #tpu.memory_space<vmem>>, vector<1x1x128xf32>
    %241 = vector.shape_cast %240 : vector<1x1x128xf32> to vector<1x128xf32>
    %242 = vector.broadcast %241 : vector<1x128xf32> to vector<8x128xf32>
    %243 = arith.mulf %239, %242 : vector<8x128xf32>
    %244 = arith.addf %174, %243 : vector<8x128xf32>
    %cst_81 = arith.constant 0.000000e+00 : f32
    %245 = vector.broadcast %cst_81 : f32 to vector<8x128xf32>
    %246 = arith.cmpf oge, %234, %245 : vector<8x128xf32>
    %cst_82 = arith.constant 2.000000e-01 : f32
    %247 = vector.broadcast %cst_82 : f32 to vector<8x128xf32>
    %248 = arith.mulf %247, %234 : vector<8x128xf32>
    %249 = arith.select %246, %234, %248 : vector<8x128xi1>, vector<8x128xf32>
    %c5 = arith.constant 5 : index
    %c0_83 = arith.constant 0 : index
    %c0_84 = arith.constant 0 : index
    %250 = vector.load %arg6[%c5, %c0_83, %c0_84] : memref<8x1x128xf32, #tpu.memory_space<vmem>>, vector<1x1x128xf32>
    %251 = vector.shape_cast %250 : vector<1x1x128xf32> to vector<1x128xf32>
    %252 = vector.broadcast %251 : vector<1x128xf32> to vector<8x128xf32>
    %253 = arith.mulf %249, %252 : vector<8x128xf32>
    %254 = arith.addf %244, %253 : vector<8x128xf32>
    %c24 = arith.constant 24 : index
    %c0_85 = arith.constant 0 : index
    %255 = vector.load %arg9[%c24, %c0_85] : memref<64x768xf32, #tpu.memory_space<vmem>>, vector<8x384xf32>
    %c32 = arith.constant 32 : index
    %c384_86 = arith.constant 384 : index
    %256 = vector.load %arg9[%c32, %c384_86] : memref<64x768xf32, #tpu.memory_space<vmem>>, vector<8x384xf32>
    %c0_87 = arith.constant 0 : index
    %c0_88 = arith.constant 0 : index
    %c0_89 = arith.constant 0 : index
    %257 = vector.load %arg3[%c0_87, %c0_88, %c0_89] : memref<2x128x384xf32, #tpu.memory_space<vmem>>, vector<1x128x384xf32>
    %258 = vector.shape_cast %257 : vector<1x128x384xf32> to vector<128x384xf32>
    %cst_90 = arith.constant dense<0.000000e+00> : vector<8x384xf32>
    %259 = tpu.matmul %205, %258, %cst_90 {dimension_numbers = #tpu.dot_dimension_numbers<[1], [0], [0], [1], [0, 0, 1, 1], [], []>} : vector<8x128xf32>, vector<128x384xf32>, vector<8x384xf32> -> vector<8x384xf32>
    %260 = vector.broadcast %8 : vector<1x384xf32> to vector<8x384xf32>
    %261 = arith.addf %259, %260 : vector<8x384xf32>
    %262 = vector.extract_strided_slice %255 {offsets = [0, 0], sizes = [8, 128], strides = [1, 1]} : vector<8x384xf32> to vector<8x128xf32>
    %263 = vector.extract_strided_slice %261 {offsets = [0, 0], sizes = [8, 128], strides = [1, 1]} : vector<8x384xf32> to vector<8x128xf32>
    %264 = arith.addf %262, %263 : vector<8x128xf32>
    %265 = arith.negf %264 : vector<8x128xf32>
    %266 = math.exp %265 : vector<8x128xf32>
    %cst_91 = arith.constant 1.000000e+00 : f32
    %267 = vector.broadcast %cst_91 : f32 to vector<8x128xf32>
    %268 = arith.addf %267, %266 : vector<8x128xf32>
    %269 = arith.divf %267, %268 : vector<8x128xf32>
    %270 = vector.extract_strided_slice %255 {offsets = [0, 128], sizes = [8, 128], strides = [1, 1]} : vector<8x384xf32> to vector<8x128xf32>
    %271 = vector.extract_strided_slice %261 {offsets = [0, 128], sizes = [8, 128], strides = [1, 1]} : vector<8x384xf32> to vector<8x128xf32>
    %272 = arith.addf %270, %271 : vector<8x128xf32>
    %273 = arith.negf %272 : vector<8x128xf32>
    %274 = math.exp %273 : vector<8x128xf32>
    %cst_92 = arith.constant 1.000000e+00 : f32
    %275 = vector.broadcast %cst_92 : f32 to vector<8x128xf32>
    %276 = arith.addf %275, %274 : vector<8x128xf32>
    %277 = arith.divf %275, %276 : vector<8x128xf32>
    %278 = vector.extract_strided_slice %255 {offsets = [0, 256], sizes = [8, 128], strides = [1, 1]} : vector<8x384xf32> to vector<8x128xf32>
    %279 = vector.extract_strided_slice %261 {offsets = [0, 256], sizes = [8, 128], strides = [1, 1]} : vector<8x384xf32> to vector<8x128xf32>
    %280 = arith.mulf %269, %279 : vector<8x128xf32>
    %281 = arith.addf %278, %280 : vector<8x128xf32>
    %282 = math.tanh %281 : vector<8x128xf32>
    %283 = arith.subf %205, %282 : vector<8x128xf32>
    %284 = arith.mulf %277, %283 : vector<8x128xf32>
    %285 = arith.addf %282, %284 : vector<8x128xf32>
    %c1_93 = arith.constant 1 : index
    %c0_94 = arith.constant 0 : index
    %c0_95 = arith.constant 0 : index
    %286 = vector.load %arg3[%c1_93, %c0_94, %c0_95] : memref<2x128x384xf32, #tpu.memory_space<vmem>>, vector<1x128x384xf32>
    %287 = vector.shape_cast %286 : vector<1x128x384xf32> to vector<128x384xf32>
    %cst_96 = arith.constant dense<0.000000e+00> : vector<8x384xf32>
    %288 = tpu.matmul %234, %287, %cst_96 {dimension_numbers = #tpu.dot_dimension_numbers<[1], [0], [0], [1], [0, 0, 1, 1], [], []>} : vector<8x128xf32>, vector<128x384xf32>, vector<8x384xf32> -> vector<8x384xf32>
    %289 = vector.broadcast %10 : vector<1x384xf32> to vector<8x384xf32>
    %290 = arith.addf %288, %289 : vector<8x384xf32>
    %291 = vector.extract_strided_slice %256 {offsets = [0, 0], sizes = [8, 128], strides = [1, 1]} : vector<8x384xf32> to vector<8x128xf32>
    %292 = vector.extract_strided_slice %290 {offsets = [0, 0], sizes = [8, 128], strides = [1, 1]} : vector<8x384xf32> to vector<8x128xf32>
    %293 = arith.addf %291, %292 : vector<8x128xf32>
    %294 = arith.negf %293 : vector<8x128xf32>
    %295 = math.exp %294 : vector<8x128xf32>
    %cst_97 = arith.constant 1.000000e+00 : f32
    %296 = vector.broadcast %cst_97 : f32 to vector<8x128xf32>
    %297 = arith.addf %296, %295 : vector<8x128xf32>
    %298 = arith.divf %296, %297 : vector<8x128xf32>
    %299 = vector.extract_strided_slice %256 {offsets = [0, 128], sizes = [8, 128], strides = [1, 1]} : vector<8x384xf32> to vector<8x128xf32>
    %300 = vector.extract_strided_slice %290 {offsets = [0, 128], sizes = [8, 128], strides = [1, 1]} : vector<8x384xf32> to vector<8x128xf32>
    %301 = arith.addf %299, %300 : vector<8x128xf32>
    %302 = arith.negf %301 : vector<8x128xf32>
    %303 = math.exp %302 : vector<8x128xf32>
    %cst_98 = arith.constant 1.000000e+00 : f32
    %304 = vector.broadcast %cst_98 : f32 to vector<8x128xf32>
    %305 = arith.addf %304, %303 : vector<8x128xf32>
    %306 = arith.divf %304, %305 : vector<8x128xf32>
    %307 = vector.extract_strided_slice %256 {offsets = [0, 256], sizes = [8, 128], strides = [1, 1]} : vector<8x384xf32> to vector<8x128xf32>
    %308 = vector.extract_strided_slice %290 {offsets = [0, 256], sizes = [8, 128], strides = [1, 1]} : vector<8x384xf32> to vector<8x128xf32>
    %309 = arith.mulf %298, %308 : vector<8x128xf32>
    %310 = arith.addf %307, %309 : vector<8x128xf32>
    %311 = math.tanh %310 : vector<8x128xf32>
    %312 = arith.subf %234, %311 : vector<8x128xf32>
    %313 = arith.mulf %306, %312 : vector<8x128xf32>
    %314 = arith.addf %311, %313 : vector<8x128xf32>
    %cst_99 = arith.constant 0.000000e+00 : f32
    %315 = vector.broadcast %cst_99 : f32 to vector<8x128xf32>
    %316 = arith.cmpf oge, %285, %315 : vector<8x128xf32>
    %cst_100 = arith.constant 2.000000e-01 : f32
    %317 = vector.broadcast %cst_100 : f32 to vector<8x128xf32>
    %318 = arith.mulf %317, %285 : vector<8x128xf32>
    %319 = arith.select %316, %285, %318 : vector<8x128xi1>, vector<8x128xf32>
    %c3 = arith.constant 3 : index
    %c0_101 = arith.constant 0 : index
    %c0_102 = arith.constant 0 : index
    %320 = vector.load %arg5[%c3, %c0_101, %c0_102] : memref<8x1x128xf32, #tpu.memory_space<vmem>>, vector<1x1x128xf32>
    %321 = vector.shape_cast %320 : vector<1x1x128xf32> to vector<1x128xf32>
    %322 = vector.broadcast %321 : vector<1x128xf32> to vector<8x128xf32>
    %323 = arith.mulf %319, %322 : vector<8x128xf32>
    %324 = arith.addf %254, %323 : vector<8x128xf32>
    %cst_103 = arith.constant 0.000000e+00 : f32
    %325 = vector.broadcast %cst_103 : f32 to vector<8x128xf32>
    %326 = arith.cmpf oge, %314, %325 : vector<8x128xf32>
    %cst_104 = arith.constant 2.000000e-01 : f32
    %327 = vector.broadcast %cst_104 : f32 to vector<8x128xf32>
    %328 = arith.mulf %327, %314 : vector<8x128xf32>
    %329 = arith.select %326, %314, %328 : vector<8x128xi1>, vector<8x128xf32>
    %c4 = arith.constant 4 : index
    %c0_105 = arith.constant 0 : index
    %c0_106 = arith.constant 0 : index
    %330 = vector.load %arg6[%c4, %c0_105, %c0_106] : memref<8x1x128xf32, #tpu.memory_space<vmem>>, vector<1x1x128xf32>
    %331 = vector.shape_cast %330 : vector<1x1x128xf32> to vector<1x128xf32>
    %332 = vector.broadcast %331 : vector<1x128xf32> to vector<8x128xf32>
    %333 = arith.mulf %329, %332 : vector<8x128xf32>
    %334 = arith.addf %324, %333 : vector<8x128xf32>
    %c32_107 = arith.constant 32 : index
    %c0_108 = arith.constant 0 : index
    %335 = vector.load %arg9[%c32_107, %c0_108] : memref<64x768xf32, #tpu.memory_space<vmem>>, vector<8x384xf32>
    %c24_109 = arith.constant 24 : index
    %c384_110 = arith.constant 384 : index
    %336 = vector.load %arg9[%c24_109, %c384_110] : memref<64x768xf32, #tpu.memory_space<vmem>>, vector<8x384xf32>
    %c0_111 = arith.constant 0 : index
    %c0_112 = arith.constant 0 : index
    %c0_113 = arith.constant 0 : index
    %337 = vector.load %arg3[%c0_111, %c0_112, %c0_113] : memref<2x128x384xf32, #tpu.memory_space<vmem>>, vector<1x128x384xf32>
    %338 = vector.shape_cast %337 : vector<1x128x384xf32> to vector<128x384xf32>
    %cst_114 = arith.constant dense<0.000000e+00> : vector<8x384xf32>
    %339 = tpu.matmul %285, %338, %cst_114 {dimension_numbers = #tpu.dot_dimension_numbers<[1], [0], [0], [1], [0, 0, 1, 1], [], []>} : vector<8x128xf32>, vector<128x384xf32>, vector<8x384xf32> -> vector<8x384xf32>
    %340 = vector.broadcast %8 : vector<1x384xf32> to vector<8x384xf32>
    %341 = arith.addf %339, %340 : vector<8x384xf32>
    %342 = vector.extract_strided_slice %335 {offsets = [0, 0], sizes = [8, 128], strides = [1, 1]} : vector<8x384xf32> to vector<8x128xf32>
    %343 = vector.extract_strided_slice %341 {offsets = [0, 0], sizes = [8, 128], strides = [1, 1]} : vector<8x384xf32> to vector<8x128xf32>
    %344 = arith.addf %342, %343 : vector<8x128xf32>
    %345 = arith.negf %344 : vector<8x128xf32>
    %346 = math.exp %345 : vector<8x128xf32>
    %cst_115 = arith.constant 1.000000e+00 : f32
    %347 = vector.broadcast %cst_115 : f32 to vector<8x128xf32>
    %348 = arith.addf %347, %346 : vector<8x128xf32>
    %349 = arith.divf %347, %348 : vector<8x128xf32>
    %350 = vector.extract_strided_slice %335 {offsets = [0, 128], sizes = [8, 128], strides = [1, 1]} : vector<8x384xf32> to vector<8x128xf32>
    %351 = vector.extract_strided_slice %341 {offsets = [0, 128], sizes = [8, 128], strides = [1, 1]} : vector<8x384xf32> to vector<8x128xf32>
    %352 = arith.addf %350, %351 : vector<8x128xf32>
    %353 = arith.negf %352 : vector<8x128xf32>
    %354 = math.exp %353 : vector<8x128xf32>
    %cst_116 = arith.constant 1.000000e+00 : f32
    %355 = vector.broadcast %cst_116 : f32 to vector<8x128xf32>
    %356 = arith.addf %355, %354 : vector<8x128xf32>
    %357 = arith.divf %355, %356 : vector<8x128xf32>
    %358 = vector.extract_strided_slice %335 {offsets = [0, 256], sizes = [8, 128], strides = [1, 1]} : vector<8x384xf32> to vector<8x128xf32>
    %359 = vector.extract_strided_slice %341 {offsets = [0, 256], sizes = [8, 128], strides = [1, 1]} : vector<8x384xf32> to vector<8x128xf32>
    %360 = arith.mulf %349, %359 : vector<8x128xf32>
    %361 = arith.addf %358, %360 : vector<8x128xf32>
    %362 = math.tanh %361 : vector<8x128xf32>
    %363 = arith.subf %285, %362 : vector<8x128xf32>
    %364 = arith.mulf %357, %363 : vector<8x128xf32>
    %365 = arith.addf %362, %364 : vector<8x128xf32>
    %c1_117 = arith.constant 1 : index
    %c0_118 = arith.constant 0 : index
    %c0_119 = arith.constant 0 : index
    %366 = vector.load %arg3[%c1_117, %c0_118, %c0_119] : memref<2x128x384xf32, #tpu.memory_space<vmem>>, vector<1x128x384xf32>
    %367 = vector.shape_cast %366 : vector<1x128x384xf32> to vector<128x384xf32>
    %cst_120 = arith.constant dense<0.000000e+00> : vector<8x384xf32>
    %368 = tpu.matmul %314, %367, %cst_120 {dimension_numbers = #tpu.dot_dimension_numbers<[1], [0], [0], [1], [0, 0, 1, 1], [], []>} : vector<8x128xf32>, vector<128x384xf32>, vector<8x384xf32> -> vector<8x384xf32>
    %369 = vector.broadcast %10 : vector<1x384xf32> to vector<8x384xf32>
    %370 = arith.addf %368, %369 : vector<8x384xf32>
    %371 = vector.extract_strided_slice %336 {offsets = [0, 0], sizes = [8, 128], strides = [1, 1]} : vector<8x384xf32> to vector<8x128xf32>
    %372 = vector.extract_strided_slice %370 {offsets = [0, 0], sizes = [8, 128], strides = [1, 1]} : vector<8x384xf32> to vector<8x128xf32>
    %373 = arith.addf %371, %372 : vector<8x128xf32>
    %374 = arith.negf %373 : vector<8x128xf32>
    %375 = math.exp %374 : vector<8x128xf32>
    %cst_121 = arith.constant 1.000000e+00 : f32
    %376 = vector.broadcast %cst_121 : f32 to vector<8x128xf32>
    %377 = arith.addf %376, %375 : vector<8x128xf32>
    %378 = arith.divf %376, %377 : vector<8x128xf32>
    %379 = vector.extract_strided_slice %336 {offsets = [0, 128], sizes = [8, 128], strides = [1, 1]} : vector<8x384xf32> to vector<8x128xf32>
    %380 = vector.extract_strided_slice %370 {offsets = [0, 128], sizes = [8, 128], strides = [1, 1]} : vector<8x384xf32> to vector<8x128xf32>
    %381 = arith.addf %379, %380 : vector<8x128xf32>
    %382 = arith.negf %381 : vector<8x128xf32>
    %383 = math.exp %382 : vector<8x128xf32>
    %cst_122 = arith.constant 1.000000e+00 : f32
    %384 = vector.broadcast %cst_122 : f32 to vector<8x128xf32>
    %385 = arith.addf %384, %383 : vector<8x128xf32>
    %386 = arith.divf %384, %385 : vector<8x128xf32>
    %387 = vector.extract_strided_slice %336 {offsets = [0, 256], sizes = [8, 128], strides = [1, 1]} : vector<8x384xf32> to vector<8x128xf32>
    %388 = vector.extract_strided_slice %370 {offsets = [0, 256], sizes = [8, 128], strides = [1, 1]} : vector<8x384xf32> to vector<8x128xf32>
    %389 = arith.mulf %378, %388 : vector<8x128xf32>
    %390 = arith.addf %387, %389 : vector<8x128xf32>
    %391 = math.tanh %390 : vector<8x128xf32>
    %392 = arith.subf %314, %391 : vector<8x128xf32>
    %393 = arith.mulf %386, %392 : vector<8x128xf32>
    %394 = arith.addf %391, %393 : vector<8x128xf32>
    %cst_123 = arith.constant 0.000000e+00 : f32
    %395 = vector.broadcast %cst_123 : f32 to vector<8x128xf32>
    %396 = arith.cmpf oge, %365, %395 : vector<8x128xf32>
    %cst_124 = arith.constant 2.000000e-01 : f32
    %397 = vector.broadcast %cst_124 : f32 to vector<8x128xf32>
    %398 = arith.mulf %397, %365 : vector<8x128xf32>
    %399 = arith.select %396, %365, %398 : vector<8x128xi1>, vector<8x128xf32>
    %c4_125 = arith.constant 4 : index
    %c0_126 = arith.constant 0 : index
    %c0_127 = arith.constant 0 : index
    %400 = vector.load %arg5[%c4_125, %c0_126, %c0_127] : memref<8x1x128xf32, #tpu.memory_space<vmem>>, vector<1x1x128xf32>
    %401 = vector.shape_cast %400 : vector<1x1x128xf32> to vector<1x128xf32>
    %402 = vector.broadcast %401 : vector<1x128xf32> to vector<8x128xf32>
    %403 = arith.mulf %399, %402 : vector<8x128xf32>
    %404 = arith.addf %334, %403 : vector<8x128xf32>
    %cst_128 = arith.constant 0.000000e+00 : f32
    %405 = vector.broadcast %cst_128 : f32 to vector<8x128xf32>
    %406 = arith.cmpf oge, %394, %405 : vector<8x128xf32>
    %cst_129 = arith.constant 2.000000e-01 : f32
    %407 = vector.broadcast %cst_129 : f32 to vector<8x128xf32>
    %408 = arith.mulf %407, %394 : vector<8x128xf32>
    %409 = arith.select %406, %394, %408 : vector<8x128xi1>, vector<8x128xf32>
    %c3_130 = arith.constant 3 : index
    %c0_131 = arith.constant 0 : index
    %c0_132 = arith.constant 0 : index
    %410 = vector.load %arg6[%c3_130, %c0_131, %c0_132] : memref<8x1x128xf32, #tpu.memory_space<vmem>>, vector<1x1x128xf32>
    %411 = vector.shape_cast %410 : vector<1x1x128xf32> to vector<1x128xf32>
    %412 = vector.broadcast %411 : vector<1x128xf32> to vector<8x128xf32>
    %413 = arith.mulf %409, %412 : vector<8x128xf32>
    %414 = arith.addf %404, %413 : vector<8x128xf32>
    %c40_133 = arith.constant 40 : index
    %c0_134 = arith.constant 0 : index
    %415 = vector.load %arg9[%c40_133, %c0_134] : memref<64x768xf32, #tpu.memory_space<vmem>>, vector<8x384xf32>
    %c16_135 = arith.constant 16 : index
    %c384_136 = arith.constant 384 : index
    %416 = vector.load %arg9[%c16_135, %c384_136] : memref<64x768xf32, #tpu.memory_space<vmem>>, vector<8x384xf32>
    %c0_137 = arith.constant 0 : index
    %c0_138 = arith.constant 0 : index
    %c0_139 = arith.constant 0 : index
    %417 = vector.load %arg3[%c0_137, %c0_138, %c0_139] : memref<2x128x384xf32, #tpu.memory_space<vmem>>, vector<1x128x384xf32>
    %418 = vector.shape_cast %417 : vector<1x128x384xf32> to vector<128x384xf32>
    %cst_140 = arith.constant dense<0.000000e+00> : vector<8x384xf32>
    %419 = tpu.matmul %365, %418, %cst_140 {dimension_numbers = #tpu.dot_dimension_numbers<[1], [0], [0], [1], [0, 0, 1, 1], [], []>} : vector<8x128xf32>, vector<128x384xf32>, vector<8x384xf32> -> vector<8x384xf32>
    %420 = vector.broadcast %8 : vector<1x384xf32> to vector<8x384xf32>
    %421 = arith.addf %419, %420 : vector<8x384xf32>
    %422 = vector.extract_strided_slice %415 {offsets = [0, 0], sizes = [8, 128], strides = [1, 1]} : vector<8x384xf32> to vector<8x128xf32>
    %423 = vector.extract_strided_slice %421 {offsets = [0, 0], sizes = [8, 128], strides = [1, 1]} : vector<8x384xf32> to vector<8x128xf32>
    %424 = arith.addf %422, %423 : vector<8x128xf32>
    %425 = arith.negf %424 : vector<8x128xf32>
    %426 = math.exp %425 : vector<8x128xf32>
    %cst_141 = arith.constant 1.000000e+00 : f32
    %427 = vector.broadcast %cst_141 : f32 to vector<8x128xf32>
    %428 = arith.addf %427, %426 : vector<8x128xf32>
    %429 = arith.divf %427, %428 : vector<8x128xf32>
    %430 = vector.extract_strided_slice %415 {offsets = [0, 128], sizes = [8, 128], strides = [1, 1]} : vector<8x384xf32> to vector<8x128xf32>
    %431 = vector.extract_strided_slice %421 {offsets = [0, 128], sizes = [8, 128], strides = [1, 1]} : vector<8x384xf32> to vector<8x128xf32>
    %432 = arith.addf %430, %431 : vector<8x128xf32>
    %433 = arith.negf %432 : vector<8x128xf32>
    %434 = math.exp %433 : vector<8x128xf32>
    %cst_142 = arith.constant 1.000000e+00 : f32
    %435 = vector.broadcast %cst_142 : f32 to vector<8x128xf32>
    %436 = arith.addf %435, %434 : vector<8x128xf32>
    %437 = arith.divf %435, %436 : vector<8x128xf32>
    %438 = vector.extract_strided_slice %415 {offsets = [0, 256], sizes = [8, 128], strides = [1, 1]} : vector<8x384xf32> to vector<8x128xf32>
    %439 = vector.extract_strided_slice %421 {offsets = [0, 256], sizes = [8, 128], strides = [1, 1]} : vector<8x384xf32> to vector<8x128xf32>
    %440 = arith.mulf %429, %439 : vector<8x128xf32>
    %441 = arith.addf %438, %440 : vector<8x128xf32>
    %442 = math.tanh %441 : vector<8x128xf32>
    %443 = arith.subf %365, %442 : vector<8x128xf32>
    %444 = arith.mulf %437, %443 : vector<8x128xf32>
    %445 = arith.addf %442, %444 : vector<8x128xf32>
    %c1_143 = arith.constant 1 : index
    %c0_144 = arith.constant 0 : index
    %c0_145 = arith.constant 0 : index
    %446 = vector.load %arg3[%c1_143, %c0_144, %c0_145] : memref<2x128x384xf32, #tpu.memory_space<vmem>>, vector<1x128x384xf32>
    %447 = vector.shape_cast %446 : vector<1x128x384xf32> to vector<128x384xf32>
    %cst_146 = arith.constant dense<0.000000e+00> : vector<8x384xf32>
    %448 = tpu.matmul %394, %447, %cst_146 {dimension_numbers = #tpu.dot_dimension_numbers<[1], [0], [0], [1], [0, 0, 1, 1], [], []>} : vector<8x128xf32>, vector<128x384xf32>, vector<8x384xf32> -> vector<8x384xf32>
    %449 = vector.broadcast %10 : vector<1x384xf32> to vector<8x384xf32>
    %450 = arith.addf %448, %449 : vector<8x384xf32>
    %451 = vector.extract_strided_slice %416 {offsets = [0, 0], sizes = [8, 128], strides = [1, 1]} : vector<8x384xf32> to vector<8x128xf32>
    %452 = vector.extract_strided_slice %450 {offsets = [0, 0], sizes = [8, 128], strides = [1, 1]} : vector<8x384xf32> to vector<8x128xf32>
    %453 = arith.addf %451, %452 : vector<8x128xf32>
    %454 = arith.negf %453 : vector<8x128xf32>
    %455 = math.exp %454 : vector<8x128xf32>
    %cst_147 = arith.constant 1.000000e+00 : f32
    %456 = vector.broadcast %cst_147 : f32 to vector<8x128xf32>
    %457 = arith.addf %456, %455 : vector<8x128xf32>
    %458 = arith.divf %456, %457 : vector<8x128xf32>
    %459 = vector.extract_strided_slice %416 {offsets = [0, 128], sizes = [8, 128], strides = [1, 1]} : vector<8x384xf32> to vector<8x128xf32>
    %460 = vector.extract_strided_slice %450 {offsets = [0, 128], sizes = [8, 128], strides = [1, 1]} : vector<8x384xf32> to vector<8x128xf32>
    %461 = arith.addf %459, %460 : vector<8x128xf32>
    %462 = arith.negf %461 : vector<8x128xf32>
    %463 = math.exp %462 : vector<8x128xf32>
    %cst_148 = arith.constant 1.000000e+00 : f32
    %464 = vector.broadcast %cst_148 : f32 to vector<8x128xf32>
    %465 = arith.addf %464, %463 : vector<8x128xf32>
    %466 = arith.divf %464, %465 : vector<8x128xf32>
    %467 = vector.extract_strided_slice %416 {offsets = [0, 256], sizes = [8, 128], strides = [1, 1]} : vector<8x384xf32> to vector<8x128xf32>
    %468 = vector.extract_strided_slice %450 {offsets = [0, 256], sizes = [8, 128], strides = [1, 1]} : vector<8x384xf32> to vector<8x128xf32>
    %469 = arith.mulf %458, %468 : vector<8x128xf32>
    %470 = arith.addf %467, %469 : vector<8x128xf32>
    %471 = math.tanh %470 : vector<8x128xf32>
    %472 = arith.subf %394, %471 : vector<8x128xf32>
    %473 = arith.mulf %466, %472 : vector<8x128xf32>
    %474 = arith.addf %471, %473 : vector<8x128xf32>
    %cst_149 = arith.constant 0.000000e+00 : f32
    %475 = vector.broadcast %cst_149 : f32 to vector<8x128xf32>
    %476 = arith.cmpf oge, %445, %475 : vector<8x128xf32>
    %cst_150 = arith.constant 2.000000e-01 : f32
    %477 = vector.broadcast %cst_150 : f32 to vector<8x128xf32>
    %478 = arith.mulf %477, %445 : vector<8x128xf32>
    %479 = arith.select %476, %445, %478 : vector<8x128xi1>, vector<8x128xf32>
    %c5_151 = arith.constant 5 : index
    %c0_152 = arith.constant 0 : index
    %c0_153 = arith.constant 0 : index
    %480 = vector.load %arg5[%c5_151, %c0_152, %c0_153] : memref<8x1x128xf32, #tpu.memory_space<vmem>>, vector<1x1x128xf32>
    %481 = vector.shape_cast %480 : vector<1x1x128xf32> to vector<1x128xf32>
    %482 = vector.broadcast %481 : vector<1x128xf32> to vector<8x128xf32>
    %483 = arith.mulf %479, %482 : vector<8x128xf32>
    %484 = arith.addf %414, %483 : vector<8x128xf32>
    %cst_154 = arith.constant 0.000000e+00 : f32
    %485 = vector.broadcast %cst_154 : f32 to vector<8x128xf32>
    %486 = arith.cmpf oge, %474, %485 : vector<8x128xf32>
    %cst_155 = arith.constant 2.000000e-01 : f32
    %487 = vector.broadcast %cst_155 : f32 to vector<8x128xf32>
    %488 = arith.mulf %487, %474 : vector<8x128xf32>
    %489 = arith.select %486, %474, %488 : vector<8x128xi1>, vector<8x128xf32>
    %c2_156 = arith.constant 2 : index
    %c0_157 = arith.constant 0 : index
    %c0_158 = arith.constant 0 : index
    %490 = vector.load %arg6[%c2_156, %c0_157, %c0_158] : memref<8x1x128xf32, #tpu.memory_space<vmem>>, vector<1x1x128xf32>
    %491 = vector.shape_cast %490 : vector<1x1x128xf32> to vector<1x128xf32>
    %492 = vector.broadcast %491 : vector<1x128xf32> to vector<8x128xf32>
    %493 = arith.mulf %489, %492 : vector<8x128xf32>
    %494 = arith.addf %484, %493 : vector<8x128xf32>
    %c48_159 = arith.constant 48 : index
    %c0_160 = arith.constant 0 : index
    %495 = vector.load %arg9[%c48_159, %c0_160] : memref<64x768xf32, #tpu.memory_space<vmem>>, vector<8x384xf32>
    %c8_161 = arith.constant 8 : index
    %c384_162 = arith.constant 384 : index
    %496 = vector.load %arg9[%c8_161, %c384_162] : memref<64x768xf32, #tpu.memory_space<vmem>>, vector<8x384xf32>
    %c0_163 = arith.constant 0 : index
    %c0_164 = arith.constant 0 : index
    %c0_165 = arith.constant 0 : index
    %497 = vector.load %arg3[%c0_163, %c0_164, %c0_165] : memref<2x128x384xf32, #tpu.memory_space<vmem>>, vector<1x128x384xf32>
    %498 = vector.shape_cast %497 : vector<1x128x384xf32> to vector<128x384xf32>
    %cst_166 = arith.constant dense<0.000000e+00> : vector<8x384xf32>
    %499 = tpu.matmul %445, %498, %cst_166 {dimension_numbers = #tpu.dot_dimension_numbers<[1], [0], [0], [1], [0, 0, 1, 1], [], []>} : vector<8x128xf32>, vector<128x384xf32>, vector<8x384xf32> -> vector<8x384xf32>
    %500 = vector.broadcast %8 : vector<1x384xf32> to vector<8x384xf32>
    %501 = arith.addf %499, %500 : vector<8x384xf32>
    %502 = vector.extract_strided_slice %495 {offsets = [0, 0], sizes = [8, 128], strides = [1, 1]} : vector<8x384xf32> to vector<8x128xf32>
    %503 = vector.extract_strided_slice %501 {offsets = [0, 0], sizes = [8, 128], strides = [1, 1]} : vector<8x384xf32> to vector<8x128xf32>
    %504 = arith.addf %502, %503 : vector<8x128xf32>
    %505 = arith.negf %504 : vector<8x128xf32>
    %506 = math.exp %505 : vector<8x128xf32>
    %cst_167 = arith.constant 1.000000e+00 : f32
    %507 = vector.broadcast %cst_167 : f32 to vector<8x128xf32>
    %508 = arith.addf %507, %506 : vector<8x128xf32>
    %509 = arith.divf %507, %508 : vector<8x128xf32>
    %510 = vector.extract_strided_slice %495 {offsets = [0, 128], sizes = [8, 128], strides = [1, 1]} : vector<8x384xf32> to vector<8x128xf32>
    %511 = vector.extract_strided_slice %501 {offsets = [0, 128], sizes = [8, 128], strides = [1, 1]} : vector<8x384xf32> to vector<8x128xf32>
    %512 = arith.addf %510, %511 : vector<8x128xf32>
    %513 = arith.negf %512 : vector<8x128xf32>
    %514 = math.exp %513 : vector<8x128xf32>
    %cst_168 = arith.constant 1.000000e+00 : f32
    %515 = vector.broadcast %cst_168 : f32 to vector<8x128xf32>
    %516 = arith.addf %515, %514 : vector<8x128xf32>
    %517 = arith.divf %515, %516 : vector<8x128xf32>
    %518 = vector.extract_strided_slice %495 {offsets = [0, 256], sizes = [8, 128], strides = [1, 1]} : vector<8x384xf32> to vector<8x128xf32>
    %519 = vector.extract_strided_slice %501 {offsets = [0, 256], sizes = [8, 128], strides = [1, 1]} : vector<8x384xf32> to vector<8x128xf32>
    %520 = arith.mulf %509, %519 : vector<8x128xf32>
    %521 = arith.addf %518, %520 : vector<8x128xf32>
    %522 = math.tanh %521 : vector<8x128xf32>
    %523 = arith.subf %445, %522 : vector<8x128xf32>
    %524 = arith.mulf %517, %523 : vector<8x128xf32>
    %525 = arith.addf %522, %524 : vector<8x128xf32>
    %c1_169 = arith.constant 1 : index
    %c0_170 = arith.constant 0 : index
    %c0_171 = arith.constant 0 : index
    %526 = vector.load %arg3[%c1_169, %c0_170, %c0_171] : memref<2x128x384xf32, #tpu.memory_space<vmem>>, vector<1x128x384xf32>
    %527 = vector.shape_cast %526 : vector<1x128x384xf32> to vector<128x384xf32>
    %cst_172 = arith.constant dense<0.000000e+00> : vector<8x384xf32>
    %528 = tpu.matmul %474, %527, %cst_172 {dimension_numbers = #tpu.dot_dimension_numbers<[1], [0], [0], [1], [0, 0, 1, 1], [], []>} : vector<8x128xf32>, vector<128x384xf32>, vector<8x384xf32> -> vector<8x384xf32>
    %529 = vector.broadcast %10 : vector<1x384xf32> to vector<8x384xf32>
    %530 = arith.addf %528, %529 : vector<8x384xf32>
    %531 = vector.extract_strided_slice %496 {offsets = [0, 0], sizes = [8, 128], strides = [1, 1]} : vector<8x384xf32> to vector<8x128xf32>
    %532 = vector.extract_strided_slice %530 {offsets = [0, 0], sizes = [8, 128], strides = [1, 1]} : vector<8x384xf32> to vector<8x128xf32>
    %533 = arith.addf %531, %532 : vector<8x128xf32>
    %534 = arith.negf %533 : vector<8x128xf32>
    %535 = math.exp %534 : vector<8x128xf32>
    %cst_173 = arith.constant 1.000000e+00 : f32
    %536 = vector.broadcast %cst_173 : f32 to vector<8x128xf32>
    %537 = arith.addf %536, %535 : vector<8x128xf32>
    %538 = arith.divf %536, %537 : vector<8x128xf32>
    %539 = vector.extract_strided_slice %496 {offsets = [0, 128], sizes = [8, 128], strides = [1, 1]} : vector<8x384xf32> to vector<8x128xf32>
    %540 = vector.extract_strided_slice %530 {offsets = [0, 128], sizes = [8, 128], strides = [1, 1]} : vector<8x384xf32> to vector<8x128xf32>
    %541 = arith.addf %539, %540 : vector<8x128xf32>
    %542 = arith.negf %541 : vector<8x128xf32>
    %543 = math.exp %542 : vector<8x128xf32>
    %cst_174 = arith.constant 1.000000e+00 : f32
    %544 = vector.broadcast %cst_174 : f32 to vector<8x128xf32>
    %545 = arith.addf %544, %543 : vector<8x128xf32>
    %546 = arith.divf %544, %545 : vector<8x128xf32>
    %547 = vector.extract_strided_slice %496 {offsets = [0, 256], sizes = [8, 128], strides = [1, 1]} : vector<8x384xf32> to vector<8x128xf32>
    %548 = vector.extract_strided_slice %530 {offsets = [0, 256], sizes = [8, 128], strides = [1, 1]} : vector<8x384xf32> to vector<8x128xf32>
    %549 = arith.mulf %538, %548 : vector<8x128xf32>
    %550 = arith.addf %547, %549 : vector<8x128xf32>
    %551 = math.tanh %550 : vector<8x128xf32>
    %552 = arith.subf %474, %551 : vector<8x128xf32>
    %553 = arith.mulf %546, %552 : vector<8x128xf32>
    %554 = arith.addf %551, %553 : vector<8x128xf32>
    %cst_175 = arith.constant 0.000000e+00 : f32
    %555 = vector.broadcast %cst_175 : f32 to vector<8x128xf32>
    %556 = arith.cmpf oge, %525, %555 : vector<8x128xf32>
    %cst_176 = arith.constant 2.000000e-01 : f32
    %557 = vector.broadcast %cst_176 : f32 to vector<8x128xf32>
    %558 = arith.mulf %557, %525 : vector<8x128xf32>
    %559 = arith.select %556, %525, %558 : vector<8x128xi1>, vector<8x128xf32>
    %c6_177 = arith.constant 6 : index
    %c0_178 = arith.constant 0 : index
    %c0_179 = arith.constant 0 : index
    %560 = vector.load %arg5[%c6_177, %c0_178, %c0_179] : memref<8x1x128xf32, #tpu.memory_space<vmem>>, vector<1x1x128xf32>
    %561 = vector.shape_cast %560 : vector<1x1x128xf32> to vector<1x128xf32>
    %562 = vector.broadcast %561 : vector<1x128xf32> to vector<8x128xf32>
    %563 = arith.mulf %559, %562 : vector<8x128xf32>
    %564 = arith.addf %494, %563 : vector<8x128xf32>
    %cst_180 = arith.constant 0.000000e+00 : f32
    %565 = vector.broadcast %cst_180 : f32 to vector<8x128xf32>
    %566 = arith.cmpf oge, %554, %565 : vector<8x128xf32>
    %cst_181 = arith.constant 2.000000e-01 : f32
    %567 = vector.broadcast %cst_181 : f32 to vector<8x128xf32>
    %568 = arith.mulf %567, %554 : vector<8x128xf32>
    %569 = arith.select %566, %554, %568 : vector<8x128xi1>, vector<8x128xf32>
    %c1_182 = arith.constant 1 : index
    %c0_183 = arith.constant 0 : index
    %c0_184 = arith.constant 0 : index
    %570 = vector.load %arg6[%c1_182, %c0_183, %c0_184] : memref<8x1x128xf32, #tpu.memory_space<vmem>>, vector<1x1x128xf32>
    %571 = vector.shape_cast %570 : vector<1x1x128xf32> to vector<1x128xf32>
    %572 = vector.broadcast %571 : vector<1x128xf32> to vector<8x128xf32>
    %573 = arith.mulf %569, %572 : vector<8x128xf32>
    %574 = arith.addf %564, %573 : vector<8x128xf32>
    %c56_185 = arith.constant 56 : index
    %c0_186 = arith.constant 0 : index
    %575 = vector.load %arg9[%c56_185, %c0_186] : memref<64x768xf32, #tpu.memory_space<vmem>>, vector<8x384xf32>
    %c0_187 = arith.constant 0 : index
    %c384_188 = arith.constant 384 : index
    %576 = vector.load %arg9[%c0_187, %c384_188] : memref<64x768xf32, #tpu.memory_space<vmem>>, vector<8x384xf32>
    %c0_189 = arith.constant 0 : index
    %c0_190 = arith.constant 0 : index
    %c0_191 = arith.constant 0 : index
    %577 = vector.load %arg3[%c0_189, %c0_190, %c0_191] : memref<2x128x384xf32, #tpu.memory_space<vmem>>, vector<1x128x384xf32>
    %578 = vector.shape_cast %577 : vector<1x128x384xf32> to vector<128x384xf32>
    %cst_192 = arith.constant dense<0.000000e+00> : vector<8x384xf32>
    %579 = tpu.matmul %525, %578, %cst_192 {dimension_numbers = #tpu.dot_dimension_numbers<[1], [0], [0], [1], [0, 0, 1, 1], [], []>} : vector<8x128xf32>, vector<128x384xf32>, vector<8x384xf32> -> vector<8x384xf32>
    %580 = vector.broadcast %8 : vector<1x384xf32> to vector<8x384xf32>
    %581 = arith.addf %579, %580 : vector<8x384xf32>
    %582 = vector.extract_strided_slice %575 {offsets = [0, 0], sizes = [8, 128], strides = [1, 1]} : vector<8x384xf32> to vector<8x128xf32>
    %583 = vector.extract_strided_slice %581 {offsets = [0, 0], sizes = [8, 128], strides = [1, 1]} : vector<8x384xf32> to vector<8x128xf32>
    %584 = arith.addf %582, %583 : vector<8x128xf32>
    %585 = arith.negf %584 : vector<8x128xf32>
    %586 = math.exp %585 : vector<8x128xf32>
    %cst_193 = arith.constant 1.000000e+00 : f32
    %587 = vector.broadcast %cst_193 : f32 to vector<8x128xf32>
    %588 = arith.addf %587, %586 : vector<8x128xf32>
    %589 = arith.divf %587, %588 : vector<8x128xf32>
    %590 = vector.extract_strided_slice %575 {offsets = [0, 128], sizes = [8, 128], strides = [1, 1]} : vector<8x384xf32> to vector<8x128xf32>
    %591 = vector.extract_strided_slice %581 {offsets = [0, 128], sizes = [8, 128], strides = [1, 1]} : vector<8x384xf32> to vector<8x128xf32>
    %592 = arith.addf %590, %591 : vector<8x128xf32>
    %593 = arith.negf %592 : vector<8x128xf32>
    %594 = math.exp %593 : vector<8x128xf32>
    %cst_194 = arith.constant 1.000000e+00 : f32
    %595 = vector.broadcast %cst_194 : f32 to vector<8x128xf32>
    %596 = arith.addf %595, %594 : vector<8x128xf32>
    %597 = arith.divf %595, %596 : vector<8x128xf32>
    %598 = vector.extract_strided_slice %575 {offsets = [0, 256], sizes = [8, 128], strides = [1, 1]} : vector<8x384xf32> to vector<8x128xf32>
    %599 = vector.extract_strided_slice %581 {offsets = [0, 256], sizes = [8, 128], strides = [1, 1]} : vector<8x384xf32> to vector<8x128xf32>
    %600 = arith.mulf %589, %599 : vector<8x128xf32>
    %601 = arith.addf %598, %600 : vector<8x128xf32>
    %602 = math.tanh %601 : vector<8x128xf32>
    %603 = arith.subf %525, %602 : vector<8x128xf32>
    %604 = arith.mulf %597, %603 : vector<8x128xf32>
    %605 = arith.addf %602, %604 : vector<8x128xf32>
    %c1_195 = arith.constant 1 : index
    %c0_196 = arith.constant 0 : index
    %c0_197 = arith.constant 0 : index
    %606 = vector.load %arg3[%c1_195, %c0_196, %c0_197] : memref<2x128x384xf32, #tpu.memory_space<vmem>>, vector<1x128x384xf32>
    %607 = vector.shape_cast %606 : vector<1x128x384xf32> to vector<128x384xf32>
    %cst_198 = arith.constant dense<0.000000e+00> : vector<8x384xf32>
    %608 = tpu.matmul %554, %607, %cst_198 {dimension_numbers = #tpu.dot_dimension_numbers<[1], [0], [0], [1], [0, 0, 1, 1], [], []>} : vector<8x128xf32>, vector<128x384xf32>, vector<8x384xf32> -> vector<8x384xf32>
    %609 = vector.broadcast %10 : vector<1x384xf32> to vector<8x384xf32>
    %610 = arith.addf %608, %609 : vector<8x384xf32>
    %611 = vector.extract_strided_slice %576 {offsets = [0, 0], sizes = [8, 128], strides = [1, 1]} : vector<8x384xf32> to vector<8x128xf32>
    %612 = vector.extract_strided_slice %610 {offsets = [0, 0], sizes = [8, 128], strides = [1, 1]} : vector<8x384xf32> to vector<8x128xf32>
    %613 = arith.addf %611, %612 : vector<8x128xf32>
    %614 = arith.negf %613 : vector<8x128xf32>
    %615 = math.exp %614 : vector<8x128xf32>
    %cst_199 = arith.constant 1.000000e+00 : f32
    %616 = vector.broadcast %cst_199 : f32 to vector<8x128xf32>
    %617 = arith.addf %616, %615 : vector<8x128xf32>
    %618 = arith.divf %616, %617 : vector<8x128xf32>
    %619 = vector.extract_strided_slice %576 {offsets = [0, 128], sizes = [8, 128], strides = [1, 1]} : vector<8x384xf32> to vector<8x128xf32>
    %620 = vector.extract_strided_slice %610 {offsets = [0, 128], sizes = [8, 128], strides = [1, 1]} : vector<8x384xf32> to vector<8x128xf32>
    %621 = arith.addf %619, %620 : vector<8x128xf32>
    %622 = arith.negf %621 : vector<8x128xf32>
    %623 = math.exp %622 : vector<8x128xf32>
    %cst_200 = arith.constant 1.000000e+00 : f32
    %624 = vector.broadcast %cst_200 : f32 to vector<8x128xf32>
    %625 = arith.addf %624, %623 : vector<8x128xf32>
    %626 = arith.divf %624, %625 : vector<8x128xf32>
    %627 = vector.extract_strided_slice %576 {offsets = [0, 256], sizes = [8, 128], strides = [1, 1]} : vector<8x384xf32> to vector<8x128xf32>
    %628 = vector.extract_strided_slice %610 {offsets = [0, 256], sizes = [8, 128], strides = [1, 1]} : vector<8x384xf32> to vector<8x128xf32>
    %629 = arith.mulf %618, %628 : vector<8x128xf32>
    %630 = arith.addf %627, %629 : vector<8x128xf32>
    %631 = math.tanh %630 : vector<8x128xf32>
    %632 = arith.subf %554, %631 : vector<8x128xf32>
    %633 = arith.mulf %626, %632 : vector<8x128xf32>
    %634 = arith.addf %631, %633 : vector<8x128xf32>
    %cst_201 = arith.constant 0.000000e+00 : f32
    %635 = vector.broadcast %cst_201 : f32 to vector<8x128xf32>
    %636 = arith.cmpf oge, %605, %635 : vector<8x128xf32>
    %cst_202 = arith.constant 2.000000e-01 : f32
    %637 = vector.broadcast %cst_202 : f32 to vector<8x128xf32>
    %638 = arith.mulf %637, %605 : vector<8x128xf32>
    %639 = arith.select %636, %605, %638 : vector<8x128xi1>, vector<8x128xf32>
    %c7_203 = arith.constant 7 : index
    %c0_204 = arith.constant 0 : index
    %c0_205 = arith.constant 0 : index
    %640 = vector.load %arg5[%c7_203, %c0_204, %c0_205] : memref<8x1x128xf32, #tpu.memory_space<vmem>>, vector<1x1x128xf32>
    %641 = vector.shape_cast %640 : vector<1x1x128xf32> to vector<1x128xf32>
    %642 = vector.broadcast %641 : vector<1x128xf32> to vector<8x128xf32>
    %643 = arith.mulf %639, %642 : vector<8x128xf32>
    %644 = arith.addf %574, %643 : vector<8x128xf32>
    %cst_206 = arith.constant 0.000000e+00 : f32
    %645 = vector.broadcast %cst_206 : f32 to vector<8x128xf32>
    %646 = arith.cmpf oge, %634, %645 : vector<8x128xf32>
    %cst_207 = arith.constant 2.000000e-01 : f32
    %647 = vector.broadcast %cst_207 : f32 to vector<8x128xf32>
    %648 = arith.mulf %647, %634 : vector<8x128xf32>
    %649 = arith.select %646, %634, %648 : vector<8x128xi1>, vector<8x128xf32>
    %c0_208 = arith.constant 0 : index
    %c0_209 = arith.constant 0 : index
    %c0_210 = arith.constant 0 : index
    %650 = vector.load %arg6[%c0_208, %c0_209, %c0_210] : memref<8x1x128xf32, #tpu.memory_space<vmem>>, vector<1x1x128xf32>
    %651 = vector.shape_cast %650 : vector<1x1x128xf32> to vector<1x128xf32>
    %652 = vector.broadcast %651 : vector<1x128xf32> to vector<8x128xf32>
    %653 = arith.mulf %649, %652 : vector<8x128xf32>
    %654 = arith.addf %644, %653 : vector<8x128xf32>
    %cst_211 = arith.constant dense<0.000000e+00> : vector<8xf32>
    %655 = vector.multi_reduction <add>, %654, %cst_211 [1] : vector<8x128xf32> to vector<8xf32>
    %656 = vector.shape_cast %655 : vector<8xf32> to vector<8x1xf32>
    %657 = vector.broadcast %11 : f32 to vector<8x1xf32>
    %658 = arith.addf %656, %657 : vector<8x1xf32>
    %659 = arith.negf %658 : vector<8x1xf32>
    %660 = math.exp %659 : vector<8x1xf32>
    %cst_212 = arith.constant 1.000000e+00 : f32
    %661 = vector.broadcast %cst_212 : f32 to vector<8x1xf32>
    %662 = arith.addf %661, %660 : vector<8x1xf32>
    %663 = arith.divf %661, %662 : vector<8x1xf32>
    %c0_213 = arith.constant 0 : index
    %c0_214 = arith.constant 0 : index
    %664 = vector.load %arg8[%c0_213, %c0_214] : memref<8x1xf32, #tpu.memory_space<vmem>>, vector<8x1xf32>
    tpu.vector_store %arg8[%c0_213, %c0_214], %663 {strides = array<i32>} : memref<8x1xf32, #tpu.memory_space<vmem>>, vector<8x1xf32>,
    return
  }
}

</mosaic_0001>

<llo_original>
// kernel: discriminator_forward.1
$region0: #{discriminator_forward.1}
  #allocation0 [shape = 'u32[]', space=smem, size = 0x4, offset = 0x4, fixed_abs, tag = 'smem constant byte address 0x4 - core index']
  #allocation1 [shape = 'u32[144,128]{1,0:T(1,128)}', space=vmem, size = 0x12000, scoped, tag = 'internal scratch']
  #allocation2 [shape = 'f32[64,768]{1,0:T(8,128)}', space=vmem, size = 0x30000, scoped, tag = 'scratch operand']
  #allocation3 [shape = 'f32[1,1]{1,0:T(1,128)S(6)}', space=smem, size = 0x200, scoped, tag = 'scoped memory for discriminator_forward.1']
  %s0 = inlined_call_operand.vmem [shape: f32[64,4], index: 0, kind: input, shape index: {}]
  %s1 = inlined_call_operand.vmem [shape: f32[4,768], index: 1, kind: input, shape index: {}]
  %s2 = inlined_call_operand.vmem [shape: f32[1,768], index: 2, kind: input, shape index: {}]
  %s3 = inlined_call_operand.hbm [shape: f32[2,128,384], index: 3, kind: input, shape index: {}]
  %s4 = inlined_call_operand.vmem [shape: f32[2,1,384], index: 4, kind: input, shape index: {}]
  %s5 = inlined_call_operand.vmem [shape: f32[8,1,128], index: 5, kind: input, shape index: {}]
  %s6 = inlined_call_operand.vmem [shape: f32[8,1,128], index: 6, kind: input, shape index: {}]
  %s7 = inlined_call_operand.<no memory space> [shape: f32[1,1], index: 7, kind: input, shape index: {}]
  %s8 = inlined_call_operand.vmem [shape: f32[8,1], index: 8, kind: output, shape index: {}]
  %s9 = sld [smem:[#allocation0]]
  $region46: #{discriminator_forward.1} parent=0
    _
  %s11 = ssub.s32 1, %s9
  %s12 = scalar_select 0, %s11, %s9
  %13 = sst [smem:[#allocation3]] %s7
  $region1: #{discriminator_forward.1} parent=0
    #allocation4 [shape = 'u8[393216]{0}', space=vmem, size = 0x60000, scoped, tag = 'input window, operand 3, single buffered']
    #allocation5 [shape = 's32[1]{0}', space=sflag, size = 0x4, scoped, tag = 'scoped memory for discriminator_forward.1']
    %14 = vsyncpa [#allocation5], 0
    // Predicated region
    $region2: #{discriminator_forward.1} parent=1 // pred_check
      _
    $region3: #{discriminator_forward.1} parent=1 // pred_check_branch
      %16 = sbr.rel (0) target = $region5
    $region4: #{discriminator_forward.1} parent=1 // pred_region
      _
    $region5: #{discriminator_forward.1} parent=1 // pred_fallthru
      _
    // Predicated region
    $region6: #{discriminator_forward.1} parent=1 // pred_check
      _
    $region7: #{discriminator_forward.1} parent=1 // pred_check_branch
      %18 = sbr.rel (0) target = $region9
    $region8: #{discriminator_forward.1} parent=1 // pred_region
      _
    $region9: #{discriminator_forward.1} parent=1 // pred_fallthru
      _
    // Predicated region
    $region10: #{discriminator_forward.1} parent=1 // pred_check
      _
    $region11: #{discriminator_forward.1} parent=1 // pred_check_branch
      %20 = sbr.rel (0) target = $region13
    $region12: #{discriminator_forward.1} parent=1 // pred_region
      _
    $region13: #{discriminator_forward.1} parent=1 // pred_fallthru
      _
    // Predicated region
    $region14: #{discriminator_forward.1} parent=1 // pred_check
      _
    $region15: #{discriminator_forward.1} parent=1 // pred_check_branch
      %22 = sbr.rel (0) target = $region17
    $region16: #{discriminator_forward.1} parent=1 // pred_region
      %s24 = ssub.s32 12288, 12288
      %25 = vsyncadd [#allocation5], %s24
      %s26 = sshll.u32 [#allocation4], 4
      %s27 = int_to_ptr.vmem [resolvable:$true] %s26
      %32 = dma.hbm_to_vmem [thread:$0]  %s3, 12288, %s27, [#allocation5], 384, 384, 24
    $region17: #{discriminator_forward.1} parent=1 // pred_fallthru
      _
    // Predicated region
    $region18: #{discriminator_forward.1} parent=1 // pred_check
      _
    $region19: #{discriminator_forward.1} parent=1 // pred_check_branch
      %34 = sbr.rel (0) target = $region21
    $region20: #{discriminator_forward.1} parent=1 // pred_region
      _
    $region21: #{discriminator_forward.1} parent=1 // pred_fallthru
      _
    // Predicated region
    $region22: #{discriminator_forward.1} parent=1 // pred_check
      _
    $region23: #{discriminator_forward.1} parent=1 // pred_check_branch
      %36 = sbr.rel (0) target = $region25
    $region24: #{discriminator_forward.1} parent=1 // pred_region
      _
    $region25: #{discriminator_forward.1} parent=1 // pred_fallthru
      _
    // Predicated region
    $region26: #{discriminator_forward.1} parent=1 // pred_check
      _
    $region27: #{discriminator_forward.1} parent=1 // pred_check_branch
      %38 = sbr.rel (0) target = $region29
    $region28: #{discriminator_forward.1} parent=1 // pred_region
      _
    $region29: #{discriminator_forward.1} parent=1 // pred_fallthru
      _
    // Predicated region
    $region30: #{discriminator_forward.1} parent=1 // pred_check
      _
    $region31: #{discriminator_forward.1} parent=1 // pred_check_branch
      %40 = sbr.rel (0) target = $region33
    $region32: #{discriminator_forward.1} parent=1 // pred_region
      _
    $region33: #{discriminator_forward.1} parent=1 // pred_fallthru
      _
    // Predicated region
    $region34: #{discriminator_forward.1} parent=1 // pred_check
      _
    $region35: #{discriminator_forward.1} parent=1 // pred_check_branch
      %42 = sbr.rel (0) target = $region37
    $region36: #{discriminator_forward.1} parent=1 // pred_region
      %43 = dma.done [#allocation5], 12288
    $region37: #{discriminator_forward.1} parent=1 // pred_fallthru
      _
    %v44 = vld [vmem:[%s0] sm:$0xff]
    %v45 = vld [vmem:[%s0 + $0x8] sm:$0xff]
    %v46 = vld [vmem:[%s0 + $0x10] sm:$0xff]
    %v47 = vld [vmem:[%s0 + $0x18] sm:$0xff]
    %v48 = vld [vmem:[%s0 + $0x20] sm:$0xff]
    %v49 = vld [vmem:[%s0 + $0x28] sm:$0xff]
    %v50 = vld [vmem:[%s0 + $0x30] sm:$0xff]
    %v51 = vld [vmem:[%s0 + $0x38] sm:$0xff]
    %v52 = vld [vmem:[%s1] sm:$0xff]
    %v53 = vld [vmem:[%s1 + $0x8] sm:$0xff]
    %v54 = vld [vmem:[%s1 + $0x10] sm:$0xff]
    %v55 = vld [vmem:[%s2] sm:$0x3f]
    %v57 = vlaneseq
    %v58 = vshrl.u32 %v57, 7
    %v59 = vsub.s32 0, %v58
    %v60 = vrot.slane %v55, %v59
    %v61 = vlaneseq
    %v62 = vshrl.u32 %v61, 7
    %v63 = vsub.s32 1, %v62
    %v64 = vrot.slane %v55, %v63
    %v65 = vlaneseq
    %v66 = vshrl.u32 %v65, 7
    %v67 = vsub.s32 2, %v66
    %v68 = vrot.slane %v55, %v67
    %v69 = vlaneseq
    %v70 = vshrl.u32 %v69, 7
    %v71 = vsub.s32 3, %v70
    %v72 = vrot.slane %v55, %v71
    %v73 = vlaneseq
    %v74 = vshrl.u32 %v73, 7
    %v75 = vsub.s32 4, %v74
    %v76 = vrot.slane %v55, %v75
    %v77 = vlaneseq
    %v78 = vshrl.u32 %v77, 7
    %v79 = vsub.s32 5, %v78
    %v80 = vrot.slane %v55, %v79
    %v90 = vcombine.high %v52, %v52
    %v91 = vcombine.high %v53, %v53
    %v92 = vcombine.high %v54, %v54
    %vm93 = vcmask 31744
    %v95 = vsel %vm93, %v44, 0
    %v98 = vsel %vm93, %v45, 0
    %v101 = vsel %vm93, %v46, 0
    %v104 = vsel %vm93, %v47, 0
    %v107 = vsel %vm93, %v48, 0
    %v110 = vsel %vm93, %v49, 0
    %v113 = vsel %vm93, %v50, 0
    %v116 = vsel %vm93, %v51, 0
    %vm118 = vcmask 1043456
    %v119 = vsel %vm118, %v52, 0
    %v121 = vsel %vm118, %v90, 0
    %v123 = vsel %vm118, %v53, 0
    %v125 = vsel %vm118, %v91, 0
    %v127 = vsel %vm118, %v54, 0
    %v129 = vsel %vm118, %v92, 0
    %131 = vmatprep.subr.mxu0 %v121
    %132 = vmatpush1.msra.mxu0 %v119
    %133 = vmatprep.subr.mxu0 0.0
    %134 = vmatpush1.msra.mxu0 0.0
    %135 = vmatprep.subr.mxu0 0.0
    %136 = vmatpush1.msra.mxu0 0.0
    %137 = vmatprep.subr.mxu0 0.0
    %138 = vmatpush1.msra.mxu0 0.0
    %139 = vmatprep.subr.mxu0 0.0
    %140 = vmatpush1.msra.mxu0 0.0
    %141 = vmatprep.subr.mxu0 0.0
    %142 = vmatpush1.msra.mxu0 0.0
    %143 = vmatprep.subr.mxu0 0.0
    %144 = vmatpush1.msra.mxu0 0.0
    %145 = vmatprep.subr.mxu0 0.0
    %146 = vmatpush1.msra.mxu0 0.0
    %147 = vmatprep.subr.mxu0 0.0
    %148 = vmatpush1.msra.mxu0 0.0
    %149 = vmatprep.subr.mxu0 0.0
    %150 = vmatpush1.msra.mxu0 0.0
    %151 = vmatprep.subr.mxu0 0.0
    %152 = vmatpush1.msra.mxu0 0.0
    %153 = vmatprep.subr.mxu0 0.0
    %154 = vmatpush1.msra.mxu0 0.0
    %155 = vmatprep.subr.mxu0 0.0
    %156 = vmatpush1.msra.mxu0 0.0
    %157 = vmatprep.subr.mxu0 0.0
    %158 = vmatpush1.msra.mxu0 0.0
    %159 = vmatprep.subr.mxu0 0.0
    %160 = vmatpush1.msra.mxu0 0.0
    %161 = vmatprep.subr.mxu0 0.0
    %162 = vmatpush1.msra.mxu0 0.0
    %163 = vmatprep.subr.mxu0 0.0
    %164 = vmatpush1.msra.mxu0 0.0
    %165 = vmatprep.subr.mxu0 0.0
    %166 = vmatpush1.msra.mxu0 0.0
    %167 = vmatprep.subr.mxu0 0.0
    %168 = vmatpush1.msra.mxu0 0.0
    %169 = vmatprep.subr.mxu0 0.0
    %170 = vmatpush1.msra.mxu0 0.0
    %171 = vmatprep.subr.mxu0 0.0
    %172 = vmatpush1.msra.mxu0 0.0
    %173 = vmatprep.subr.mxu0 0.0
    %174 = vmatpush1.msra.mxu0 0.0
    %175 = vmatprep.subr.mxu0 0.0
    %176 = vmatpush1.msra.mxu0 0.0
    %177 = vmatprep.subr.mxu0 0.0
    %178 = vmatpush1.msra.mxu0 0.0
    %179 = vmatprep.subr.mxu0 0.0
    %180 = vmatpush1.msra.mxu0 0.0
    %181 = vmatprep.subr.mxu0 0.0
    %182 = vmatpush1.msra.mxu0 0.0
    %183 = vmatprep.subr.mxu0 0.0
    %184 = vmatpush1.msra.mxu0 0.0
    %185 = vmatprep.subr.mxu0 0.0
    %186 = vmatpush1.msra.mxu0 0.0
    %187 = vmatprep.subr.mxu0 0.0
    %188 = vmatpush1.msra.mxu0 0.0
    %189 = vmatprep.subr.mxu0 0.0
    %190 = vmatpush1.msra.mxu0 0.0
    %191 = vmatprep.subr.mxu0 0.0
    %192 = vmatpush1.msra.mxu0 0.0
    %193 = vmatprep.subr.mxu0 0.0
    %194 = vmatpush1.msra.mxu0 0.0
    %195 = vmatprep.mubr.f32.mxu0 0.0
    %196 = vmatmul.mubr.f32.gmra.mrb[0].mxu0 %v95
    %v197 = vpop.f32.mrb[0].mxu0
    %v198 = vadd.f32 %v60, %v197
    %v199 = vpop.f32.mrb[0].mxu0
    %v200 = vadd.f32 %v64, %v199
    %201 = vmatprep.mubr.f32.mxu0 0.0
    %202 = vmatmul.mubr.f32.gmra.mrb[0].mxu0 %v98
    %v203 = vpop.f32.mrb[0].mxu0
    %v204 = vadd.f32 %v60, %v203
    %v205 = vpop.f32.mrb[0].mxu0
    %v206 = vadd.f32 %v64, %v205
    %207 = vmatprep.mubr.f32.mxu0 0.0
    %208 = vmatmul.mubr.f32.gmra.mrb[0].mxu0 %v101
    %v209 = vpop.f32.mrb[0].mxu0
    %v210 = vadd.f32 %v60, %v209
    %v211 = vpop.f32.mrb[0].mxu0
    %v212 = vadd.f32 %v64, %v211
    %213 = vmatprep.mubr.f32.mxu0 0.0
    %214 = vmatmul.mubr.f32.gmra.mrb[0].mxu0 %v104
    %v215 = vpop.f32.mrb[0].mxu0
    %v216 = vadd.f32 %v60, %v215
    %v217 = vpop.f32.mrb[0].mxu0
    %v218 = vadd.f32 %v64, %v217
    %219 = vmatprep.mubr.f32.mxu0 0.0
    %220 = vmatmul.mubr.f32.gmra.mrb[0].mxu0 %v107
    %v221 = vpop.f32.mrb[0].mxu0
    %v222 = vadd.f32 %v60, %v221
    %v223 = vpop.f32.mrb[0].mxu0
    %v224 = vadd.f32 %v64, %v223
    %225 = vmatprep.mubr.f32.mxu0 0.0
    %226 = vmatmul.mubr.f32.gmra.mrb[0].mxu0 %v110
    %v227 = vpop.f32.mrb[0].mxu0
    %v228 = vadd.f32 %v60, %v227
    %v229 = vpop.f32.mrb[0].mxu0
    %v230 = vadd.f32 %v64, %v229
    %231 = vmatprep.mubr.f32.mxu0 0.0
    %232 = vmatmul.mubr.f32.gmra.mrb[0].mxu0 %v113
    %v233 = vpop.f32.mrb[0].mxu0
    %v234 = vadd.f32 %v60, %v233
    %v235 = vpop.f32.mrb[0].mxu0
    %v236 = vadd.f32 %v64, %v235
    %237 = vmatprep.mubr.f32.mxu0 0.0
    %238 = vmatmul.mubr.f32.gmra.mrb[0].mxu0 %v116
    %v239 = vpop.f32.mrb[0].mxu0
    %v240 = vadd.f32 %v60, %v239
    %v241 = vpop.f32.mrb[0].mxu0
    %v242 = vadd.f32 %v64, %v241
    %243 = vdwg.mxu0
    %244 = vmatprep.subr.mxu0 %v125
    %245 = vmatpush1.msra.mxu0 %v123
    %246 = vmatprep.subr.mxu0 0.0
    %247 = vmatpush1.msra.mxu0 0.0
    %248 = vmatprep.subr.mxu0 0.0
    %249 = vmatpush1.msra.mxu0 0.0
    %250 = vmatprep.subr.mxu0 0.0
    %251 = vmatpush1.msra.mxu0 0.0
    %252 = vmatprep.subr.mxu0 0.0
    %253 = vmatpush1.msra.mxu0 0.0
    %254 = vmatprep.subr.mxu0 0.0
    %255 = vmatpush1.msra.mxu0 0.0
    %256 = vmatprep.subr.mxu0 0.0
    %257 = vmatpush1.msra.mxu0 0.0
    %258 = vmatprep.subr.mxu0 0.0
    %259 = vmatpush1.msra.mxu0 0.0
    %260 = vmatprep.subr.mxu0 0.0
    %261 = vmatpush1.msra.mxu0 0.0
    %262 = vmatprep.subr.mxu0 0.0
    %263 = vmatpush1.msra.mxu0 0.0
    %264 = vmatprep.subr.mxu0 0.0
    %265 = vmatpush1.msra.mxu0 0.0
    %266 = vmatprep.subr.mxu0 0.0
    %267 = vmatpush1.msra.mxu0 0.0
    %268 = vmatprep.subr.mxu0 0.0
    %269 = vmatpush1.msra.mxu0 0.0
    %270 = vmatprep.subr.mxu0 0.0
    %271 = vmatpush1.msra.mxu0 0.0
    %272 = vmatprep.subr.mxu0 0.0
    %273 = vmatpush1.msra.mxu0 0.0
    %274 = vmatprep.subr.mxu0 0.0
    %275 = vmatpush1.msra.mxu0 0.0
    %276 = vmatprep.subr.mxu0 0.0
    %277 = vmatpush1.msra.mxu0 0.0
    %278 = vmatprep.subr.mxu0 0.0
    %279 = vmatpush1.msra.mxu0 0.0
    %280 = vmatprep.subr.mxu0 0.0
    %281 = vmatpush1.msra.mxu0 0.0
    %282 = vmatprep.subr.mxu0 0.0
    %283 = vmatpush1.msra.mxu0 0.0
    %284 = vmatprep.subr.mxu0 0.0
    %285 = vmatpush1.msra.mxu0 0.0
    %286 = vmatprep.subr.mxu0 0.0
    %287 = vmatpush1.msra.mxu0 0.0
    %288 = vmatprep.subr.mxu0 0.0
    %289 = vmatpush1.msra.mxu0 0.0
    %290 = vmatprep.subr.mxu0 0.0
    %291 = vmatpush1.msra.mxu0 0.0
    %292 = vmatprep.subr.mxu0 0.0
    %293 = vmatpush1.msra.mxu0 0.0
    %294 = vmatprep.subr.mxu0 0.0
    %295 = vmatpush1.msra.mxu0 0.0
    %296 = vmatprep.subr.mxu0 0.0
    %297 = vmatpush1.msra.mxu0 0.0
    %298 = vmatprep.subr.mxu0 0.0
    %299 = vmatpush1.msra.mxu0 0.0
    %300 = vmatprep.subr.mxu0 0.0
    %301 = vmatpush1.msra.mxu0 0.0
    %302 = vmatprep.subr.mxu0 0.0
    %303 = vmatpush1.msra.mxu0 0.0
    %304 = vmatprep.subr.mxu0 0.0
    %305 = vmatpush1.msra.mxu0 0.0
    %306 = vmatprep.subr.mxu0 0.0
    %307 = vmatpush1.msra.mxu0 0.0
    %308 = vmatprep.mubr.f32.mxu0 0.0
    %309 = vmatmul.mubr.f32.gmra.mrb[0].mxu0 %v95
    %v310 = vpop.f32.mrb[0].mxu0
    %v311 = vadd.f32 %v68, %v310
    %v312 = vpop.f32.mrb[0].mxu0
    %v313 = vadd.f32 %v72, %v312
    %314 = vmatprep.mubr.f32.mxu0 0.0
    %315 = vmatmul.mubr.f32.gmra.mrb[0].mxu0 %v98
    %v316 = vpop.f32.mrb[0].mxu0
    %v317 = vadd.f32 %v68, %v316
    %v318 = vpop.f32.mrb[0].mxu0
    %v319 = vadd.f32 %v72, %v318
    %320 = vmatprep.mubr.f32.mxu0 0.0
    %321 = vmatmul.mubr.f32.gmra.mrb[0].mxu0 %v101
    %v322 = vpop.f32.mrb[0].mxu0
    %v323 = vadd.f32 %v68, %v322
    %v324 = vpop.f32.mrb[0].mxu0
    %v325 = vadd.f32 %v72, %v324
    %326 = vmatprep.mubr.f32.mxu0 0.0
    %327 = vmatmul.mubr.f32.gmra.mrb[0].mxu0 %v104
    %v328 = vpop.f32.mrb[0].mxu0
    %v329 = vadd.f32 %v68, %v328
    %v330 = vpop.f32.mrb[0].mxu0
    %v331 = vadd.f32 %v72, %v330
    %332 = vmatprep.mubr.f32.mxu0 0.0
    %333 = vmatmul.mubr.f32.gmra.mrb[0].mxu0 %v107
    %v334 = vpop.f32.mrb[0].mxu0
    %v335 = vadd.f32 %v68, %v334
    %v336 = vpop.f32.mrb[0].mxu0
    %v337 = vadd.f32 %v72, %v336
    %338 = vmatprep.mubr.f32.mxu0 0.0
    %339 = vmatmul.mubr.f32.gmra.mrb[0].mxu0 %v110
    %v340 = vpop.f32.mrb[0].mxu0
    %v341 = vadd.f32 %v68, %v340
    %v342 = vpop.f32.mrb[0].mxu0
    %v343 = vadd.f32 %v72, %v342
    %344 = vmatprep.mubr.f32.mxu0 0.0
    %345 = vmatmul.mubr.f32.gmra.mrb[0].mxu0 %v113
    %v346 = vpop.f32.mrb[0].mxu0
    %v347 = vadd.f32 %v68, %v346
    %v348 = vpop.f32.mrb[0].mxu0
    %v349 = vadd.f32 %v72, %v348
    %350 = vmatprep.mubr.f32.mxu0 0.0
    %351 = vmatmul.mubr.f32.gmra.mrb[0].mxu0 %v116
    %v352 = vpop.f32.mrb[0].mxu0
    %v353 = vadd.f32 %v68, %v352
    %v354 = vpop.f32.mrb[0].mxu0
    %v355 = vadd.f32 %v72, %v354
    %356 = vdwg.mxu0
    %357 = vmatprep.subr.mxu0 %v129
    %358 = vmatpush1.msra.mxu0 %v127
    %359 = vmatprep.subr.mxu0 0.0
    %360 = vmatpush1.msra.mxu0 0.0
    %361 = vmatprep.subr.mxu0 0.0
    %362 = vmatpush1.msra.mxu0 0.0
    %363 = vmatprep.subr.mxu0 0.0
    %364 = vmatpush1.msra.mxu0 0.0
    %365 = vmatprep.subr.mxu0 0.0
    %366 = vmatpush1.msra.mxu0 0.0
    %367 = vmatprep.subr.mxu0 0.0
    %368 = vmatpush1.msra.mxu0 0.0
    %369 = vmatprep.subr.mxu0 0.0
    %370 = vmatpush1.msra.mxu0 0.0
    %371 = vmatprep.subr.mxu0 0.0
    %372 = vmatpush1.msra.mxu0 0.0
    %373 = vmatprep.subr.mxu0 0.0
    %374 = vmatpush1.msra.mxu0 0.0
    %375 = vmatprep.subr.mxu0 0.0
    %376 = vmatpush1.msra.mxu0 0.0
    %377 = vmatprep.subr.mxu0 0.0
    %378 = vmatpush1.msra.mxu0 0.0
    %379 = vmatprep.subr.mxu0 0.0
    %380 = vmatpush1.msra.mxu0 0.0
    %381 = vmatprep.subr.mxu0 0.0
    %382 = vmatpush1.msra.mxu0 0.0
    %383 = vmatprep.subr.mxu0 0.0
    %384 = vmatpush1.msra.mxu0 0.0
    %385 = vmatprep.subr.mxu0 0.0
    %386 = vmatpush1.msra.mxu0 0.0
    %387 = vmatprep.subr.mxu0 0.0
    %388 = vmatpush1.msra.mxu0 0.0
    %389 = vmatprep.subr.mxu0 0.0
    %390 = vmatpush1.msra.mxu0 0.0
    %391 = vmatprep.subr.mxu0 0.0
    %392 = vmatpush1.msra.mxu0 0.0
    %393 = vmatprep.subr.mxu0 0.0
    %394 = vmatpush1.msra.mxu0 0.0
    %395 = vmatprep.subr.mxu0 0.0
    %396 = vmatpush1.msra.mxu0 0.0
    %397 = vmatprep.subr.mxu0 0.0
    %398 = vmatpush1.msra.mxu0 0.0
    %399 = vmatprep.subr.mxu0 0.0
    %400 = vmatpush1.msra.mxu0 0.0
    %401 = vmatprep.subr.mxu0 0.0
    %402 = vmatpush1.msra.mxu0 0.0
    %403 = vmatprep.subr.mxu0 0.0
    %404 = vmatpush1.msra.mxu0 0.0
    %405 = vmatprep.subr.mxu0 0.0
    %406 = vmatpush1.msra.mxu0 0.0
    %407 = vmatprep.subr.mxu0 0.0
    %408 = vmatpush1.msra.mxu0 0.0
    %409 = vmatprep.subr.mxu0 0.0
    %410 = vmatpush1.msra.mxu0 0.0
    %411 = vmatprep.subr.mxu0 0.0
    %412 = vmatpush1.msra.mxu0 0.0
    %413 = vmatprep.subr.mxu0 0.0
    %414 = vmatpush1.msra.mxu0 0.0
    %415 = vmatprep.subr.mxu0 0.0
    %416 = vmatpush1.msra.mxu0 0.0
    %417 = vmatprep.subr.mxu0 0.0
    %418 = vmatpush1.msra.mxu0 0.0
    %419 = vmatprep.subr.mxu0 0.0
    %420 = vmatpush1.msra.mxu0 0.0
    %421 = vmatprep.mubr.f32.mxu0 0.0
    %422 = vmatmul.mubr.f32.gmra.mrb[0].mxu0 %v95
    %v423 = vpop.f32.mrb[0].mxu0
    %v424 = vadd.f32 %v76, %v423
    %v425 = vpop.f32.mrb[0].mxu0
    %v426 = vadd.f32 %v80, %v425
    %427 = vmatprep.mubr.f32.mxu0 0.0
    %428 = vmatmul.mubr.f32.gmra.mrb[0].mxu0 %v98
    %v429 = vpop.f32.mrb[0].mxu0
    %v430 = vadd.f32 %v76, %v429
    %v431 = vpop.f32.mrb[0].mxu0
    %v432 = vadd.f32 %v80, %v431
    %433 = vmatprep.mubr.f32.mxu0 0.0
    %434 = vmatmul.mubr.f32.gmra.mrb[0].mxu0 %v101
    %v435 = vpop.f32.mrb[0].mxu0
    %v436 = vadd.f32 %v76, %v435
    %v437 = vpop.f32.mrb[0].mxu0
    %v438 = vadd.f32 %v80, %v437
    %439 = vmatprep.mubr.f32.mxu0 0.0
    %440 = vmatmul.mubr.f32.gmra.mrb[0].mxu0 %v104
    %v441 = vpop.f32.mrb[0].mxu0
    %v442 = vadd.f32 %v76, %v441
    %v443 = vpop.f32.mrb[0].mxu0
    %v444 = vadd.f32 %v80, %v443
    %445 = vmatprep.mubr.f32.mxu0 0.0
    %446 = vmatmul.mubr.f32.gmra.mrb[0].mxu0 %v107
    %v447 = vpop.f32.mrb[0].mxu0
    %v448 = vadd.f32 %v76, %v447
    %v449 = vpop.f32.mrb[0].mxu0
    %v450 = vadd.f32 %v80, %v449
    %451 = vmatprep.mubr.f32.mxu0 0.0
    %452 = vmatmul.mubr.f32.gmra.mrb[0].mxu0 %v110
    %v453 = vpop.f32.mrb[0].mxu0
    %v454 = vadd.f32 %v76, %v453
    %v455 = vpop.f32.mrb[0].mxu0
    %v456 = vadd.f32 %v80, %v455
    %457 = vmatprep.mubr.f32.mxu0 0.0
    %458 = vmatmul.mubr.f32.gmra.mrb[0].mxu0 %v113
    %v459 = vpop.f32.mrb[0].mxu0
    %v460 = vadd.f32 %v76, %v459
    %v461 = vpop.f32.mrb[0].mxu0
    %v462 = vadd.f32 %v80, %v461
    %463 = vmatprep.mubr.f32.mxu0 0.0
    %464 = vmatmul.mubr.f32.gmra.mrb[0].mxu0 %v116
    %v465 = vpop.f32.mrb[0].mxu0
    %v466 = vadd.f32 %v76, %v465
    %v467 = vpop.f32.mrb[0].mxu0
    %v468 = vadd.f32 %v80, %v467
    %469 = vdwg.mxu0
    %470 = vst [vmem:[#allocation2] sm:$0xff] %v198
    %471 = vst [vmem:[#allocation2 + $0x8] sm:$0xff] %v200
    %472 = vst [vmem:[#allocation2 + $0x10] sm:$0xff] %v311
    %473 = vst [vmem:[#allocation2 + $0x18] sm:$0xff] %v313
    %474 = vst [vmem:[#allocation2 + $0x20] sm:$0xff] %v424
    %475 = vst [vmem:[#allocation2 + $0x28] sm:$0xff] %v426
    %476 = vst [vmem:[#allocation2 + $0x30] sm:$0xff] %v204
    %477 = vst [vmem:[#allocation2 + $0x38] sm:$0xff] %v206
    %478 = vst [vmem:[#allocation2 + $0x40] sm:$0xff] %v317
    %479 = vst [vmem:[#allocation2 + $0x48] sm:$0xff] %v319
    %480 = vst [vmem:[#allocation2 + $0x50] sm:$0xff] %v430
    %481 = vst [vmem:[#allocation2 + $0x58] sm:$0xff] %v432
    %482 = vst [vmem:[#allocation2 + $0x60] sm:$0xff] %v210
    %483 = vst [vmem:[#allocation2 + $0x68] sm:$0xff] %v212
    %484 = vst [vmem:[#allocation2 + $0x70] sm:$0xff] %v323
    %485 = vst [vmem:[#allocation2 + $0x78] sm:$0xff] %v325
    %486 = vst [vmem:[#allocation2 + $0x80] sm:$0xff] %v436
    %487 = vst [vmem:[#allocation2 + $0x88] sm:$0xff] %v438
    %488 = vst [vmem:[#allocation2 + $0x90] sm:$0xff] %v216
    %489 = vst [vmem:[#allocation2 + $0x98] sm:$0xff] %v218
    %490 = vst [vmem:[#allocation2 + $0xa0] sm:$0xff] %v329
    %491 = vst [vmem:[#allocation2 + $0xa8] sm:$0xff] %v331
    %492 = vst [vmem:[#allocation2 + $0xb0] sm:$0xff] %v442
    %493 = vst [vmem:[#allocation2 + $0xb8] sm:$0xff] %v444
    %494 = vst [vmem:[#allocation2 + $0xc0] sm:$0xff] %v222
    %495 = vst [vmem:[#allocation2 + $0xc8] sm:$0xff] %v224
    %496 = vst [vmem:[#allocation2 + $0xd0] sm:$0xff] %v335
    %497 = vst [vmem:[#allocation2 + $0xd8] sm:$0xff] %v337
    %498 = vst [vmem:[#allocation2 + $0xe0] sm:$0xff] %v448
    %499 = vst [vmem:[#allocation2 + $0xe8] sm:$0xff] %v450
    %500 = vst [vmem:[#allocation2 + $0xf0] sm:$0xff] %v228
    %501 = vst [vmem:[#allocation2 + $0xf8] sm:$0xff] %v230
    %502 = vst [vmem:[#allocation2 + $0x100] sm:$0xff] %v341
    %503 = vst [vmem:[#allocation2 + $0x108] sm:$0xff] %v343
    %504 = vst [vmem:[#allocation2 + $0x110] sm:$0xff] %v454
    %505 = vst [vmem:[#allocation2 + $0x118] sm:$0xff] %v456
    %506 = vst [vmem:[#allocation2 + $0x120] sm:$0xff] %v234
    %507 = vst [vmem:[#allocation2 + $0x128] sm:$0xff] %v236
    %508 = vst [vmem:[#allocation2 + $0x130] sm:$0xff] %v347
    %509 = vst [vmem:[#allocation2 + $0x138] sm:$0xff] %v349
    %510 = vst [vmem:[#allocation2 + $0x140] sm:$0xff] %v460
    %511 = vst [vmem:[#allocation2 + $0x148] sm:$0xff] %v462
    %512 = vst [vmem:[#allocation2 + $0x150] sm:$0xff] %v240
    %513 = vst [vmem:[#allocation2 + $0x158] sm:$0xff] %v242
    %514 = vst [vmem:[#allocation2 + $0x160] sm:$0xff] %v353
    %515 = vst [vmem:[#allocation2 + $0x168] sm:$0xff] %v355
    %516 = vst [vmem:[#allocation2 + $0x170] sm:$0xff] %v466
    %517 = vst [vmem:[#allocation2 + $0x178] sm:$0xff] %v468
    %v518 = vld [vmem:[%s4] sm:$0x7]
    %s519 = scalar_lea.vmem %s4, 3
    %v520 = vld [vmem:[%s519] sm:$0x7]
    %s521 = sld [smem:[#allocation3]]
    %v522 = vld [vmem:[#allocation2] sm:$0xff]
    %v523 = vld [vmem:[#allocation2 + $0x8] sm:$0xff]
    %v524 = vld [vmem:[#allocation2 + $0x10] sm:$0xff]
    %v525 = vld [vmem:[#allocation2 + $0x168] sm:$0xff]
    %v526 = vld [vmem:[#allocation2 + $0x170] sm:$0xff]
    %v527 = vld [vmem:[#allocation2 + $0x178] sm:$0xff]
    %v528 = vld [vmem:[#allocation4] sm:$0xff]
    %v529 = vld [vmem:[#allocation4 + $0x8] sm:$0xff]
    %v530 = vld [vmem:[#allocation4 + $0x10] sm:$0xff]
    %v531 = vld [vmem:[#allocation4 + $0x18] sm:$0xff]
    %v532 = vld [vmem:[#allocation4 + $0x20] sm:$0xff]
    %v533 = vld [vmem:[#allocation4 + $0x28] sm:$0xff]
    %v534 = vld [vmem:[#allocation4 + $0x30] sm:$0xff]
    %v535 = vld [vmem:[#allocation4 + $0x38] sm:$0xff]
    %v536 = vld [vmem:[#allocation4 + $0x40] sm:$0xff]
    %v537 = vld [vmem:[#allocation4 + $0x48] sm:$0xff]
    %v538 = vld [vmem:[#allocation4 + $0x50] sm:$0xff]
    %v539 = vld [vmem:[#allocation4 + $0x58] sm:$0xff]
    %v540 = vld [vmem:[#allocation4 + $0x60] sm:$0xff]
    %v541 = vld [vmem:[#allocation4 + $0x68] sm:$0xff]
    %v542 = vld [vmem:[#allocation4 + $0x70] sm:$0xff]
    %v543 = vld [vmem:[#allocation4 + $0x78] sm:$0xff]
    %v544 = vld [vmem:[#allocation4 + $0x80] sm:$0xff]
    %v545 = vld [vmem:[#allocation4 + $0x88] sm:$0xff]
    %v546 = vld [vmem:[#allocation4 + $0x90] sm:$0xff]
    %v547 = vld [vmem:[#allocation4 + $0x98] sm:$0xff]
    %v548 = vld [vmem:[#allocation4 + $0xa0] sm:$0xff]
    %v549 = vld [vmem:[#allocation4 + $0xa8] sm:$0xff]
    %v550 = vld [vmem:[#allocation4 + $0xb0] sm:$0xff]
    %v551 = vld [vmem:[#allocation4 + $0xb8] sm:$0xff]
    %v552 = vld [vmem:[#allocation4 + $0xc0] sm:$0xff]
    %v553 = vld [vmem:[#allocation4 + $0xc8] sm:$0xff]
    %v554 = vld [vmem:[#allocation4 + $0xd0] sm:$0xff]
    %v555 = vld [vmem:[#allocation4 + $0xd8] sm:$0xff]
    %v556 = vld [vmem:[#allocation4 + $0xe0] sm:$0xff]
    %v557 = vld [vmem:[#allocation4 + $0xe8] sm:$0xff]
    %v558 = vld [vmem:[#allocation4 + $0xf0] sm:$0xff]
    %v559 = vld [vmem:[#allocation4 + $0xf8] sm:$0xff]
    %v560 = vld [vmem:[#allocation4 + $0x100] sm:$0xff]
    %v561 = vld [vmem:[#allocation4 + $0x108] sm:$0xff]
    %v562 = vld [vmem:[#allocation4 + $0x110] sm:$0xff]
    %v563 = vld [vmem:[#allocation4 + $0x118] sm:$0xff]
    %v564 = vld [vmem:[#allocation4 + $0x120] sm:$0xff]
    %v565 = vld [vmem:[#allocation4 + $0x128] sm:$0xff]
    %v566 = vld [vmem:[#allocation4 + $0x130] sm:$0xff]
    %v567 = vld [vmem:[#allocation4 + $0x138] sm:$0xff]
    %v568 = vld [vmem:[#allocation4 + $0x140] sm:$0xff]
    %v569 = vld [vmem:[#allocation4 + $0x148] sm:$0xff]
    %v570 = vld [vmem:[#allocation4 + $0x150] sm:$0xff]
    %v571 = vld [vmem:[#allocation4 + $0x158] sm:$0xff]
    %v572 = vld [vmem:[#allocation4 + $0x160] sm:$0xff]
    %v573 = vld [vmem:[#allocation4 + $0x168] sm:$0xff]
    %v574 = vld [vmem:[#allocation4 + $0x170] sm:$0xff]
    %v575 = vld [vmem:[#allocation4 + $0x178] sm:$0xff]
    %v577 = vlaneseq
    %v578 = vshrl.u32 %v577, 7
    %v579 = vsub.s32 0, %v578
    %v580 = vrot.slane %v518, %v579
    %v581 = vlaneseq
    %v582 = vshrl.u32 %v581, 7
    %v583 = vsub.s32 1, %v582
    %v584 = vrot.slane %v518, %v583
    %v585 = vlaneseq
    %v586 = vshrl.u32 %v585, 7
    %v587 = vsub.s32 2, %v586
    %v588 = vrot.slane %v518, %v587
    %592 = vmatprep.subr.mxu0 %v529
    %593 = vmatpush1.msra.mxu0 %v528
    %594 = vmatprep.subr.mxu0 %v532
    %595 = vmatpush1.msra.mxu0 %v531
    %596 = vmatprep.subr.mxu0 %v535
    %597 = vmatpush1.msra.mxu0 %v534
    %598 = vmatprep.subr.mxu0 %v538
    %599 = vmatpush1.msra.mxu0 %v537
    %600 = vmatprep.subr.mxu0 %v541
    %601 = vmatpush1.msra.mxu0 %v540
    %602 = vmatprep.subr.mxu0 %v544
    %603 = vmatpush1.msra.mxu0 %v543
    %604 = vmatprep.subr.mxu0 %v547
    %605 = vmatpush1.msra.mxu0 %v546
    %606 = vmatprep.subr.mxu0 %v550
    %607 = vmatpush1.msra.mxu0 %v549
    %608 = vmatprep.subr.mxu0 %v553
    %609 = vmatpush1.msra.mxu0 %v552
    %610 = vmatprep.subr.mxu0 %v556
    %611 = vmatpush1.msra.mxu0 %v555
    %612 = vmatprep.subr.mxu0 %v559
    %613 = vmatpush1.msra.mxu0 %v558
    %614 = vmatprep.subr.mxu0 %v562
    %615 = vmatpush1.msra.mxu0 %v561
    %616 = vmatprep.subr.mxu0 %v565
    %617 = vmatpush1.msra.mxu0 %v564
    %618 = vmatprep.subr.mxu0 %v568
    %619 = vmatpush1.msra.mxu0 %v567
    %620 = vmatprep.subr.mxu0 %v571
    %621 = vmatpush1.msra.mxu0 %v570
    %622 = vmatprep.subr.mxu0 %v574
    %623 = vmatpush1.msra.mxu0 %v573
    %624 = vmatprep.subr.mxu0 0.0
    %625 = vmatpush1.msra.mxu0 0.0
    %626 = vmatprep.subr.mxu0 0.0
    %627 = vmatpush1.msra.mxu0 0.0
    %628 = vmatprep.subr.mxu0 0.0
    %629 = vmatpush1.msra.mxu0 0.0
    %630 = vmatprep.subr.mxu0 0.0
    %631 = vmatpush1.msra.mxu0 0.0
    %632 = vmatprep.subr.mxu0 0.0
    %633 = vmatpush1.msra.mxu0 0.0
    %634 = vmatprep.subr.mxu0 0.0
    %635 = vmatpush1.msra.mxu0 0.0
    %636 = vmatprep.subr.mxu0 0.0
    %637 = vmatpush1.msra.mxu0 0.0
    %638 = vmatprep.subr.mxu0 0.0
    %639 = vmatpush1.msra.mxu0 0.0
    %640 = vmatprep.subr.mxu0 0.0
    %641 = vmatpush1.msra.mxu0 0.0
    %642 = vmatprep.subr.mxu0 0.0
    %643 = vmatpush1.msra.mxu0 0.0
    %644 = vmatprep.subr.mxu0 0.0
    %645 = vmatpush1.msra.mxu0 0.0
    %646 = vmatprep.subr.mxu0 0.0
    %647 = vmatpush1.msra.mxu0 0.0
    %648 = vmatprep.subr.mxu0 0.0
    %649 = vmatpush1.msra.mxu0 0.0
    %650 = vmatprep.subr.mxu0 0.0
    %651 = vmatpush1.msra.mxu0 0.0
    %652 = vmatprep.subr.mxu0 0.0
    %653 = vmatpush1.msra.mxu0 0.0
    %654 = vmatprep.subr.mxu0 0.0
    %655 = vmatpush1.msra.mxu0 0.0
    %656 = vmatprep.mubr.f32.mxu0 0.0
    %657 = vmatmul.mubr.f32.gmra.mrb[0].mxu0 0.0
    %v658 = vpop.f32.mrb[0].mxu0
    %v659 = vadd.f32 %v580, %v658
    %v660 = vpop.f32.mrb[0].mxu0
    %v661 = vadd.f32 %v584, %v660
    %662 = vdwg.mxu0
    %663 = vmatprep.subr.mxu0 0.0
    %664 = vmatpush1.msra.mxu0 %v530
    %665 = vmatprep.subr.mxu0 0.0
    %666 = vmatpush1.msra.mxu0 %v533
    %667 = vmatprep.subr.mxu0 0.0
    %668 = vmatpush1.msra.mxu0 %v536
    %669 = vmatprep.subr.mxu0 0.0
    %670 = vmatpush1.msra.mxu0 %v539
    %671 = vmatprep.subr.mxu0 0.0
    %672 = vmatpush1.msra.mxu0 %v542
    %673 = vmatprep.subr.mxu0 0.0
    %674 = vmatpush1.msra.mxu0 %v545
    %675 = vmatprep.subr.mxu0 0.0
    %676 = vmatpush1.msra.mxu0 %v548
    %677 = vmatprep.subr.mxu0 0.0
    %678 = vmatpush1.msra.mxu0 %v551
    %679 = vmatprep.subr.mxu0 0.0
    %680 = vmatpush1.msra.mxu0 %v554
    %681 = vmatprep.subr.mxu0 0.0
    %682 = vmatpush1.msra.mxu0 %v557
    %683 = vmatprep.subr.mxu0 0.0
    %684 = vmatpush1.msra.mxu0 %v560
    %685 = vmatprep.subr.mxu0 0.0
    %686 = vmatpush1.msra.mxu0 %v563
    %687 = vmatprep.subr.mxu0 0.0
    %688 = vmatpush1.msra.mxu0 %v566
    %689 = vmatprep.subr.mxu0 0.0
    %690 = vmatpush1.msra.mxu0 %v569
    %691 = vmatprep.subr.mxu0 0.0
    %692 = vmatpush1.msra.mxu0 %v572
    %693 = vmatprep.subr.mxu0 0.0
    %694 = vmatpush1.msra.mxu0 %v575
    %695 = vmatprep.subr.mxu0 0.0
    %696 = vmatpush1.msra.mxu0 0.0
    %697 = vmatprep.subr.mxu0 0.0
    %698 = vmatpush1.msra.mxu0 0.0
    %699 = vmatprep.subr.mxu0 0.0
    %700 = vmatpush1.msra.mxu0 0.0
    %701 = vmatprep.subr.mxu0 0.0
    %702 = vmatpush1.msra.mxu0 0.0
    %703 = vmatprep.subr.mxu0 0.0
    %704 = vmatpush1.msra.mxu0 0.0
    %705 = vmatprep.subr.mxu0 0.0
    %706 = vmatpush1.msra.mxu0 0.0
    %707 = vmatprep.subr.mxu0 0.0
    %708 = vmatpush1.msra.mxu0 0.0
    %709 = vmatprep.subr.mxu0 0.0
    %710 = vmatpush1.msra.mxu0 0.0
    %711 = vmatprep.subr.mxu0 0.0
    %712 = vmatpush1.msra.mxu0 0.0
    %713 = vmatprep.subr.mxu0 0.0
    %714 = vmatpush1.msra.mxu0 0.0
    %715 = vmatprep.subr.mxu0 0.0
    %716 = vmatpush1.msra.mxu0 0.0
    %717 = vmatprep.subr.mxu0 0.0
    %718 = vmatpush1.msra.mxu0 0.0
    %719 = vmatprep.subr.mxu0 0.0
    %720 = vmatpush1.msra.mxu0 0.0
    %721 = vmatprep.subr.mxu0 0.0
    %722 = vmatpush1.msra.mxu0 0.0
    %723 = vmatprep.subr.mxu0 0.0
    %724 = vmatpush1.msra.mxu0 0.0
    %725 = vmatprep.subr.mxu0 0.0
    %726 = vmatpush1.msra.mxu0 0.0
    %727 = vmatprep.mubr.f32.mxu0 0.0
    %728 = vmatmul.mubr.f32.gmra.mrb[0].mxu0 0.0
    %v729 = vpop.f32.mrb[0].mxu0
    %v730 = vadd.f32 %v588, %v729
    %v731 = vpop.f32.mrb[0].mxu0
    %732 = vdwg.mxu0
    %v733 = vadd.f32 %v522, %v659
    %v734 = vxor.u32 %v733, 2147483648
    %v735 = vmul.f32 %v734, 1.442695
    %v736 = vpow.pop %v735
    %v737 = vadd.f32 %v736, 1.0
    %v738 = vrcp.pop %v737
    %v739 = vmul.f32 1.0, %v738
    %v740 = vadd.f32 %v523, %v661
    %v741 = vxor.u32 %v740, 2147483648
    %v742 = vmul.f32 %v741, 1.442695
    %v743 = vpow.pop %v742
    %v744 = vadd.f32 %v743, 1.0
    %v745 = vrcp.pop %v744
    %v746 = vmul.f32 1.0, %v745
    %v747 = vmul.f32 %v739, %v730
    %v748 = vadd.f32 %v524, %v747
    %v749 = vtanh.pop %v748
    %v750 = vsub.f32 0.0, %v749
    %v751 = vmul.f32 %v746, %v750
    %v752 = vadd.f32 %v749, %v751
    %s753 = scalar_lea.vmem [#allocation4], 384
    %v754 = vld [vmem:[%s753] sm:$0xff]
    %v755 = vld [vmem:[%s753 + $0x8] sm:$0xff]
    %v756 = vld [vmem:[%s753 + $0x10] sm:$0xff]
    %v757 = vld [vmem:[%s753 + $0x18] sm:$0xff]
    %v758 = vld [vmem:[%s753 + $0x20] sm:$0xff]
    %v759 = vld [vmem:[%s753 + $0x28] sm:$0xff]
    %v760 = vld [vmem:[%s753 + $0x30] sm:$0xff]
    %v761 = vld [vmem:[%s753 + $0x38] sm:$0xff]
    %v762 = vld [vmem:[%s753 + $0x40] sm:$0xff]
    %v763 = vld [vmem:[%s753 + $0x48] sm:$0xff]
    %v764 = vld [vmem:[%s753 + $0x50] sm:$0xff]
    %v765 = vld [vmem:[%s753 + $0x58] sm:$0xff]
    %v766 = vld [vmem:[%s753 + $0x60] sm:$0xff]
    %v767 = vld [vmem:[%s753 + $0x68] sm:$0xff]
    %v768 = vld [vmem:[%s753 + $0x70] sm:$0xff]
    %v769 = vld [vmem:[%s753 + $0x78] sm:$0xff]
    %v770 = vld [vmem:[%s753 + $0x80] sm:$0xff]
    %v771 = vld [vmem:[%s753 + $0x88] sm:$0xff]
    %v772 = vld [vmem:[%s753 + $0x90] sm:$0xff]
    %v773 = vld [vmem:[%s753 + $0x98] sm:$0xff]
    %v774 = vld [vmem:[%s753 + $0xa0] sm:$0xff]
    %v775 = vld [vmem:[%s753 + $0xa8] sm:$0xff]
    %v776 = vld [vmem:[%s753 + $0xb0] sm:$0xff]
    %v777 = vld [vmem:[%s753 + $0xb8] sm:$0xff]
    %v778 = vld [vmem:[%s753 + $0xc0] sm:$0xff]
    %v779 = vld [vmem:[%s753 + $0xc8] sm:$0xff]
    %v780 = vld [vmem:[%s753 + $0xd0] sm:$0xff]
    %v781 = vld [vmem:[%s753 + $0xd8] sm:$0xff]
    %v782 = vld [vmem:[%s753 + $0xe0] sm:$0xff]
    %v783 = vld [vmem:[%s753 + $0xe8] sm:$0xff]
    %v784 = vld [vmem:[%s753 + $0xf0] sm:$0xff]
    %v785 = vld [vmem:[%s753 + $0xf8] sm:$0xff]
    %v786 = vld [vmem:[%s753 + $0x100] sm:$0xff]
    %v787 = vld [vmem:[%s753 + $0x108] sm:$0xff]
    %v788 = vld [vmem:[%s753 + $0x110] sm:$0xff]
    %v789 = vld [vmem:[%s753 + $0x118] sm:$0xff]
    %v790 = vld [vmem:[%s753 + $0x120] sm:$0xff]
    %v791 = vld [vmem:[%s753 + $0x128] sm:$0xff]
    %v792 = vld [vmem:[%s753 + $0x130] sm:$0xff]
    %v793 = vld [vmem:[%s753 + $0x138] sm:$0xff]
    %v794 = vld [vmem:[%s753 + $0x140] sm:$0xff]
    %v795 = vld [vmem:[%s753 + $0x148] sm:$0xff]
    %v796 = vld [vmem:[%s753 + $0x150] sm:$0xff]
    %v797 = vld [vmem:[%s753 + $0x158] sm:$0xff]
    %v798 = vld [vmem:[%s753 + $0x160] sm:$0xff]
    %v799 = vld [vmem:[%s753 + $0x168] sm:$0xff]
    %v800 = vld [vmem:[%s753 + $0x170] sm:$0xff]
    %v801 = vld [vmem:[%s753 + $0x178] sm:$0xff]
    %v803 = vlaneseq
    %v804 = vshrl.u32 %v803, 7
    %v805 = vsub.s32 0, %v804
    %v806 = vrot.slane %v520, %v805
    %v807 = vlaneseq
    %v808 = vshrl.u32 %v807, 7
    %v809 = vsub.s32 1, %v808
    %v810 = vrot.slane %v520, %v809
    %v811 = vlaneseq
    %v812 = vshrl.u32 %v811, 7
    %v813 = vsub.s32 2, %v812
    %v814 = vrot.slane %v520, %v813
    %818 = vmatprep.subr.mxu0 %v755
    %819 = vmatpush1.msra.mxu0 %v754
    %820 = vmatprep.subr.mxu0 %v758
    %821 = vmatpush1.msra.mxu0 %v757
    %822 = vmatprep.subr.mxu0 %v761
    %823 = vmatpush1.msra.mxu0 %v760
    %824 = vmatprep.subr.mxu0 %v764
    %825 = vmatpush1.msra.mxu0 %v763
    %826 = vmatprep.subr.mxu0 %v767
    %827 = vmatpush1.msra.mxu0 %v766
    %828 = vmatprep.subr.mxu0 %v770
    %829 = vmatpush1.msra.mxu0 %v769
    %830 = vmatprep.subr.mxu0 %v773
    %831 = vmatpush1.msra.mxu0 %v772
    %832 = vmatprep.subr.mxu0 %v776
    %833 = vmatpush1.msra.mxu0 %v775
    %834 = vmatprep.subr.mxu0 %v779
    %835 = vmatpush1.msra.mxu0 %v778
    %836 = vmatprep.subr.mxu0 %v782
    %837 = vmatpush1.msra.mxu0 %v781
    %838 = vmatprep.subr.mxu0 %v785
    %839 = vmatpush1.msra.mxu0 %v784
    %840 = vmatprep.subr.mxu0 %v788
    %841 = vmatpush1.msra.mxu0 %v787
    %842 = vmatprep.subr.mxu0 %v791
    %843 = vmatpush1.msra.mxu0 %v790
    %844 = vmatprep.subr.mxu0 %v794
    %845 = vmatpush1.msra.mxu0 %v793
    %846 = vmatprep.subr.mxu0 %v797
    %847 = vmatpush1.msra.mxu0 %v796
    %848 = vmatprep.subr.mxu0 %v800
    %849 = vmatpush1.msra.mxu0 %v799
    %850 = vmatprep.subr.mxu0 0.0
    %851 = vmatpush1.msra.mxu0 0.0
    %852 = vmatprep.subr.mxu0 0.0
    %853 = vmatpush1.msra.mxu0 0.0
    %854 = vmatprep.subr.mxu0 0.0
    %855 = vmatpush1.msra.mxu0 0.0
    %856 = vmatprep.subr.mxu0 0.0
    %857 = vmatpush1.msra.mxu0 0.0
    %858 = vmatprep.subr.mxu0 0.0
    %859 = vmatpush1.msra.mxu0 0.0
    %860 = vmatprep.subr.mxu0 0.0
    %861 = vmatpush1.msra.mxu0 0.0
    %862 = vmatprep.subr.mxu0 0.0
    %863 = vmatpush1.msra.mxu0 0.0
    %864 = vmatprep.subr.mxu0 0.0
    %865 = vmatpush1.msra.mxu0 0.0
    %866 = vmatprep.subr.mxu0 0.0
    %867 = vmatpush1.msra.mxu0 0.0
    %868 = vmatprep.subr.mxu0 0.0
    %869 = vmatpush1.msra.mxu0 0.0
    %870 = vmatprep.subr.mxu0 0.0
    %871 = vmatpush1.msra.mxu0 0.0
    %872 = vmatprep.subr.mxu0 0.0
    %873 = vmatpush1.msra.mxu0 0.0
    %874 = vmatprep.subr.mxu0 0.0
    %875 = vmatpush1.msra.mxu0 0.0
    %876 = vmatprep.subr.mxu0 0.0
    %877 = vmatpush1.msra.mxu0 0.0
    %878 = vmatprep.subr.mxu0 0.0
    %879 = vmatpush1.msra.mxu0 0.0
    %880 = vmatprep.subr.mxu0 0.0
    %881 = vmatpush1.msra.mxu0 0.0
    %882 = vmatprep.mubr.f32.mxu0 0.0
    %883 = vmatmul.mubr.f32.gmra.mrb[0].mxu0 0.0
    %v884 = vpop.f32.mrb[0].mxu0
    %v885 = vadd.f32 %v806, %v884
    %v886 = vpop.f32.mrb[0].mxu0
    %v887 = vadd.f32 %v810, %v886
    %888 = vdwg.mxu0
    %889 = vmatprep.subr.mxu0 0.0
    %890 = vmatpush1.msra.mxu0 %v756
    %891 = vmatprep.subr.mxu0 0.0
    %892 = vmatpush1.msra.mxu0 %v759
    %893 = vmatprep.subr.mxu0 0.0
    %894 = vmatpush1.msra.mxu0 %v762
    %895 = vmatprep.subr.mxu0 0.0
    %896 = vmatpush1.msra.mxu0 %v765
    %897 = vmatprep.subr.mxu0 0.0
    %898 = vmatpush1.msra.mxu0 %v768
    %899 = vmatprep.subr.mxu0 0.0
    %900 = vmatpush1.msra.mxu0 %v771
    %901 = vmatprep.subr.mxu0 0.0
    %902 = vmatpush1.msra.mxu0 %v774
    %903 = vmatprep.subr.mxu0 0.0
    %904 = vmatpush1.msra.mxu0 %v777
    %905 = vmatprep.subr.mxu0 0.0
    %906 = vmatpush1.msra.mxu0 %v780
    %907 = vmatprep.subr.mxu0 0.0
    %908 = vmatpush1.msra.mxu0 %v783
    %909 = vmatprep.subr.mxu0 0.0
    %910 = vmatpush1.msra.mxu0 %v786
    %911 = vmatprep.subr.mxu0 0.0
    %912 = vmatpush1.msra.mxu0 %v789
    %913 = vmatprep.subr.mxu0 0.0
    %914 = vmatpush1.msra.mxu0 %v792
    %915 = vmatprep.subr.mxu0 0.0
    %916 = vmatpush1.msra.mxu0 %v795
    %917 = vmatprep.subr.mxu0 0.0
    %918 = vmatpush1.msra.mxu0 %v798
    %919 = vmatprep.subr.mxu0 0.0
    %920 = vmatpush1.msra.mxu0 %v801
    %921 = vmatprep.subr.mxu0 0.0
    %922 = vmatpush1.msra.mxu0 0.0
    %923 = vmatprep.subr.mxu0 0.0
    %924 = vmatpush1.msra.mxu0 0.0
    %925 = vmatprep.subr.mxu0 0.0
    %926 = vmatpush1.msra.mxu0 0.0
    %927 = vmatprep.subr.mxu0 0.0
    %928 = vmatpush1.msra.mxu0 0.0
    %929 = vmatprep.subr.mxu0 0.0
    %930 = vmatpush1.msra.mxu0 0.0
    %931 = vmatprep.subr.mxu0 0.0
    %932 = vmatpush1.msra.mxu0 0.0
    %933 = vmatprep.subr.mxu0 0.0
    %934 = vmatpush1.msra.mxu0 0.0
    %935 = vmatprep.subr.mxu0 0.0
    %936 = vmatpush1.msra.mxu0 0.0
    %937 = vmatprep.subr.mxu0 0.0
    %938 = vmatpush1.msra.mxu0 0.0
    %939 = vmatprep.subr.mxu0 0.0
    %940 = vmatpush1.msra.mxu0 0.0
    %941 = vmatprep.subr.mxu0 0.0
    %942 = vmatpush1.msra.mxu0 0.0
    %943 = vmatprep.subr.mxu0 0.0
    %944 = vmatpush1.msra.mxu0 0.0
    %945 = vmatprep.subr.mxu0 0.0
    %946 = vmatpush1.msra.mxu0 0.0
    %947 = vmatprep.subr.mxu0 0.0
    %948 = vmatpush1.msra.mxu0 0.0
    %949 = vmatprep.subr.mxu0 0.0
    %950 = vmatpush1.msra.mxu0 0.0
    %951 = vmatprep.subr.mxu0 0.0
    %952 = vmatpush1.msra.mxu0 0.0
    %953 = vmatprep.mubr.f32.mxu0 0.0
    %954 = vmatmul.mubr.f32.gmra.mrb[0].mxu0 0.0
    %v955 = vpop.f32.mrb[0].mxu0
    %v956 = vadd.f32 %v814, %v955
    %v957 = vpop.f32.mrb[0].mxu0
    %958 = vdwg.mxu0
    %v959 = vadd.f32 %v525, %v885
    %v960 = vxor.u32 %v959, 2147483648
    %v961 = vmul.f32 %v960, 1.442695
    %v962 = vpow.pop %v961
    %v963 = vadd.f32 %v962, 1.0
    %v964 = vrcp.pop %v963
    %v965 = vmul.f32 1.0, %v964
    %v966 = vadd.f32 %v526, %v887
    %v967 = vxor.u32 %v966, 2147483648
    %v968 = vmul.f32 %v967, 1.442695
    %v969 = vpow.pop %v968
    %v970 = vadd.f32 %v969, 1.0
    %v971 = vrcp.pop %v970
    %v972 = vmul.f32 1.0, %v971
    %v973 = vmul.f32 %v965, %v956
    %v974 = vadd.f32 %v527, %v973
    %v975 = vtanh.pop %v974
    %v976 = vsub.f32 0.0, %v975
    %v977 = vmul.f32 %v972, %v976
    %v978 = vadd.f32 %v975, %v977
    %vm979 = vcmp.ge.f32.partialorder %v752, 0.0
    %v980 = vmul.f32 %v752, 0.2
    %v981 = vsel %vm979, %v752, %v980
    %v982 = vld [vmem:[%s5] sm:$0x1]
    %v984 = vlaneseq
    %v985 = vshrl.u32 %v984, 7
    %v986 = vsub.s32 0, %v985
    %v987 = vrot.slane %v982, %v986
    %v989 = vmul.f32 %v981, %v987
    %v990 = vadd.f32 %v989, 0.0
    %vm991 = vcmp.ge.f32.partialorder %v978, 0.0
    %v992 = vmul.f32 %v978, 0.2
    %v993 = vsel %vm991, %v978, %v992
    %s994 = scalar_lea.vmem %s6, 7
    %v995 = vld [vmem:[%s994] sm:$0x1]
    %v997 = vlaneseq
    %v998 = vshrl.u32 %v997, 7
    %v999 = vsub.s32 0, %v998
    %v1000 = vrot.slane %v995, %v999
    %v1002 = vmul.f32 %v993, %v1000
    %v1003 = vadd.f32 %v990, %v1002
    %v1004 = vld [vmem:[#allocation2 + $0x30] sm:$0xff]
    %v1005 = vld [vmem:[#allocation2 + $0x38] sm:$0xff]
    %v1006 = vld [vmem:[#allocation2 + $0x40] sm:$0xff]
    %v1007 = vld [vmem:[#allocation2 + $0x138] sm:$0xff]
    %v1008 = vld [vmem:[#allocation2 + $0x140] sm:$0xff]
    %v1009 = vld [vmem:[#allocation2 + $0x148] sm:$0xff]
    %1010 = vmatprep.subr.mxu0 %v529
    %1011 = vmatpush1.msra.mxu0 %v528
    %1012 = vmatprep.subr.mxu0 %v532
    %1013 = vmatpush1.msra.mxu0 %v531
    %1014 = vmatprep.subr.mxu0 %v535
    %1015 = vmatpush1.msra.mxu0 %v534
    %1016 = vmatprep.subr.mxu0 %v538
    %1017 = vmatpush1.msra.mxu0 %v537
    %1018 = vmatprep.subr.mxu0 %v541
    %1019 = vmatpush1.msra.mxu0 %v540
    %1020 = vmatprep.subr.mxu0 %v544
    %1021 = vmatpush1.msra.mxu0 %v543
    %1022 = vmatprep.subr.mxu0 %v547
    %1023 = vmatpush1.msra.mxu0 %v546
    %1024 = vmatprep.subr.mxu0 %v550
    %1025 = vmatpush1.msra.mxu0 %v549
    %1026 = vmatprep.subr.mxu0 %v553
    %1027 = vmatpush1.msra.mxu0 %v552
    %1028 = vmatprep.subr.mxu0 %v556
    %1029 = vmatpush1.msra.mxu0 %v555
    %1030 = vmatprep.subr.mxu0 %v559
    %1031 = vmatpush1.msra.mxu0 %v558
    %1032 = vmatprep.subr.mxu0 %v562
    %1033 = vmatpush1.msra.mxu0 %v561
    %1034 = vmatprep.subr.mxu0 %v565
    %1035 = vmatpush1.msra.mxu0 %v564
    %1036 = vmatprep.subr.mxu0 %v568
    %1037 = vmatpush1.msra.mxu0 %v567
    %1038 = vmatprep.subr.mxu0 %v571
    %1039 = vmatpush1.msra.mxu0 %v570
    %1040 = vmatprep.subr.mxu0 %v574
    %1041 = vmatpush1.msra.mxu0 %v573
    %1042 = vmatprep.subr.mxu0 0.0
    %1043 = vmatpush1.msra.mxu0 0.0
    %1044 = vmatprep.subr.mxu0 0.0
    %1045 = vmatpush1.msra.mxu0 0.0
    %1046 = vmatprep.subr.mxu0 0.0
    %1047 = vmatpush1.msra.mxu0 0.0
    %1048 = vmatprep.subr.mxu0 0.0
    %1049 = vmatpush1.msra.mxu0 0.0
    %1050 = vmatprep.subr.mxu0 0.0
    %1051 = vmatpush1.msra.mxu0 0.0
    %1052 = vmatprep.subr.mxu0 0.0
    %1053 = vmatpush1.msra.mxu0 0.0
    %1054 = vmatprep.subr.mxu0 0.0
    %1055 = vmatpush1.msra.mxu0 0.0
    %1056 = vmatprep.subr.mxu0 0.0
    %1057 = vmatpush1.msra.mxu0 0.0
    %1058 = vmatprep.subr.mxu0 0.0
    %1059 = vmatpush1.msra.mxu0 0.0
    %1060 = vmatprep.subr.mxu0 0.0
    %1061 = vmatpush1.msra.mxu0 0.0
    %1062 = vmatprep.subr.mxu0 0.0
    %1063 = vmatpush1.msra.mxu0 0.0
    %1064 = vmatprep.subr.mxu0 0.0
    %1065 = vmatpush1.msra.mxu0 0.0
    %1066 = vmatprep.subr.mxu0 0.0
    %1067 = vmatpush1.msra.mxu0 0.0
    %1068 = vmatprep.subr.mxu0 0.0
    %1069 = vmatpush1.msra.mxu0 0.0
    %1070 = vmatprep.subr.mxu0 0.0
    %1071 = vmatpush1.msra.mxu0 0.0
    %1072 = vmatprep.subr.mxu0 0.0
    %1073 = vmatpush1.msra.mxu0 0.0
    %1074 = vmatprep.mubr.f32.mxu0 0.0
    %1075 = vmatmul.mubr.f32.gmra.mrb[0].mxu0 %v752
    %v1076 = vpop.f32.mrb[0].mxu0
    %v1077 = vadd.f32 %v580, %v1076
    %v1078 = vpop.f32.mrb[0].mxu0
    %v1079 = vadd.f32 %v584, %v1078
    %1080 = vdwg.mxu0
    %1081 = vmatprep.subr.mxu0 0.0
    %1082 = vmatpush1.msra.mxu0 %v530
    %1083 = vmatprep.subr.mxu0 0.0
    %1084 = vmatpush1.msra.mxu0 %v533
    %1085 = vmatprep.subr.mxu0 0.0
    %1086 = vmatpush1.msra.mxu0 %v536
    %1087 = vmatprep.subr.mxu0 0.0
    %1088 = vmatpush1.msra.mxu0 %v539
    %1089 = vmatprep.subr.mxu0 0.0
    %1090 = vmatpush1.msra.mxu0 %v542
    %1091 = vmatprep.subr.mxu0 0.0
    %1092 = vmatpush1.msra.mxu0 %v545
    %1093 = vmatprep.subr.mxu0 0.0
    %1094 = vmatpush1.msra.mxu0 %v548
    %1095 = vmatprep.subr.mxu0 0.0
    %1096 = vmatpush1.msra.mxu0 %v551
    %1097 = vmatprep.subr.mxu0 0.0
    %1098 = vmatpush1.msra.mxu0 %v554
    %1099 = vmatprep.subr.mxu0 0.0
    %1100 = vmatpush1.msra.mxu0 %v557
    %1101 = vmatprep.subr.mxu0 0.0
    %1102 = vmatpush1.msra.mxu0 %v560
    %1103 = vmatprep.subr.mxu0 0.0
    %1104 = vmatpush1.msra.mxu0 %v563
    %1105 = vmatprep.subr.mxu0 0.0
    %1106 = vmatpush1.msra.mxu0 %v566
    %1107 = vmatprep.subr.mxu0 0.0
    %1108 = vmatpush1.msra.mxu0 %v569
    %1109 = vmatprep.subr.mxu0 0.0
    %1110 = vmatpush1.msra.mxu0 %v572
    %1111 = vmatprep.subr.mxu0 0.0
    %1112 = vmatpush1.msra.mxu0 %v575
    %1113 = vmatprep.subr.mxu0 0.0
    %1114 = vmatpush1.msra.mxu0 0.0
    %1115 = vmatprep.subr.mxu0 0.0
    %1116 = vmatpush1.msra.mxu0 0.0
    %1117 = vmatprep.subr.mxu0 0.0
    %1118 = vmatpush1.msra.mxu0 0.0
    %1119 = vmatprep.subr.mxu0 0.0
    %1120 = vmatpush1.msra.mxu0 0.0
    %1121 = vmatprep.subr.mxu0 0.0
    %1122 = vmatpush1.msra.mxu0 0.0
    %1123 = vmatprep.subr.mxu0 0.0
    %1124 = vmatpush1.msra.mxu0 0.0
    %1125 = vmatprep.subr.mxu0 0.0
    %1126 = vmatpush1.msra.mxu0 0.0
    %1127 = vmatprep.subr.mxu0 0.0
    %1128 = vmatpush1.msra.mxu0 0.0
    %1129 = vmatprep.subr.mxu0 0.0
    %1130 = vmatpush1.msra.mxu0 0.0
    %1131 = vmatprep.subr.mxu0 0.0
    %1132 = vmatpush1.msra.mxu0 0.0
    %1133 = vmatprep.subr.mxu0 0.0
    %1134 = vmatpush1.msra.mxu0 0.0
    %1135 = vmatprep.subr.mxu0 0.0
    %1136 = vmatpush1.msra.mxu0 0.0
    %1137 = vmatprep.subr.mxu0 0.0
    %1138 = vmatpush1.msra.mxu0 0.0
    %1139 = vmatprep.subr.mxu0 0.0
    %1140 = vmatpush1.msra.mxu0 0.0
    %1141 = vmatprep.subr.mxu0 0.0
    %1142 = vmatpush1.msra.mxu0 0.0
    %1143 = vmatprep.subr.mxu0 0.0
    %1144 = vmatpush1.msra.mxu0 0.0
    %1145 = vmatprep.mubr.f32.mxu0 0.0
    %1146 = vmatmul.mubr.f32.gmra.mrb[0].mxu0 %v752
    %v1147 = vpop.f32.mrb[0].mxu0
    %v1148 = vadd.f32 %v588, %v1147
    %v1149 = vpop.f32.mrb[0].mxu0
    %1150 = vdwg.mxu0
    %v1151 = vadd.f32 %v1004, %v1077
    %v1152 = vxor.u32 %v1151, 2147483648
    %v1153 = vmul.f32 %v1152, 1.442695
    %v1154 = vpow.pop %v1153
    %v1155 = vadd.f32 %v1154, 1.0
    %v1156 = vrcp.pop %v1155
    %v1157 = vmul.f32 1.0, %v1156
    %v1158 = vadd.f32 %v1005, %v1079
    %v1159 = vxor.u32 %v1158, 2147483648
    %v1160 = vmul.f32 %v1159, 1.442695
    %v1161 = vpow.pop %v1160
    %v1162 = vadd.f32 %v1161, 1.0
    %v1163 = vrcp.pop %v1162
    %v1164 = vmul.f32 1.0, %v1163
    %v1165 = vmul.f32 %v1157, %v1148
    %v1166 = vadd.f32 %v1006, %v1165
    %v1167 = vtanh.pop %v1166
    %v1168 = vsub.f32 %v752, %v1167
    %v1169 = vmul.f32 %v1164, %v1168
    %v1170 = vadd.f32 %v1167, %v1169
    %1171 = vmatprep.subr.mxu0 %v755
    %1172 = vmatpush1.msra.mxu0 %v754
    %1173 = vmatprep.subr.mxu0 %v758
    %1174 = vmatpush1.msra.mxu0 %v757
    %1175 = vmatprep.subr.mxu0 %v761
    %1176 = vmatpush1.msra.mxu0 %v760
    %1177 = vmatprep.subr.mxu0 %v764
    %1178 = vmatpush1.msra.mxu0 %v763
    %1179 = vmatprep.subr.mxu0 %v767
    %1180 = vmatpush1.msra.mxu0 %v766
    %1181 = vmatprep.subr.mxu0 %v770
    %1182 = vmatpush1.msra.mxu0 %v769
    %1183 = vmatprep.subr.mxu0 %v773
    %1184 = vmatpush1.msra.mxu0 %v772
    %1185 = vmatprep.subr.mxu0 %v776
    %1186 = vmatpush1.msra.mxu0 %v775
    %1187 = vmatprep.subr.mxu0 %v779
    %1188 = vmatpush1.msra.mxu0 %v778
    %1189 = vmatprep.subr.mxu0 %v782
    %1190 = vmatpush1.msra.mxu0 %v781
    %1191 = vmatprep.subr.mxu0 %v785
    %1192 = vmatpush1.msra.mxu0 %v784
    %1193 = vmatprep.subr.mxu0 %v788
    %1194 = vmatpush1.msra.mxu0 %v787
    %1195 = vmatprep.subr.mxu0 %v791
    %1196 = vmatpush1.msra.mxu0 %v790
    %1197 = vmatprep.subr.mxu0 %v794
    %1198 = vmatpush1.msra.mxu0 %v793
    %1199 = vmatprep.subr.mxu0 %v797
    %1200 = vmatpush1.msra.mxu0 %v796
    %1201 = vmatprep.subr.mxu0 %v800
    %1202 = vmatpush1.msra.mxu0 %v799
    %1203 = vmatprep.subr.mxu0 0.0
    %1204 = vmatpush1.msra.mxu0 0.0
    %1205 = vmatprep.subr.mxu0 0.0
    %1206 = vmatpush1.msra.mxu0 0.0
    %1207 = vmatprep.subr.mxu0 0.0
    %1208 = vmatpush1.msra.mxu0 0.0
    %1209 = vmatprep.subr.mxu0 0.0
    %1210 = vmatpush1.msra.mxu0 0.0
    %1211 = vmatprep.subr.mxu0 0.0
    %1212 = vmatpush1.msra.mxu0 0.0
    %1213 = vmatprep.subr.mxu0 0.0
    %1214 = vmatpush1.msra.mxu0 0.0
    %1215 = vmatprep.subr.mxu0 0.0
    %1216 = vmatpush1.msra.mxu0 0.0
    %1217 = vmatprep.subr.mxu0 0.0
    %1218 = vmatpush1.msra.mxu0 0.0
    %1219 = vmatprep.subr.mxu0 0.0
    %1220 = vmatpush1.msra.mxu0 0.0
    %1221 = vmatprep.subr.mxu0 0.0
    %1222 = vmatpush1.msra.mxu0 0.0
    %1223 = vmatprep.subr.mxu0 0.0
    %1224 = vmatpush1.msra.mxu0 0.0
    %1225 = vmatprep.subr.mxu0 0.0
    %1226 = vmatpush1.msra.mxu0 0.0
    %1227 = vmatprep.subr.mxu0 0.0
    %1228 = vmatpush1.msra.mxu0 0.0
    %1229 = vmatprep.subr.mxu0 0.0
    %1230 = vmatpush1.msra.mxu0 0.0
    %1231 = vmatprep.subr.mxu0 0.0
    %1232 = vmatpush1.msra.mxu0 0.0
    %1233 = vmatprep.subr.mxu0 0.0
    %1234 = vmatpush1.msra.mxu0 0.0
    %1235 = vmatprep.mubr.f32.mxu0 0.0
    %1236 = vmatmul.mubr.f32.gmra.mrb[0].mxu0 %v978
    %v1237 = vpop.f32.mrb[0].mxu0
    %v1238 = vadd.f32 %v806, %v1237
    %v1239 = vpop.f32.mrb[0].mxu0
    %v1240 = vadd.f32 %v810, %v1239
    %1241 = vdwg.mxu0
    %1242 = vmatprep.subr.mxu0 0.0
    %1243 = vmatpush1.msra.mxu0 %v756
    %1244 = vmatprep.subr.mxu0 0.0
    %1245 = vmatpush1.msra.mxu0 %v759
    %1246 = vmatprep.subr.mxu0 0.0
    %1247 = vmatpush1.msra.mxu0 %v762
    %1248 = vmatprep.subr.mxu0 0.0
    %1249 = vmatpush1.msra.mxu0 %v765
    %1250 = vmatprep.subr.mxu0 0.0
    %1251 = vmatpush1.msra.mxu0 %v768
    %1252 = vmatprep.subr.mxu0 0.0
    %1253 = vmatpush1.msra.mxu0 %v771
    %1254 = vmatprep.subr.mxu0 0.0
    %1255 = vmatpush1.msra.mxu0 %v774
    %1256 = vmatprep.subr.mxu0 0.0
    %1257 = vmatpush1.msra.mxu0 %v777
    %1258 = vmatprep.subr.mxu0 0.0
    %1259 = vmatpush1.msra.mxu0 %v780
    %1260 = vmatprep.subr.mxu0 0.0
    %1261 = vmatpush1.msra.mxu0 %v783
    %1262 = vmatprep.subr.mxu0 0.0
    %1263 = vmatpush1.msra.mxu0 %v786
    %1264 = vmatprep.subr.mxu0 0.0
    %1265 = vmatpush1.msra.mxu0 %v789
    %1266 = vmatprep.subr.mxu0 0.0
    %1267 = vmatpush1.msra.mxu0 %v792
    %1268 = vmatprep.subr.mxu0 0.0
    %1269 = vmatpush1.msra.mxu0 %v795
    %1270 = vmatprep.subr.mxu0 0.0
    %1271 = vmatpush1.msra.mxu0 %v798
    %1272 = vmatprep.subr.mxu0 0.0
    %1273 = vmatpush1.msra.mxu0 %v801
    %1274 = vmatprep.subr.mxu0 0.0
    %1275 = vmatpush1.msra.mxu0 0.0
    %1276 = vmatprep.subr.mxu0 0.0
    %1277 = vmatpush1.msra.mxu0 0.0
    %1278 = vmatprep.subr.mxu0 0.0
    %1279 = vmatpush1.msra.mxu0 0.0
    %1280 = vmatprep.subr.mxu0 0.0
    %1281 = vmatpush1.msra.mxu0 0.0
    %1282 = vmatprep.subr.mxu0 0.0
    %1283 = vmatpush1.msra.mxu0 0.0
    %1284 = vmatprep.subr.mxu0 0.0
    %1285 = vmatpush1.msra.mxu0 0.0
    %1286 = vmatprep.subr.mxu0 0.0
    %1287 = vmatpush1.msra.mxu0 0.0
    %1288 = vmatprep.subr.mxu0 0.0
    %1289 = vmatpush1.msra.mxu0 0.0
    %1290 = vmatprep.subr.mxu0 0.0
    %1291 = vmatpush1.msra.mxu0 0.0
    %1292 = vmatprep.subr.mxu0 0.0
    %1293 = vmatpush1.msra.mxu0 0.0
    %1294 = vmatprep.subr.mxu0 0.0
    %1295 = vmatpush1.msra.mxu0 0.0
    %1296 = vmatprep.subr.mxu0 0.0
    %1297 = vmatpush1.msra.mxu0 0.0
    %1298 = vmatprep.subr.mxu0 0.0
    %1299 = vmatpush1.msra.mxu0 0.0
    %1300 = vmatprep.subr.mxu0 0.0
    %1301 = vmatpush1.msra.mxu0 0.0
    %1302 = vmatprep.subr.mxu0 0.0
    %1303 = vmatpush1.msra.mxu0 0.0
    %1304 = vmatprep.subr.mxu0 0.0
    %1305 = vmatpush1.msra.mxu0 0.0
    %1306 = vmatprep.mubr.f32.mxu0 0.0
    %1307 = vmatmul.mubr.f32.gmra.mrb[0].mxu0 %v978
    %v1308 = vpop.f32.mrb[0].mxu0
    %v1309 = vadd.f32 %v814, %v1308
    %v1310 = vpop.f32.mrb[0].mxu0
    %1311 = vdwg.mxu0
    %v1312 = vadd.f32 %v1007, %v1238
    %v1313 = vxor.u32 %v1312, 2147483648
    %v1314 = vmul.f32 %v1313, 1.442695
    %v1315 = vpow.pop %v1314
    %v1316 = vadd.f32 %v1315, 1.0
    %v1317 = vrcp.pop %v1316
    %v1318 = vmul.f32 1.0, %v1317
    %v1319 = vadd.f32 %v1008, %v1240
    %v1320 = vxor.u32 %v1319, 2147483648
    %v1321 = vmul.f32 %v1320, 1.442695
    %v1322 = vpow.pop %v1321
    %v1323 = vadd.f32 %v1322, 1.0
    %v1324 = vrcp.pop %v1323
    %v1325 = vmul.f32 1.0, %v1324
    %v1326 = vmul.f32 %v1318, %v1309
    %v1327 = vadd.f32 %v1009, %v1326
    %v1328 = vtanh.pop %v1327
    %v1329 = vsub.f32 %v978, %v1328
    %v1330 = vmul.f32 %v1325, %v1329
    %v1331 = vadd.f32 %v1328, %v1330
    %vm1332 = vcmp.ge.f32.partialorder %v1170, 0.0
    %v1333 = vmul.f32 %v1170, 0.2
    %v1334 = vsel %vm1332, %v1170, %v1333
    %s1335 = scalar_lea.vmem %s5, 1
    %v1336 = vld [vmem:[%s1335] sm:$0x1]
    %v1338 = vlaneseq
    %v1339 = vshrl.u32 %v1338, 7
    %v1340 = vsub.s32 0, %v1339
    %v1341 = vrot.slane %v1336, %v1340
    %v1343 = vmul.f32 %v1334, %v1341
    %v1344 = vadd.f32 %v1003, %v1343
    %vm1345 = vcmp.ge.f32.partialorder %v1331, 0.0
    %v1346 = vmul.f32 %v1331, 0.2
    %v1347 = vsel %vm1345, %v1331, %v1346
    %s1348 = scalar_lea.vmem %s6, 6
    %v1349 = vld [vmem:[%s1348] sm:$0x1]
    %v1351 = vlaneseq
    %v1352 = vshrl.u32 %v1351, 7
    %v1353 = vsub.s32 0, %v1352
    %v1354 = vrot.slane %v1349, %v1353
    %v1356 = vmul.f32 %v1347, %v1354
    %v1357 = vadd.f32 %v1344, %v1356
    %v1358 = vld [vmem:[#allocation2 + $0x60] sm:$0xff]
    %v1359 = vld [vmem:[#allocation2 + $0x68] sm:$0xff]
    %v1360 = vld [vmem:[#allocation2 + $0x70] sm:$0xff]
    %v1361 = vld [vmem:[#allocation2 + $0x108] sm:$0xff]
    %v1362 = vld [vmem:[#allocation2 + $0x110] sm:$0xff]
    %v1363 = vld [vmem:[#allocation2 + $0x118] sm:$0xff]
    %1364 = vmatprep.subr.mxu0 %v529
    %1365 = vmatpush1.msra.mxu0 %v528
    %1366 = vmatprep.subr.mxu0 %v532
    %1367 = vmatpush1.msra.mxu0 %v531
    %1368 = vmatprep.subr.mxu0 %v535
    %1369 = vmatpush1.msra.mxu0 %v534
    %1370 = vmatprep.subr.mxu0 %v538
    %1371 = vmatpush1.msra.mxu0 %v537
    %1372 = vmatprep.subr.mxu0 %v541
    %1373 = vmatpush1.msra.mxu0 %v540
    %1374 = vmatprep.subr.mxu0 %v544
    %1375 = vmatpush1.msra.mxu0 %v543
    %1376 = vmatprep.subr.mxu0 %v547
    %1377 = vmatpush1.msra.mxu0 %v546
    %1378 = vmatprep.subr.mxu0 %v550
    %1379 = vmatpush1.msra.mxu0 %v549
    %1380 = vmatprep.subr.mxu0 %v553
    %1381 = vmatpush1.msra.mxu0 %v552
    %1382 = vmatprep.subr.mxu0 %v556
    %1383 = vmatpush1.msra.mxu0 %v555
    %1384 = vmatprep.subr.mxu0 %v559
    %1385 = vmatpush1.msra.mxu0 %v558
    %1386 = vmatprep.subr.mxu0 %v562
    %1387 = vmatpush1.msra.mxu0 %v561
    %1388 = vmatprep.subr.mxu0 %v565
    %1389 = vmatpush1.msra.mxu0 %v564
    %1390 = vmatprep.subr.mxu0 %v568
    %1391 = vmatpush1.msra.mxu0 %v567
    %1392 = vmatprep.subr.mxu0 %v571
    %1393 = vmatpush1.msra.mxu0 %v570
    %1394 = vmatprep.subr.mxu0 %v574
    %1395 = vmatpush1.msra.mxu0 %v573
    %1396 = vmatprep.subr.mxu0 0.0
    %1397 = vmatpush1.msra.mxu0 0.0
    %1398 = vmatprep.subr.mxu0 0.0
    %1399 = vmatpush1.msra.mxu0 0.0
    %1400 = vmatprep.subr.mxu0 0.0
    %1401 = vmatpush1.msra.mxu0 0.0
    %1402 = vmatprep.subr.mxu0 0.0
    %1403 = vmatpush1.msra.mxu0 0.0
    %1404 = vmatprep.subr.mxu0 0.0
    %1405 = vmatpush1.msra.mxu0 0.0
    %1406 = vmatprep.subr.mxu0 0.0
    %1407 = vmatpush1.msra.mxu0 0.0
    %1408 = vmatprep.subr.mxu0 0.0
    %1409 = vmatpush1.msra.mxu0 0.0
    %1410 = vmatprep.subr.mxu0 0.0
    %1411 = vmatpush1.msra.mxu0 0.0
    %1412 = vmatprep.subr.mxu0 0.0
    %1413 = vmatpush1.msra.mxu0 0.0
    %1414 = vmatprep.subr.mxu0 0.0
    %1415 = vmatpush1.msra.mxu0 0.0
    %1416 = vmatprep.subr.mxu0 0.0
    %1417 = vmatpush1.msra.mxu0 0.0
    %1418 = vmatprep.subr.mxu0 0.0
    %1419 = vmatpush1.msra.mxu0 0.0
    %1420 = vmatprep.subr.mxu0 0.0
    %1421 = vmatpush1.msra.mxu0 0.0
    %1422 = vmatprep.subr.mxu0 0.0
    %1423 = vmatpush1.msra.mxu0 0.0
    %1424 = vmatprep.subr.mxu0 0.0
    %1425 = vmatpush1.msra.mxu0 0.0
    %1426 = vmatprep.subr.mxu0 0.0
    %1427 = vmatpush1.msra.mxu0 0.0
    %1428 = vmatprep.mubr.f32.mxu0 0.0
    %1429 = vmatmul.mubr.f32.gmra.mrb[0].mxu0 %v1170
    %v1430 = vpop.f32.mrb[0].mxu0
    %v1431 = vadd.f32 %v580, %v1430
    %v1432 = vpop.f32.mrb[0].mxu0
    %v1433 = vadd.f32 %v584, %v1432
    %1434 = vdwg.mxu0
    %1435 = vmatprep.subr.mxu0 0.0
    %1436 = vmatpush1.msra.mxu0 %v530
    %1437 = vmatprep.subr.mxu0 0.0
    %1438 = vmatpush1.msra.mxu0 %v533
    %1439 = vmatprep.subr.mxu0 0.0
    %1440 = vmatpush1.msra.mxu0 %v536
    %1441 = vmatprep.subr.mxu0 0.0
    %1442 = vmatpush1.msra.mxu0 %v539
    %1443 = vmatprep.subr.mxu0 0.0
    %1444 = vmatpush1.msra.mxu0 %v542
    %1445 = vmatprep.subr.mxu0 0.0
    %1446 = vmatpush1.msra.mxu0 %v545
    %1447 = vmatprep.subr.mxu0 0.0
    %1448 = vmatpush1.msra.mxu0 %v548
    %1449 = vmatprep.subr.mxu0 0.0
    %1450 = vmatpush1.msra.mxu0 %v551
    %1451 = vmatprep.subr.mxu0 0.0
    %1452 = vmatpush1.msra.mxu0 %v554
    %1453 = vmatprep.subr.mxu0 0.0
    %1454 = vmatpush1.msra.mxu0 %v557
    %1455 = vmatprep.subr.mxu0 0.0
    %1456 = vmatpush1.msra.mxu0 %v560
    %1457 = vmatprep.subr.mxu0 0.0
    %1458 = vmatpush1.msra.mxu0 %v563
    %1459 = vmatprep.subr.mxu0 0.0
    %1460 = vmatpush1.msra.mxu0 %v566
    %1461 = vmatprep.subr.mxu0 0.0
    %1462 = vmatpush1.msra.mxu0 %v569
    %1463 = vmatprep.subr.mxu0 0.0
    %1464 = vmatpush1.msra.mxu0 %v572
    %1465 = vmatprep.subr.mxu0 0.0
    %1466 = vmatpush1.msra.mxu0 %v575
    %1467 = vmatprep.subr.mxu0 0.0
    %1468 = vmatpush1.msra.mxu0 0.0
    %1469 = vmatprep.subr.mxu0 0.0
    %1470 = vmatpush1.msra.mxu0 0.0
    %1471 = vmatprep.subr.mxu0 0.0
    %1472 = vmatpush1.msra.mxu0 0.0
    %1473 = vmatprep.subr.mxu0 0.0
    %1474 = vmatpush1.msra.mxu0 0.0
    %1475 = vmatprep.subr.mxu0 0.0
    %1476 = vmatpush1.msra.mxu0 0.0
    %1477 = vmatprep.subr.mxu0 0.0
    %1478 = vmatpush1.msra.mxu0 0.0
    %1479 = vmatprep.subr.mxu0 0.0
    %1480 = vmatpush1.msra.mxu0 0.0
    %1481 = vmatprep.subr.mxu0 0.0
    %1482 = vmatpush1.msra.mxu0 0.0
    %1483 = vmatprep.subr.mxu0 0.0
    %1484 = vmatpush1.msra.mxu0 0.0
    %1485 = vmatprep.subr.mxu0 0.0
    %1486 = vmatpush1.msra.mxu0 0.0
    %1487 = vmatprep.subr.mxu0 0.0
    %1488 = vmatpush1.msra.mxu0 0.0
    %1489 = vmatprep.subr.mxu0 0.0
    %1490 = vmatpush1.msra.mxu0 0.0
    %1491 = vmatprep.subr.mxu0 0.0
    %1492 = vmatpush1.msra.mxu0 0.0
    %1493 = vmatprep.subr.mxu0 0.0
    %1494 = vmatpush1.msra.mxu0 0.0
    %1495 = vmatprep.subr.mxu0 0.0
    %1496 = vmatpush1.msra.mxu0 0.0
    %1497 = vmatprep.subr.mxu0 0.0
    %1498 = vmatpush1.msra.mxu0 0.0
    %1499 = vmatprep.mubr.f32.mxu0 0.0
    %1500 = vmatmul.mubr.f32.gmra.mrb[0].mxu0 %v1170
    %v1501 = vpop.f32.mrb[0].mxu0
    %v1502 = vadd.f32 %v588, %v1501
    %v1503 = vpop.f32.mrb[0].mxu0
    %1504 = vdwg.mxu0
    %v1505 = vadd.f32 %v1358, %v1431
    %v1506 = vxor.u32 %v1505, 2147483648
    %v1507 = vmul.f32 %v1506, 1.442695
    %v1508 = vpow.pop %v1507
    %v1509 = vadd.f32 %v1508, 1.0
    %v1510 = vrcp.pop %v1509
    %v1511 = vmul.f32 1.0, %v1510
    %v1512 = vadd.f32 %v1359, %v1433
    %v1513 = vxor.u32 %v1512, 2147483648
    %v1514 = vmul.f32 %v1513, 1.442695
    %v1515 = vpow.pop %v1514
    %v1516 = vadd.f32 %v1515, 1.0
    %v1517 = vrcp.pop %v1516
    %v1518 = vmul.f32 1.0, %v1517
    %v1519 = vmul.f32 %v1511, %v1502
    %v1520 = vadd.f32 %v1360, %v1519
    %v1521 = vtanh.pop %v1520
    %v1522 = vsub.f32 %v1170, %v1521
    %v1523 = vmul.f32 %v1518, %v1522
    %v1524 = vadd.f32 %v1521, %v1523
    %1525 = vmatprep.subr.mxu0 %v755
    %1526 = vmatpush1.msra.mxu0 %v754
    %1527 = vmatprep.subr.mxu0 %v758
    %1528 = vmatpush1.msra.mxu0 %v757
    %1529 = vmatprep.subr.mxu0 %v761
    %1530 = vmatpush1.msra.mxu0 %v760
    %1531 = vmatprep.subr.mxu0 %v764
    %1532 = vmatpush1.msra.mxu0 %v763
    %1533 = vmatprep.subr.mxu0 %v767
    %1534 = vmatpush1.msra.mxu0 %v766
    %1535 = vmatprep.subr.mxu0 %v770
    %1536 = vmatpush1.msra.mxu0 %v769
    %1537 = vmatprep.subr.mxu0 %v773
    %1538 = vmatpush1.msra.mxu0 %v772
    %1539 = vmatprep.subr.mxu0 %v776
    %1540 = vmatpush1.msra.mxu0 %v775
    %1541 = vmatprep.subr.mxu0 %v779
    %1542 = vmatpush1.msra.mxu0 %v778
    %1543 = vmatprep.subr.mxu0 %v782
    %1544 = vmatpush1.msra.mxu0 %v781
    %1545 = vmatprep.subr.mxu0 %v785
    %1546 = vmatpush1.msra.mxu0 %v784
    %1547 = vmatprep.subr.mxu0 %v788
    %1548 = vmatpush1.msra.mxu0 %v787
    %1549 = vmatprep.subr.mxu0 %v791
    %1550 = vmatpush1.msra.mxu0 %v790
    %1551 = vmatprep.subr.mxu0 %v794
    %1552 = vmatpush1.msra.mxu0 %v793
    %1553 = vmatprep.subr.mxu0 %v797
    %1554 = vmatpush1.msra.mxu0 %v796
    %1555 = vmatprep.subr.mxu0 %v800
    %1556 = vmatpush1.msra.mxu0 %v799
    %1557 = vmatprep.subr.mxu0 0.0
    %1558 = vmatpush1.msra.mxu0 0.0
    %1559 = vmatprep.subr.mxu0 0.0
    %1560 = vmatpush1.msra.mxu0 0.0
    %1561 = vmatprep.subr.mxu0 0.0
    %1562 = vmatpush1.msra.mxu0 0.0
    %1563 = vmatprep.subr.mxu0 0.0
    %1564 = vmatpush1.msra.mxu0 0.0
    %1565 = vmatprep.subr.mxu0 0.0
    %1566 = vmatpush1.msra.mxu0 0.0
    %1567 = vmatprep.subr.mxu0 0.0
    %1568 = vmatpush1.msra.mxu0 0.0
    %1569 = vmatprep.subr.mxu0 0.0
    %1570 = vmatpush1.msra.mxu0 0.0
    %1571 = vmatprep.subr.mxu0 0.0
    %1572 = vmatpush1.msra.mxu0 0.0
    %1573 = vmatprep.subr.mxu0 0.0
    %1574 = vmatpush1.msra.mxu0 0.0
    %1575 = vmatprep.subr.mxu0 0.0
    %1576 = vmatpush1.msra.mxu0 0.0
    %1577 = vmatprep.subr.mxu0 0.0
    %1578 = vmatpush1.msra.mxu0 0.0
    %1579 = vmatprep.subr.mxu0 0.0
    %1580 = vmatpush1.msra.mxu0 0.0
    %1581 = vmatprep.subr.mxu0 0.0
    %1582 = vmatpush1.msra.mxu0 0.0
    %1583 = vmatprep.subr.mxu0 0.0
    %1584 = vmatpush1.msra.mxu0 0.0
    %1585 = vmatprep.subr.mxu0 0.0
    %1586 = vmatpush1.msra.mxu0 0.0
    %1587 = vmatprep.subr.mxu0 0.0
    %1588 = vmatpush1.msra.mxu0 0.0
    %1589 = vmatprep.mubr.f32.mxu0 0.0
    %1590 = vmatmul.mubr.f32.gmra.mrb[0].mxu0 %v1331
    %v1591 = vpop.f32.mrb[0].mxu0
    %v1592 = vadd.f32 %v806, %v1591
    %v1593 = vpop.f32.mrb[0].mxu0
    %v1594 = vadd.f32 %v810, %v1593
    %1595 = vdwg.mxu0
    %1596 = vmatprep.subr.mxu0 0.0
    %1597 = vmatpush1.msra.mxu0 %v756
    %1598 = vmatprep.subr.mxu0 0.0
    %1599 = vmatpush1.msra.mxu0 %v759
    %1600 = vmatprep.subr.mxu0 0.0
    %1601 = vmatpush1.msra.mxu0 %v762
    %1602 = vmatprep.subr.mxu0 0.0
    %1603 = vmatpush1.msra.mxu0 %v765
    %1604 = vmatprep.subr.mxu0 0.0
    %1605 = vmatpush1.msra.mxu0 %v768
    %1606 = vmatprep.subr.mxu0 0.0
    %1607 = vmatpush1.msra.mxu0 %v771
    %1608 = vmatprep.subr.mxu0 0.0
    %1609 = vmatpush1.msra.mxu0 %v774
    %1610 = vmatprep.subr.mxu0 0.0
    %1611 = vmatpush1.msra.mxu0 %v777
    %1612 = vmatprep.subr.mxu0 0.0
    %1613 = vmatpush1.msra.mxu0 %v780
    %1614 = vmatprep.subr.mxu0 0.0
    %1615 = vmatpush1.msra.mxu0 %v783
    %1616 = vmatprep.subr.mxu0 0.0
    %1617 = vmatpush1.msra.mxu0 %v786
    %1618 = vmatprep.subr.mxu0 0.0
    %1619 = vmatpush1.msra.mxu0 %v789
    %1620 = vmatprep.subr.mxu0 0.0
    %1621 = vmatpush1.msra.mxu0 %v792
    %1622 = vmatprep.subr.mxu0 0.0
    %1623 = vmatpush1.msra.mxu0 %v795
    %1624 = vmatprep.subr.mxu0 0.0
    %1625 = vmatpush1.msra.mxu0 %v798
    %1626 = vmatprep.subr.mxu0 0.0
    %1627 = vmatpush1.msra.mxu0 %v801
    %1628 = vmatprep.subr.mxu0 0.0
    %1629 = vmatpush1.msra.mxu0 0.0
    %1630 = vmatprep.subr.mxu0 0.0
    %1631 = vmatpush1.msra.mxu0 0.0
    %1632 = vmatprep.subr.mxu0 0.0
    %1633 = vmatpush1.msra.mxu0 0.0
    %1634 = vmatprep.subr.mxu0 0.0
    %1635 = vmatpush1.msra.mxu0 0.0
    %1636 = vmatprep.subr.mxu0 0.0
    %1637 = vmatpush1.msra.mxu0 0.0
    %1638 = vmatprep.subr.mxu0 0.0
    %1639 = vmatpush1.msra.mxu0 0.0
    %1640 = vmatprep.subr.mxu0 0.0
    %1641 = vmatpush1.msra.mxu0 0.0
    %1642 = vmatprep.subr.mxu0 0.0
    %1643 = vmatpush1.msra.mxu0 0.0
    %1644 = vmatprep.subr.mxu0 0.0
    %1645 = vmatpush1.msra.mxu0 0.0
    %1646 = vmatprep.subr.mxu0 0.0
    %1647 = vmatpush1.msra.mxu0 0.0
    %1648 = vmatprep.subr.mxu0 0.0
    %1649 = vmatpush1.msra.mxu0 0.0
    %1650 = vmatprep.subr.mxu0 0.0
    %1651 = vmatpush1.msra.mxu0 0.0
    %1652 = vmatprep.subr.mxu0 0.0
    %1653 = vmatpush1.msra.mxu0 0.0
    %1654 = vmatprep.subr.mxu0 0.0
    %1655 = vmatpush1.msra.mxu0 0.0
    %1656 = vmatprep.subr.mxu0 0.0
    %1657 = vmatpush1.msra.mxu0 0.0
    %1658 = vmatprep.subr.mxu0 0.0
    %1659 = vmatpush1.msra.mxu0 0.0
    %1660 = vmatprep.mubr.f32.mxu0 0.0
    %1661 = vmatmul.mubr.f32.gmra.mrb[0].mxu0 %v1331
    %v1662 = vpop.f32.mrb[0].mxu0
    %v1663 = vadd.f32 %v814, %v1662
    %v1664 = vpop.f32.mrb[0].mxu0
    %1665 = vdwg.mxu0
    %v1666 = vadd.f32 %v1361, %v1592
    %v1667 = vxor.u32 %v1666, 2147483648
    %v1668 = vmul.f32 %v1667, 1.442695
    %v1669 = vpow.pop %v1668
    %v1670 = vadd.f32 %v1669, 1.0
    %v1671 = vrcp.pop %v1670
    %v1672 = vmul.f32 1.0, %v1671
    %v1673 = vadd.f32 %v1362, %v1594
    %v1674 = vxor.u32 %v1673, 2147483648
    %v1675 = vmul.f32 %v1674, 1.442695
    %v1676 = vpow.pop %v1675
    %v1677 = vadd.f32 %v1676, 1.0
    %v1678 = vrcp.pop %v1677
    %v1679 = vmul.f32 1.0, %v1678
    %v1680 = vmul.f32 %v1672, %v1663
    %v1681 = vadd.f32 %v1363, %v1680
    %v1682 = vtanh.pop %v1681
    %v1683 = vsub.f32 %v1331, %v1682
    %v1684 = vmul.f32 %v1679, %v1683
    %v1685 = vadd.f32 %v1682, %v1684
    %vm1686 = vcmp.ge.f32.partialorder %v1524, 0.0
    %v1687 = vmul.f32 %v1524, 0.2
    %v1688 = vsel %vm1686, %v1524, %v1687
    %s1689 = scalar_lea.vmem %s5, 2
    %v1690 = vld [vmem:[%s1689] sm:$0x1]
    %v1692 = vlaneseq
    %v1693 = vshrl.u32 %v1692, 7
    %v1694 = vsub.s32 0, %v1693
    %v1695 = vrot.slane %v1690, %v1694
    %v1697 = vmul.f32 %v1688, %v1695
    %v1698 = vadd.f32 %v1357, %v1697
    %vm1699 = vcmp.ge.f32.partialorder %v1685, 0.0
    %v1700 = vmul.f32 %v1685, 0.2
    %v1701 = vsel %vm1699, %v1685, %v1700
    %s1702 = scalar_lea.vmem %s6, 5
    %v1703 = vld [vmem:[%s1702] sm:$0x1]
    %v1705 = vlaneseq
    %v1706 = vshrl.u32 %v1705, 7
    %v1707 = vsub.s32 0, %v1706
    %v1708 = vrot.slane %v1703, %v1707
    %v1710 = vmul.f32 %v1701, %v1708
    %v1711 = vadd.f32 %v1698, %v1710
    %v1712 = vld [vmem:[#allocation2 + $0x90] sm:$0xff]
    %v1713 = vld [vmem:[#allocation2 + $0x98] sm:$0xff]
    %v1714 = vld [vmem:[#allocation2 + $0xa0] sm:$0xff]
    %v1715 = vld [vmem:[#allocation2 + $0xd8] sm:$0xff]
    %v1716 = vld [vmem:[#allocation2 + $0xe0] sm:$0xff]
    %v1717 = vld [vmem:[#allocation2 + $0xe8] sm:$0xff]
    %1718 = vmatprep.subr.mxu0 %v529
    %1719 = vmatpush1.msra.mxu0 %v528
    %1720 = vmatprep.subr.mxu0 %v532
    %1721 = vmatpush1.msra.mxu0 %v531
    %1722 = vmatprep.subr.mxu0 %v535
    %1723 = vmatpush1.msra.mxu0 %v534
    %1724 = vmatprep.subr.mxu0 %v538
    %1725 = vmatpush1.msra.mxu0 %v537
    %1726 = vmatprep.subr.mxu0 %v541
    %1727 = vmatpush1.msra.mxu0 %v540
    %1728 = vmatprep.subr.mxu0 %v544
    %1729 = vmatpush1.msra.mxu0 %v543
    %1730 = vmatprep.subr.mxu0 %v547
    %1731 = vmatpush1.msra.mxu0 %v546
    %1732 = vmatprep.subr.mxu0 %v550
    %1733 = vmatpush1.msra.mxu0 %v549
    %1734 = vmatprep.subr.mxu0 %v553
    %1735 = vmatpush1.msra.mxu0 %v552
    %1736 = vmatprep.subr.mxu0 %v556
    %1737 = vmatpush1.msra.mxu0 %v555
    %1738 = vmatprep.subr.mxu0 %v559
    %1739 = vmatpush1.msra.mxu0 %v558
    %1740 = vmatprep.subr.mxu0 %v562
    %1741 = vmatpush1.msra.mxu0 %v561
    %1742 = vmatprep.subr.mxu0 %v565
    %1743 = vmatpush1.msra.mxu0 %v564
    %1744 = vmatprep.subr.mxu0 %v568
    %1745 = vmatpush1.msra.mxu0 %v567
    %1746 = vmatprep.subr.mxu0 %v571
    %1747 = vmatpush1.msra.mxu0 %v570
    %1748 = vmatprep.subr.mxu0 %v574
    %1749 = vmatpush1.msra.mxu0 %v573
    %1750 = vmatprep.subr.mxu0 0.0
    %1751 = vmatpush1.msra.mxu0 0.0
    %1752 = vmatprep.subr.mxu0 0.0
    %1753 = vmatpush1.msra.mxu0 0.0
    %1754 = vmatprep.subr.mxu0 0.0
    %1755 = vmatpush1.msra.mxu0 0.0
    %1756 = vmatprep.subr.mxu0 0.0
    %1757 = vmatpush1.msra.mxu0 0.0
    %1758 = vmatprep.subr.mxu0 0.0
    %1759 = vmatpush1.msra.mxu0 0.0
    %1760 = vmatprep.subr.mxu0 0.0
    %1761 = vmatpush1.msra.mxu0 0.0
    %1762 = vmatprep.subr.mxu0 0.0
    %1763 = vmatpush1.msra.mxu0 0.0
    %1764 = vmatprep.subr.mxu0 0.0
    %1765 = vmatpush1.msra.mxu0 0.0
    %1766 = vmatprep.subr.mxu0 0.0
    %1767 = vmatpush1.msra.mxu0 0.0
    %1768 = vmatprep.subr.mxu0 0.0
    %1769 = vmatpush1.msra.mxu0 0.0
    %1770 = vmatprep.subr.mxu0 0.0
    %1771 = vmatpush1.msra.mxu0 0.0
    %1772 = vmatprep.subr.mxu0 0.0
    %1773 = vmatpush1.msra.mxu0 0.0
    %1774 = vmatprep.subr.mxu0 0.0
    %1775 = vmatpush1.msra.mxu0 0.0
    %1776 = vmatprep.subr.mxu0 0.0
    %1777 = vmatpush1.msra.mxu0 0.0
    %1778 = vmatprep.subr.mxu0 0.0
    %1779 = vmatpush1.msra.mxu0 0.0
    %1780 = vmatprep.subr.mxu0 0.0
    %1781 = vmatpush1.msra.mxu0 0.0
    %1782 = vmatprep.mubr.f32.mxu0 0.0
    %1783 = vmatmul.mubr.f32.gmra.mrb[0].mxu0 %v1524
    %v1784 = vpop.f32.mrb[0].mxu0
    %v1785 = vadd.f32 %v580, %v1784
    %v1786 = vpop.f32.mrb[0].mxu0
    %v1787 = vadd.f32 %v584, %v1786
    %1788 = vdwg.mxu0
    %1789 = vmatprep.subr.mxu0 0.0
    %1790 = vmatpush1.msra.mxu0 %v530
    %1791 = vmatprep.subr.mxu0 0.0
    %1792 = vmatpush1.msra.mxu0 %v533
    %1793 = vmatprep.subr.mxu0 0.0
    %1794 = vmatpush1.msra.mxu0 %v536
    %1795 = vmatprep.subr.mxu0 0.0
    %1796 = vmatpush1.msra.mxu0 %v539
    %1797 = vmatprep.subr.mxu0 0.0
    %1798 = vmatpush1.msra.mxu0 %v542
    %1799 = vmatprep.subr.mxu0 0.0
    %1800 = vmatpush1.msra.mxu0 %v545
    %1801 = vmatprep.subr.mxu0 0.0
    %1802 = vmatpush1.msra.mxu0 %v548
    %1803 = vmatprep.subr.mxu0 0.0
    %1804 = vmatpush1.msra.mxu0 %v551
    %1805 = vmatprep.subr.mxu0 0.0
    %1806 = vmatpush1.msra.mxu0 %v554
    %1807 = vmatprep.subr.mxu0 0.0
    %1808 = vmatpush1.msra.mxu0 %v557
    %1809 = vmatprep.subr.mxu0 0.0
    %1810 = vmatpush1.msra.mxu0 %v560
    %1811 = vmatprep.subr.mxu0 0.0
    %1812 = vmatpush1.msra.mxu0 %v563
    %1813 = vmatprep.subr.mxu0 0.0
    %1814 = vmatpush1.msra.mxu0 %v566
    %1815 = vmatprep.subr.mxu0 0.0
    %1816 = vmatpush1.msra.mxu0 %v569
    %1817 = vmatprep.subr.mxu0 0.0
    %1818 = vmatpush1.msra.mxu0 %v572
    %1819 = vmatprep.subr.mxu0 0.0
    %1820 = vmatpush1.msra.mxu0 %v575
    %1821 = vmatprep.subr.mxu0 0.0
    %1822 = vmatpush1.msra.mxu0 0.0
    %1823 = vmatprep.subr.mxu0 0.0
    %1824 = vmatpush1.msra.mxu0 0.0
    %1825 = vmatprep.subr.mxu0 0.0
    %1826 = vmatpush1.msra.mxu0 0.0
    %1827 = vmatprep.subr.mxu0 0.0
    %1828 = vmatpush1.msra.mxu0 0.0
    %1829 = vmatprep.subr.mxu0 0.0
    %1830 = vmatpush1.msra.mxu0 0.0
    %1831 = vmatprep.subr.mxu0 0.0
    %1832 = vmatpush1.msra.mxu0 0.0
    %1833 = vmatprep.subr.mxu0 0.0
    %1834 = vmatpush1.msra.mxu0 0.0
    %1835 = vmatprep.subr.mxu0 0.0
    %1836 = vmatpush1.msra.mxu0 0.0
    %1837 = vmatprep.subr.mxu0 0.0
    %1838 = vmatpush1.msra.mxu0 0.0
    %1839 = vmatprep.subr.mxu0 0.0
    %1840 = vmatpush1.msra.mxu0 0.0
    %1841 = vmatprep.subr.mxu0 0.0
    %1842 = vmatpush1.msra.mxu0 0.0
    %1843 = vmatprep.subr.mxu0 0.0
    %1844 = vmatpush1.msra.mxu0 0.0
    %1845 = vmatprep.subr.mxu0 0.0
    %1846 = vmatpush1.msra.mxu0 0.0
    %1847 = vmatprep.subr.mxu0 0.0
    %1848 = vmatpush1.msra.mxu0 0.0
    %1849 = vmatprep.subr.mxu0 0.0
    %1850 = vmatpush1.msra.mxu0 0.0
    %1851 = vmatprep.subr.mxu0 0.0
    %1852 = vmatpush1.msra.mxu0 0.0
    %1853 = vmatprep.mubr.f32.mxu0 0.0
    %1854 = vmatmul.mubr.f32.gmra.mrb[0].mxu0 %v1524
    %v1855 = vpop.f32.mrb[0].mxu0
    %v1856 = vadd.f32 %v588, %v1855
    %v1857 = vpop.f32.mrb[0].mxu0
    %1858 = vdwg.mxu0
    %v1859 = vadd.f32 %v1712, %v1785
    %v1860 = vxor.u32 %v1859, 2147483648
    %v1861 = vmul.f32 %v1860, 1.442695
    %v1862 = vpow.pop %v1861
    %v1863 = vadd.f32 %v1862, 1.0
    %v1864 = vrcp.pop %v1863
    %v1865 = vmul.f32 1.0, %v1864
    %v1866 = vadd.f32 %v1713, %v1787
    %v1867 = vxor.u32 %v1866, 2147483648
    %v1868 = vmul.f32 %v1867, 1.442695
    %v1869 = vpow.pop %v1868
    %v1870 = vadd.f32 %v1869, 1.0
    %v1871 = vrcp.pop %v1870
    %v1872 = vmul.f32 1.0, %v1871
    %v1873 = vmul.f32 %v1865, %v1856
    %v1874 = vadd.f32 %v1714, %v1873
    %v1875 = vtanh.pop %v1874
    %v1876 = vsub.f32 %v1524, %v1875
    %v1877 = vmul.f32 %v1872, %v1876
    %v1878 = vadd.f32 %v1875, %v1877
    %1879 = vmatprep.subr.mxu0 %v755
    %1880 = vmatpush1.msra.mxu0 %v754
    %1881 = vmatprep.subr.mxu0 %v758
    %1882 = vmatpush1.msra.mxu0 %v757
    %1883 = vmatprep.subr.mxu0 %v761
    %1884 = vmatpush1.msra.mxu0 %v760
    %1885 = vmatprep.subr.mxu0 %v764
    %1886 = vmatpush1.msra.mxu0 %v763
    %1887 = vmatprep.subr.mxu0 %v767
    %1888 = vmatpush1.msra.mxu0 %v766
    %1889 = vmatprep.subr.mxu0 %v770
    %1890 = vmatpush1.msra.mxu0 %v769
    %1891 = vmatprep.subr.mxu0 %v773
    %1892 = vmatpush1.msra.mxu0 %v772
    %1893 = vmatprep.subr.mxu0 %v776
    %1894 = vmatpush1.msra.mxu0 %v775
    %1895 = vmatprep.subr.mxu0 %v779
    %1896 = vmatpush1.msra.mxu0 %v778
    %1897 = vmatprep.subr.mxu0 %v782
    %1898 = vmatpush1.msra.mxu0 %v781
    %1899 = vmatprep.subr.mxu0 %v785
    %1900 = vmatpush1.msra.mxu0 %v784
    %1901 = vmatprep.subr.mxu0 %v788
    %1902 = vmatpush1.msra.mxu0 %v787
    %1903 = vmatprep.subr.mxu0 %v791
    %1904 = vmatpush1.msra.mxu0 %v790
    %1905 = vmatprep.subr.mxu0 %v794
    %1906 = vmatpush1.msra.mxu0 %v793
    %1907 = vmatprep.subr.mxu0 %v797
    %1908 = vmatpush1.msra.mxu0 %v796
    %1909 = vmatprep.subr.mxu0 %v800
    %1910 = vmatpush1.msra.mxu0 %v799
    %1911 = vmatprep.subr.mxu0 0.0
    %1912 = vmatpush1.msra.mxu0 0.0
    %1913 = vmatprep.subr.mxu0 0.0
    %1914 = vmatpush1.msra.mxu0 0.0
    %1915 = vmatprep.subr.mxu0 0.0
    %1916 = vmatpush1.msra.mxu0 0.0
    %1917 = vmatprep.subr.mxu0 0.0
    %1918 = vmatpush1.msra.mxu0 0.0
    %1919 = vmatprep.subr.mxu0 0.0
    %1920 = vmatpush1.msra.mxu0 0.0
    %1921 = vmatprep.subr.mxu0 0.0
    %1922 = vmatpush1.msra.mxu0 0.0
    %1923 = vmatprep.subr.mxu0 0.0
    %1924 = vmatpush1.msra.mxu0 0.0
    %1925 = vmatprep.subr.mxu0 0.0
    %1926 = vmatpush1.msra.mxu0 0.0
    %1927 = vmatprep.subr.mxu0 0.0
    %1928 = vmatpush1.msra.mxu0 0.0
    %1929 = vmatprep.subr.mxu0 0.0
    %1930 = vmatpush1.msra.mxu0 0.0
    %1931 = vmatprep.subr.mxu0 0.0
    %1932 = vmatpush1.msra.mxu0 0.0
    %1933 = vmatprep.subr.mxu0 0.0
    %1934 = vmatpush1.msra.mxu0 0.0
    %1935 = vmatprep.subr.mxu0 0.0
    %1936 = vmatpush1.msra.mxu0 0.0
    %1937 = vmatprep.subr.mxu0 0.0
    %1938 = vmatpush1.msra.mxu0 0.0
    %1939 = vmatprep.subr.mxu0 0.0
    %1940 = vmatpush1.msra.mxu0 0.0
    %1941 = vmatprep.subr.mxu0 0.0
    %1942 = vmatpush1.msra.mxu0 0.0
    %1943 = vmatprep.mubr.f32.mxu0 0.0
    %1944 = vmatmul.mubr.f32.gmra.mrb[0].mxu0 %v1685
    %v1945 = vpop.f32.mrb[0].mxu0
    %v1946 = vadd.f32 %v806, %v1945
    %v1947 = vpop.f32.mrb[0].mxu0
    %v1948 = vadd.f32 %v810, %v1947
    %1949 = vdwg.mxu0
    %1950 = vmatprep.subr.mxu0 0.0
    %1951 = vmatpush1.msra.mxu0 %v756
    %1952 = vmatprep.subr.mxu0 0.0
    %1953 = vmatpush1.msra.mxu0 %v759
    %1954 = vmatprep.subr.mxu0 0.0
    %1955 = vmatpush1.msra.mxu0 %v762
    %1956 = vmatprep.subr.mxu0 0.0
    %1957 = vmatpush1.msra.mxu0 %v765
    %1958 = vmatprep.subr.mxu0 0.0
    %1959 = vmatpush1.msra.mxu0 %v768
    %1960 = vmatprep.subr.mxu0 0.0
    %1961 = vmatpush1.msra.mxu0 %v771
    %1962 = vmatprep.subr.mxu0 0.0
    %1963 = vmatpush1.msra.mxu0 %v774
    %1964 = vmatprep.subr.mxu0 0.0
    %1965 = vmatpush1.msra.mxu0 %v777
    %1966 = vmatprep.subr.mxu0 0.0
    %1967 = vmatpush1.msra.mxu0 %v780
    %1968 = vmatprep.subr.mxu0 0.0
    %1969 = vmatpush1.msra.mxu0 %v783
    %1970 = vmatprep.subr.mxu0 0.0
    %1971 = vmatpush1.msra.mxu0 %v786
    %1972 = vmatprep.subr.mxu0 0.0
    %1973 = vmatpush1.msra.mxu0 %v789
    %1974 = vmatprep.subr.mxu0 0.0
    %1975 = vmatpush1.msra.mxu0 %v792
    %1976 = vmatprep.subr.mxu0 0.0
    %1977 = vmatpush1.msra.mxu0 %v795
    %1978 = vmatprep.subr.mxu0 0.0
    %1979 = vmatpush1.msra.mxu0 %v798
    %1980 = vmatprep.subr.mxu0 0.0
    %1981 = vmatpush1.msra.mxu0 %v801
    %1982 = vmatprep.subr.mxu0 0.0
    %1983 = vmatpush1.msra.mxu0 0.0
    %1984 = vmatprep.subr.mxu0 0.0
    %1985 = vmatpush1.msra.mxu0 0.0
    %1986 = vmatprep.subr.mxu0 0.0
    %1987 = vmatpush1.msra.mxu0 0.0
    %1988 = vmatprep.subr.mxu0 0.0
    %1989 = vmatpush1.msra.mxu0 0.0
    %1990 = vmatprep.subr.mxu0 0.0
    %1991 = vmatpush1.msra.mxu0 0.0
    %1992 = vmatprep.subr.mxu0 0.0
    %1993 = vmatpush1.msra.mxu0 0.0
    %1994 = vmatprep.subr.mxu0 0.0
    %1995 = vmatpush1.msra.mxu0 0.0
    %1996 = vmatprep.subr.mxu0 0.0
    %1997 = vmatpush1.msra.mxu0 0.0
    %1998 = vmatprep.subr.mxu0 0.0
    %1999 = vmatpush1.msra.mxu0 0.0
    %2000 = vmatprep.subr.mxu0 0.0
    %2001 = vmatpush1.msra.mxu0 0.0
    %2002 = vmatprep.subr.mxu0 0.0
    %2003 = vmatpush1.msra.mxu0 0.0
    %2004 = vmatprep.subr.mxu0 0.0
    %2005 = vmatpush1.msra.mxu0 0.0
    %2006 = vmatprep.subr.mxu0 0.0
    %2007 = vmatpush1.msra.mxu0 0.0
    %2008 = vmatprep.subr.mxu0 0.0
    %2009 = vmatpush1.msra.mxu0 0.0
    %2010 = vmatprep.subr.mxu0 0.0
    %2011 = vmatpush1.msra.mxu0 0.0
    %2012 = vmatprep.subr.mxu0 0.0
    %2013 = vmatpush1.msra.mxu0 0.0
    %2014 = vmatprep.mubr.f32.mxu0 0.0
    %2015 = vmatmul.mubr.f32.gmra.mrb[0].mxu0 %v1685
    %v2016 = vpop.f32.mrb[0].mxu0
    %v2017 = vadd.f32 %v814, %v2016
    %v2018 = vpop.f32.mrb[0].mxu0
    %2019 = vdwg.mxu0
    %v2020 = vadd.f32 %v1715, %v1946
    %v2021 = vxor.u32 %v2020, 2147483648
    %v2022 = vmul.f32 %v2021, 1.442695
    %v2023 = vpow.pop %v2022
    %v2024 = vadd.f32 %v2023, 1.0
    %v2025 = vrcp.pop %v2024
    %v2026 = vmul.f32 1.0, %v2025
    %v2027 = vadd.f32 %v1716, %v1948
    %v2028 = vxor.u32 %v2027, 2147483648
    %v2029 = vmul.f32 %v2028, 1.442695
    %v2030 = vpow.pop %v2029
    %v2031 = vadd.f32 %v2030, 1.0
    %v2032 = vrcp.pop %v2031
    %v2033 = vmul.f32 1.0, %v2032
    %v2034 = vmul.f32 %v2026, %v2017
    %v2035 = vadd.f32 %v1717, %v2034
    %v2036 = vtanh.pop %v2035
    %v2037 = vsub.f32 %v1685, %v2036
    %v2038 = vmul.f32 %v2033, %v2037
    %v2039 = vadd.f32 %v2036, %v2038
    %vm2040 = vcmp.ge.f32.partialorder %v1878, 0.0
    %v2041 = vmul.f32 %v1878, 0.2
    %v2042 = vsel %vm2040, %v1878, %v2041
    %s2043 = scalar_lea.vmem %s5, 3
    %v2044 = vld [vmem:[%s2043] sm:$0x1]
    %v2046 = vlaneseq
    %v2047 = vshrl.u32 %v2046, 7
    %v2048 = vsub.s32 0, %v2047
    %v2049 = vrot.slane %v2044, %v2048
    %v2051 = vmul.f32 %v2042, %v2049
    %v2052 = vadd.f32 %v1711, %v2051
    %vm2053 = vcmp.ge.f32.partialorder %v2039, 0.0
    %v2054 = vmul.f32 %v2039, 0.2
    %v2055 = vsel %vm2053, %v2039, %v2054
    %s2056 = scalar_lea.vmem %s6, 4
    %v2057 = vld [vmem:[%s2056] sm:$0x1]
    %v2059 = vlaneseq
    %v2060 = vshrl.u32 %v2059, 7
    %v2061 = vsub.s32 0, %v2060
    %v2062 = vrot.slane %v2057, %v2061
    %v2064 = vmul.f32 %v2055, %v2062
    %v2065 = vadd.f32 %v2052, %v2064
    %v2066 = vld [vmem:[#allocation2 + $0xc0] sm:$0xff]
    %v2067 = vld [vmem:[#allocation2 + $0xc8] sm:$0xff]
    %v2068 = vld [vmem:[#allocation2 + $0xd0] sm:$0xff]
    %v2069 = vld [vmem:[#allocation2 + $0xa8] sm:$0xff]
    %v2070 = vld [vmem:[#allocation2 + $0xb0] sm:$0xff]
    %v2071 = vld [vmem:[#allocation2 + $0xb8] sm:$0xff]
    %2072 = vmatprep.subr.mxu0 %v529
    %2073 = vmatpush1.msra.mxu0 %v528
    %2074 = vmatprep.subr.mxu0 %v532
    %2075 = vmatpush1.msra.mxu0 %v531
    %2076 = vmatprep.subr.mxu0 %v535
    %2077 = vmatpush1.msra.mxu0 %v534
    %2078 = vmatprep.subr.mxu0 %v538
    %2079 = vmatpush1.msra.mxu0 %v537
    %2080 = vmatprep.subr.mxu0 %v541
    %2081 = vmatpush1.msra.mxu0 %v540
    %2082 = vmatprep.subr.mxu0 %v544
    %2083 = vmatpush1.msra.mxu0 %v543
    %2084 = vmatprep.subr.mxu0 %v547
    %2085 = vmatpush1.msra.mxu0 %v546
    %2086 = vmatprep.subr.mxu0 %v550
    %2087 = vmatpush1.msra.mxu0 %v549
    %2088 = vmatprep.subr.mxu0 %v553
    %2089 = vmatpush1.msra.mxu0 %v552
    %2090 = vmatprep.subr.mxu0 %v556
    %2091 = vmatpush1.msra.mxu0 %v555
    %2092 = vmatprep.subr.mxu0 %v559
    %2093 = vmatpush1.msra.mxu0 %v558
    %2094 = vmatprep.subr.mxu0 %v562
    %2095 = vmatpush1.msra.mxu0 %v561
    %2096 = vmatprep.subr.mxu0 %v565
    %2097 = vmatpush1.msra.mxu0 %v564
    %2098 = vmatprep.subr.mxu0 %v568
    %2099 = vmatpush1.msra.mxu0 %v567
    %2100 = vmatprep.subr.mxu0 %v571
    %2101 = vmatpush1.msra.mxu0 %v570
    %2102 = vmatprep.subr.mxu0 %v574
    %2103 = vmatpush1.msra.mxu0 %v573
    %2104 = vmatprep.subr.mxu0 0.0
    %2105 = vmatpush1.msra.mxu0 0.0
    %2106 = vmatprep.subr.mxu0 0.0
    %2107 = vmatpush1.msra.mxu0 0.0
    %2108 = vmatprep.subr.mxu0 0.0
    %2109 = vmatpush1.msra.mxu0 0.0
    %2110 = vmatprep.subr.mxu0 0.0
    %2111 = vmatpush1.msra.mxu0 0.0
    %2112 = vmatprep.subr.mxu0 0.0
    %2113 = vmatpush1.msra.mxu0 0.0
    %2114 = vmatprep.subr.mxu0 0.0
    %2115 = vmatpush1.msra.mxu0 0.0
    %2116 = vmatprep.subr.mxu0 0.0
    %2117 = vmatpush1.msra.mxu0 0.0
    %2118 = vmatprep.subr.mxu0 0.0
    %2119 = vmatpush1.msra.mxu0 0.0
    %2120 = vmatprep.subr.mxu0 0.0
    %2121 = vmatpush1.msra.mxu0 0.0
    %2122 = vmatprep.subr.mxu0 0.0
    %2123 = vmatpush1.msra.mxu0 0.0
    %2124 = vmatprep.subr.mxu0 0.0
    %2125 = vmatpush1.msra.mxu0 0.0
    %2126 = vmatprep.subr.mxu0 0.0
    %2127 = vmatpush1.msra.mxu0 0.0
    %2128 = vmatprep.subr.mxu0 0.0
    %2129 = vmatpush1.msra.mxu0 0.0
    %2130 = vmatprep.subr.mxu0 0.0
    %2131 = vmatpush1.msra.mxu0 0.0
    %2132 = vmatprep.subr.mxu0 0.0
    %2133 = vmatpush1.msra.mxu0 0.0
    %2134 = vmatprep.subr.mxu0 0.0
    %2135 = vmatpush1.msra.mxu0 0.0
    %2136 = vmatprep.mubr.f32.mxu0 0.0
    %2137 = vmatmul.mubr.f32.gmra.mrb[0].mxu0 %v1878
    %v2138 = vpop.f32.mrb[0].mxu0
    %v2139 = vadd.f32 %v580, %v2138
    %v2140 = vpop.f32.mrb[0].mxu0
    %v2141 = vadd.f32 %v584, %v2140
    %2142 = vdwg.mxu0
    %2143 = vmatprep.subr.mxu0 0.0
    %2144 = vmatpush1.msra.mxu0 %v530
    %2145 = vmatprep.subr.mxu0 0.0
    %2146 = vmatpush1.msra.mxu0 %v533
    %2147 = vmatprep.subr.mxu0 0.0
    %2148 = vmatpush1.msra.mxu0 %v536
    %2149 = vmatprep.subr.mxu0 0.0
    %2150 = vmatpush1.msra.mxu0 %v539
    %2151 = vmatprep.subr.mxu0 0.0
    %2152 = vmatpush1.msra.mxu0 %v542
    %2153 = vmatprep.subr.mxu0 0.0
    %2154 = vmatpush1.msra.mxu0 %v545
    %2155 = vmatprep.subr.mxu0 0.0
    %2156 = vmatpush1.msra.mxu0 %v548
    %2157 = vmatprep.subr.mxu0 0.0
    %2158 = vmatpush1.msra.mxu0 %v551
    %2159 = vmatprep.subr.mxu0 0.0
    %2160 = vmatpush1.msra.mxu0 %v554
    %2161 = vmatprep.subr.mxu0 0.0
    %2162 = vmatpush1.msra.mxu0 %v557
    %2163 = vmatprep.subr.mxu0 0.0
    %2164 = vmatpush1.msra.mxu0 %v560
    %2165 = vmatprep.subr.mxu0 0.0
    %2166 = vmatpush1.msra.mxu0 %v563
    %2167 = vmatprep.subr.mxu0 0.0
    %2168 = vmatpush1.msra.mxu0 %v566
    %2169 = vmatprep.subr.mxu0 0.0
    %2170 = vmatpush1.msra.mxu0 %v569
    %2171 = vmatprep.subr.mxu0 0.0
    %2172 = vmatpush1.msra.mxu0 %v572
    %2173 = vmatprep.subr.mxu0 0.0
    %2174 = vmatpush1.msra.mxu0 %v575
    %2175 = vmatprep.subr.mxu0 0.0
    %2176 = vmatpush1.msra.mxu0 0.0
    %2177 = vmatprep.subr.mxu0 0.0
    %2178 = vmatpush1.msra.mxu0 0.0
    %2179 = vmatprep.subr.mxu0 0.0
    %2180 = vmatpush1.msra.mxu0 0.0
    %2181 = vmatprep.subr.mxu0 0.0
    %2182 = vmatpush1.msra.mxu0 0.0
    %2183 = vmatprep.subr.mxu0 0.0
    %2184 = vmatpush1.msra.mxu0 0.0
    %2185 = vmatprep.subr.mxu0 0.0
    %2186 = vmatpush1.msra.mxu0 0.0
    %2187 = vmatprep.subr.mxu0 0.0
    %2188 = vmatpush1.msra.mxu0 0.0
    %2189 = vmatprep.subr.mxu0 0.0
    %2190 = vmatpush1.msra.mxu0 0.0
    %2191 = vmatprep.subr.mxu0 0.0
    %2192 = vmatpush1.msra.mxu0 0.0
    %2193 = vmatprep.subr.mxu0 0.0
    %2194 = vmatpush1.msra.mxu0 0.0
    %2195 = vmatprep.subr.mxu0 0.0
    %2196 = vmatpush1.msra.mxu0 0.0
    %2197 = vmatprep.subr.mxu0 0.0
    %2198 = vmatpush1.msra.mxu0 0.0
    %2199 = vmatprep.subr.mxu0 0.0
    %2200 = vmatpush1.msra.mxu0 0.0
    %2201 = vmatprep.subr.mxu0 0.0
    %2202 = vmatpush1.msra.mxu0 0.0
    %2203 = vmatprep.subr.mxu0 0.0
    %2204 = vmatpush1.msra.mxu0 0.0
    %2205 = vmatprep.subr.mxu0 0.0
    %2206 = vmatpush1.msra.mxu0 0.0
    %2207 = vmatprep.mubr.f32.mxu0 0.0
    %2208 = vmatmul.mubr.f32.gmra.mrb[0].mxu0 %v1878
    %v2209 = vpop.f32.mrb[0].mxu0
    %v2210 = vadd.f32 %v588, %v2209
    %v2211 = vpop.f32.mrb[0].mxu0
    %2212 = vdwg.mxu0
    %v2213 = vadd.f32 %v2066, %v2139
    %v2214 = vxor.u32 %v2213, 2147483648
    %v2215 = vmul.f32 %v2214, 1.442695
    %v2216 = vpow.pop %v2215
    %v2217 = vadd.f32 %v2216, 1.0
    %v2218 = vrcp.pop %v2217
    %v2219 = vmul.f32 1.0, %v2218
    %v2220 = vadd.f32 %v2067, %v2141
    %v2221 = vxor.u32 %v2220, 2147483648
    %v2222 = vmul.f32 %v2221, 1.442695
    %v2223 = vpow.pop %v2222
    %v2224 = vadd.f32 %v2223, 1.0
    %v2225 = vrcp.pop %v2224
    %v2226 = vmul.f32 1.0, %v2225
    %v2227 = vmul.f32 %v2219, %v2210
    %v2228 = vadd.f32 %v2068, %v2227
    %v2229 = vtanh.pop %v2228
    %v2230 = vsub.f32 %v1878, %v2229
    %v2231 = vmul.f32 %v2226, %v2230
    %v2232 = vadd.f32 %v2229, %v2231
    %2233 = vmatprep.subr.mxu0 %v755
    %2234 = vmatpush1.msra.mxu0 %v754
    %2235 = vmatprep.subr.mxu0 %v758
    %2236 = vmatpush1.msra.mxu0 %v757
    %2237 = vmatprep.subr.mxu0 %v761
    %2238 = vmatpush1.msra.mxu0 %v760
    %2239 = vmatprep.subr.mxu0 %v764
    %2240 = vmatpush1.msra.mxu0 %v763
    %2241 = vmatprep.subr.mxu0 %v767
    %2242 = vmatpush1.msra.mxu0 %v766
    %2243 = vmatprep.subr.mxu0 %v770
    %2244 = vmatpush1.msra.mxu0 %v769
    %2245 = vmatprep.subr.mxu0 %v773
    %2246 = vmatpush1.msra.mxu0 %v772
    %2247 = vmatprep.subr.mxu0 %v776
    %2248 = vmatpush1.msra.mxu0 %v775
    %2249 = vmatprep.subr.mxu0 %v779
    %2250 = vmatpush1.msra.mxu0 %v778
    %2251 = vmatprep.subr.mxu0 %v782
    %2252 = vmatpush1.msra.mxu0 %v781
    %2253 = vmatprep.subr.mxu0 %v785
    %2254 = vmatpush1.msra.mxu0 %v784
    %2255 = vmatprep.subr.mxu0 %v788
    %2256 = vmatpush1.msra.mxu0 %v787
    %2257 = vmatprep.subr.mxu0 %v791
    %2258 = vmatpush1.msra.mxu0 %v790
    %2259 = vmatprep.subr.mxu0 %v794
    %2260 = vmatpush1.msra.mxu0 %v793
    %2261 = vmatprep.subr.mxu0 %v797
    %2262 = vmatpush1.msra.mxu0 %v796
    %2263 = vmatprep.subr.mxu0 %v800
    %2264 = vmatpush1.msra.mxu0 %v799
    %2265 = vmatprep.subr.mxu0 0.0
    %2266 = vmatpush1.msra.mxu0 0.0
    %2267 = vmatprep.subr.mxu0 0.0
    %2268 = vmatpush1.msra.mxu0 0.0
    %2269 = vmatprep.subr.mxu0 0.0
    %2270 = vmatpush1.msra.mxu0 0.0
    %2271 = vmatprep.subr.mxu0 0.0
    %2272 = vmatpush1.msra.mxu0 0.0
    %2273 = vmatprep.subr.mxu0 0.0
    %2274 = vmatpush1.msra.mxu0 0.0
    %2275 = vmatprep.subr.mxu0 0.0
    %2276 = vmatpush1.msra.mxu0 0.0
    %2277 = vmatprep.subr.mxu0 0.0
    %2278 = vmatpush1.msra.mxu0 0.0
    %2279 = vmatprep.subr.mxu0 0.0
    %2280 = vmatpush1.msra.mxu0 0.0
    %2281 = vmatprep.subr.mxu0 0.0
    %2282 = vmatpush1.msra.mxu0 0.0
    %2283 = vmatprep.subr.mxu0 0.0
    %2284 = vmatpush1.msra.mxu0 0.0
    %2285 = vmatprep.subr.mxu0 0.0
    %2286 = vmatpush1.msra.mxu0 0.0
    %2287 = vmatprep.subr.mxu0 0.0
    %2288 = vmatpush1.msra.mxu0 0.0
    %2289 = vmatprep.subr.mxu0 0.0
    %2290 = vmatpush1.msra.mxu0 0.0
    %2291 = vmatprep.subr.mxu0 0.0
    %2292 = vmatpush1.msra.mxu0 0.0
    %2293 = vmatprep.subr.mxu0 0.0
    %2294 = vmatpush1.msra.mxu0 0.0
    %2295 = vmatprep.subr.mxu0 0.0
    %2296 = vmatpush1.msra.mxu0 0.0
    %2297 = vmatprep.mubr.f32.mxu0 0.0
    %2298 = vmatmul.mubr.f32.gmra.mrb[0].mxu0 %v2039
    %v2299 = vpop.f32.mrb[0].mxu0
    %v2300 = vadd.f32 %v806, %v2299
    %v2301 = vpop.f32.mrb[0].mxu0
    %v2302 = vadd.f32 %v810, %v2301
    %2303 = vdwg.mxu0
    %2304 = vmatprep.subr.mxu0 0.0
    %2305 = vmatpush1.msra.mxu0 %v756
    %2306 = vmatprep.subr.mxu0 0.0
    %2307 = vmatpush1.msra.mxu0 %v759
    %2308 = vmatprep.subr.mxu0 0.0
    %2309 = vmatpush1.msra.mxu0 %v762
    %2310 = vmatprep.subr.mxu0 0.0
    %2311 = vmatpush1.msra.mxu0 %v765
    %2312 = vmatprep.subr.mxu0 0.0
    %2313 = vmatpush1.msra.mxu0 %v768
    %2314 = vmatprep.subr.mxu0 0.0
    %2315 = vmatpush1.msra.mxu0 %v771
    %2316 = vmatprep.subr.mxu0 0.0
    %2317 = vmatpush1.msra.mxu0 %v774
    %2318 = vmatprep.subr.mxu0 0.0
    %2319 = vmatpush1.msra.mxu0 %v777
    %2320 = vmatprep.subr.mxu0 0.0
    %2321 = vmatpush1.msra.mxu0 %v780
    %2322 = vmatprep.subr.mxu0 0.0
    %2323 = vmatpush1.msra.mxu0 %v783
    %2324 = vmatprep.subr.mxu0 0.0
    %2325 = vmatpush1.msra.mxu0 %v786
    %2326 = vmatprep.subr.mxu0 0.0
    %2327 = vmatpush1.msra.mxu0 %v789
    %2328 = vmatprep.subr.mxu0 0.0
    %2329 = vmatpush1.msra.mxu0 %v792
    %2330 = vmatprep.subr.mxu0 0.0
    %2331 = vmatpush1.msra.mxu0 %v795
    %2332 = vmatprep.subr.mxu0 0.0
    %2333 = vmatpush1.msra.mxu0 %v798
    %2334 = vmatprep.subr.mxu0 0.0
    %2335 = vmatpush1.msra.mxu0 %v801
    %2336 = vmatprep.subr.mxu0 0.0
    %2337 = vmatpush1.msra.mxu0 0.0
    %2338 = vmatprep.subr.mxu0 0.0
    %2339 = vmatpush1.msra.mxu0 0.0
    %2340 = vmatprep.subr.mxu0 0.0
    %2341 = vmatpush1.msra.mxu0 0.0
    %2342 = vmatprep.subr.mxu0 0.0
    %2343 = vmatpush1.msra.mxu0 0.0
    %2344 = vmatprep.subr.mxu0 0.0
    %2345 = vmatpush1.msra.mxu0 0.0
    %2346 = vmatprep.subr.mxu0 0.0
    %2347 = vmatpush1.msra.mxu0 0.0
    %2348 = vmatprep.subr.mxu0 0.0
    %2349 = vmatpush1.msra.mxu0 0.0
    %2350 = vmatprep.subr.mxu0 0.0
    %2351 = vmatpush1.msra.mxu0 0.0
    %2352 = vmatprep.subr.mxu0 0.0
    %2353 = vmatpush1.msra.mxu0 0.0
    %2354 = vmatprep.subr.mxu0 0.0
    %2355 = vmatpush1.msra.mxu0 0.0
    %2356 = vmatprep.subr.mxu0 0.0
    %2357 = vmatpush1.msra.mxu0 0.0
    %2358 = vmatprep.subr.mxu0 0.0
    %2359 = vmatpush1.msra.mxu0 0.0
    %2360 = vmatprep.subr.mxu0 0.0
    %2361 = vmatpush1.msra.mxu0 0.0
    %2362 = vmatprep.subr.mxu0 0.0
    %2363 = vmatpush1.msra.mxu0 0.0
    %2364 = vmatprep.subr.mxu0 0.0
    %2365 = vmatpush1.msra.mxu0 0.0
    %2366 = vmatprep.subr.mxu0 0.0
    %2367 = vmatpush1.msra.mxu0 0.0
    %2368 = vmatprep.mubr.f32.mxu0 0.0
    %2369 = vmatmul.mubr.f32.gmra.mrb[0].mxu0 %v2039
    %v2370 = vpop.f32.mrb[0].mxu0
    %v2371 = vadd.f32 %v814, %v2370
    %v2372 = vpop.f32.mrb[0].mxu0
    %2373 = vdwg.mxu0
    %v2374 = vadd.f32 %v2069, %v2300
    %v2375 = vxor.u32 %v2374, 2147483648
    %v2376 = vmul.f32 %v2375, 1.442695
    %v2377 = vpow.pop %v2376
    %v2378 = vadd.f32 %v2377, 1.0
    %v2379 = vrcp.pop %v2378
    %v2380 = vmul.f32 1.0, %v2379
    %v2381 = vadd.f32 %v2070, %v2302
    %v2382 = vxor.u32 %v2381, 2147483648
    %v2383 = vmul.f32 %v2382, 1.442695
    %v2384 = vpow.pop %v2383
    %v2385 = vadd.f32 %v2384, 1.0
    %v2386 = vrcp.pop %v2385
    %v2387 = vmul.f32 1.0, %v2386
    %v2388 = vmul.f32 %v2380, %v2371
    %v2389 = vadd.f32 %v2071, %v2388
    %v2390 = vtanh.pop %v2389
    %v2391 = vsub.f32 %v2039, %v2390
    %v2392 = vmul.f32 %v2387, %v2391
    %v2393 = vadd.f32 %v2390, %v2392
    %vm2394 = vcmp.ge.f32.partialorder %v2232, 0.0
    %v2395 = vmul.f32 %v2232, 0.2
    %v2396 = vsel %vm2394, %v2232, %v2395
    %s2397 = scalar_lea.vmem %s5, 4
    %v2398 = vld [vmem:[%s2397] sm:$0x1]
    %v2400 = vlaneseq
    %v2401 = vshrl.u32 %v2400, 7
    %v2402 = vsub.s32 0, %v2401
    %v2403 = vrot.slane %v2398, %v2402
    %v2405 = vmul.f32 %v2396, %v2403
    %v2406 = vadd.f32 %v2065, %v2405
    %vm2407 = vcmp.ge.f32.partialorder %v2393, 0.0
    %v2408 = vmul.f32 %v2393, 0.2
    %v2409 = vsel %vm2407, %v2393, %v2408
    %s2410 = scalar_lea.vmem %s6, 3
    %v2411 = vld [vmem:[%s2410] sm:$0x1]
    %v2413 = vlaneseq
    %v2414 = vshrl.u32 %v2413, 7
    %v2415 = vsub.s32 0, %v2414
    %v2416 = vrot.slane %v2411, %v2415
    %v2418 = vmul.f32 %v2409, %v2416
    %v2419 = vadd.f32 %v2406, %v2418
    %v2420 = vld [vmem:[#allocation2 + $0xf0] sm:$0xff]
    %v2421 = vld [vmem:[#allocation2 + $0xf8] sm:$0xff]
    %v2422 = vld [vmem:[#allocation2 + $0x100] sm:$0xff]
    %v2423 = vld [vmem:[#allocation2 + $0x78] sm:$0xff]
    %v2424 = vld [vmem:[#allocation2 + $0x80] sm:$0xff]
    %v2425 = vld [vmem:[#allocation2 + $0x88] sm:$0xff]
    %2426 = vmatprep.subr.mxu0 %v529
    %2427 = vmatpush1.msra.mxu0 %v528
    %2428 = vmatprep.subr.mxu0 %v532
    %2429 = vmatpush1.msra.mxu0 %v531
    %2430 = vmatprep.subr.mxu0 %v535
    %2431 = vmatpush1.msra.mxu0 %v534
    %2432 = vmatprep.subr.mxu0 %v538
    %2433 = vmatpush1.msra.mxu0 %v537
    %2434 = vmatprep.subr.mxu0 %v541
    %2435 = vmatpush1.msra.mxu0 %v540
    %2436 = vmatprep.subr.mxu0 %v544
    %2437 = vmatpush1.msra.mxu0 %v543
    %2438 = vmatprep.subr.mxu0 %v547
    %2439 = vmatpush1.msra.mxu0 %v546
    %2440 = vmatprep.subr.mxu0 %v550
    %2441 = vmatpush1.msra.mxu0 %v549
    %2442 = vmatprep.subr.mxu0 %v553
    %2443 = vmatpush1.msra.mxu0 %v552
    %2444 = vmatprep.subr.mxu0 %v556
    %2445 = vmatpush1.msra.mxu0 %v555
    %2446 = vmatprep.subr.mxu0 %v559
    %2447 = vmatpush1.msra.mxu0 %v558
    %2448 = vmatprep.subr.mxu0 %v562
    %2449 = vmatpush1.msra.mxu0 %v561
    %2450 = vmatprep.subr.mxu0 %v565
    %2451 = vmatpush1.msra.mxu0 %v564
    %2452 = vmatprep.subr.mxu0 %v568
    %2453 = vmatpush1.msra.mxu0 %v567
    %2454 = vmatprep.subr.mxu0 %v571
    %2455 = vmatpush1.msra.mxu0 %v570
    %2456 = vmatprep.subr.mxu0 %v574
    %2457 = vmatpush1.msra.mxu0 %v573
    %2458 = vmatprep.subr.mxu0 0.0
    %2459 = vmatpush1.msra.mxu0 0.0
    %2460 = vmatprep.subr.mxu0 0.0
    %2461 = vmatpush1.msra.mxu0 0.0
    %2462 = vmatprep.subr.mxu0 0.0
    %2463 = vmatpush1.msra.mxu0 0.0
    %2464 = vmatprep.subr.mxu0 0.0
    %2465 = vmatpush1.msra.mxu0 0.0
    %2466 = vmatprep.subr.mxu0 0.0
    %2467 = vmatpush1.msra.mxu0 0.0
    %2468 = vmatprep.subr.mxu0 0.0
    %2469 = vmatpush1.msra.mxu0 0.0
    %2470 = vmatprep.subr.mxu0 0.0
    %2471 = vmatpush1.msra.mxu0 0.0
    %2472 = vmatprep.subr.mxu0 0.0
    %2473 = vmatpush1.msra.mxu0 0.0
    %2474 = vmatprep.subr.mxu0 0.0
    %2475 = vmatpush1.msra.mxu0 0.0
    %2476 = vmatprep.subr.mxu0 0.0
    %2477 = vmatpush1.msra.mxu0 0.0
    %2478 = vmatprep.subr.mxu0 0.0
    %2479 = vmatpush1.msra.mxu0 0.0
    %2480 = vmatprep.subr.mxu0 0.0
    %2481 = vmatpush1.msra.mxu0 0.0
    %2482 = vmatprep.subr.mxu0 0.0
    %2483 = vmatpush1.msra.mxu0 0.0
    %2484 = vmatprep.subr.mxu0 0.0
    %2485 = vmatpush1.msra.mxu0 0.0
    %2486 = vmatprep.subr.mxu0 0.0
    %2487 = vmatpush1.msra.mxu0 0.0
    %2488 = vmatprep.subr.mxu0 0.0
    %2489 = vmatpush1.msra.mxu0 0.0
    %2490 = vmatprep.mubr.f32.mxu0 0.0
    %2491 = vmatmul.mubr.f32.gmra.mrb[0].mxu0 %v2232
    %v2492 = vpop.f32.mrb[0].mxu0
    %v2493 = vadd.f32 %v580, %v2492
    %v2494 = vpop.f32.mrb[0].mxu0
    %v2495 = vadd.f32 %v584, %v2494
    %2496 = vdwg.mxu0
    %2497 = vmatprep.subr.mxu0 0.0
    %2498 = vmatpush1.msra.mxu0 %v530
    %2499 = vmatprep.subr.mxu0 0.0
    %2500 = vmatpush1.msra.mxu0 %v533
    %2501 = vmatprep.subr.mxu0 0.0
    %2502 = vmatpush1.msra.mxu0 %v536
    %2503 = vmatprep.subr.mxu0 0.0
    %2504 = vmatpush1.msra.mxu0 %v539
    %2505 = vmatprep.subr.mxu0 0.0
    %2506 = vmatpush1.msra.mxu0 %v542
    %2507 = vmatprep.subr.mxu0 0.0
    %2508 = vmatpush1.msra.mxu0 %v545
    %2509 = vmatprep.subr.mxu0 0.0
    %2510 = vmatpush1.msra.mxu0 %v548
    %2511 = vmatprep.subr.mxu0 0.0
    %2512 = vmatpush1.msra.mxu0 %v551
    %2513 = vmatprep.subr.mxu0 0.0
    %2514 = vmatpush1.msra.mxu0 %v554
    %2515 = vmatprep.subr.mxu0 0.0
    %2516 = vmatpush1.msra.mxu0 %v557
    %2517 = vmatprep.subr.mxu0 0.0
    %2518 = vmatpush1.msra.mxu0 %v560
    %2519 = vmatprep.subr.mxu0 0.0
    %2520 = vmatpush1.msra.mxu0 %v563
    %2521 = vmatprep.subr.mxu0 0.0
    %2522 = vmatpush1.msra.mxu0 %v566
    %2523 = vmatprep.subr.mxu0 0.0
    %2524 = vmatpush1.msra.mxu0 %v569
    %2525 = vmatprep.subr.mxu0 0.0
    %2526 = vmatpush1.msra.mxu0 %v572
    %2527 = vmatprep.subr.mxu0 0.0
    %2528 = vmatpush1.msra.mxu0 %v575
    %2529 = vmatprep.subr.mxu0 0.0
    %2530 = vmatpush1.msra.mxu0 0.0
    %2531 = vmatprep.subr.mxu0 0.0
    %2532 = vmatpush1.msra.mxu0 0.0
    %2533 = vmatprep.subr.mxu0 0.0
    %2534 = vmatpush1.msra.mxu0 0.0
    %2535 = vmatprep.subr.mxu0 0.0
    %2536 = vmatpush1.msra.mxu0 0.0
    %2537 = vmatprep.subr.mxu0 0.0
    %2538 = vmatpush1.msra.mxu0 0.0
    %2539 = vmatprep.subr.mxu0 0.0
    %2540 = vmatpush1.msra.mxu0 0.0
    %2541 = vmatprep.subr.mxu0 0.0
    %2542 = vmatpush1.msra.mxu0 0.0
    %2543 = vmatprep.subr.mxu0 0.0
    %2544 = vmatpush1.msra.mxu0 0.0
    %2545 = vmatprep.subr.mxu0 0.0
    %2546 = vmatpush1.msra.mxu0 0.0
    %2547 = vmatprep.subr.mxu0 0.0
    %2548 = vmatpush1.msra.mxu0 0.0
    %2549 = vmatprep.subr.mxu0 0.0
    %2550 = vmatpush1.msra.mxu0 0.0
    %2551 = vmatprep.subr.mxu0 0.0
    %2552 = vmatpush1.msra.mxu0 0.0
    %2553 = vmatprep.subr.mxu0 0.0
    %2554 = vmatpush1.msra.mxu0 0.0
    %2555 = vmatprep.subr.mxu0 0.0
    %2556 = vmatpush1.msra.mxu0 0.0
    %2557 = vmatprep.subr.mxu0 0.0
    %2558 = vmatpush1.msra.mxu0 0.0
    %2559 = vmatprep.subr.mxu0 0.0
    %2560 = vmatpush1.msra.mxu0 0.0
    %2561 = vmatprep.mubr.f32.mxu0 0.0
    %2562 = vmatmul.mubr.f32.gmra.mrb[0].mxu0 %v2232
    %v2563 = vpop.f32.mrb[0].mxu0
    %v2564 = vadd.f32 %v588, %v2563
    %v2565 = vpop.f32.mrb[0].mxu0
    %2566 = vdwg.mxu0
    %v2567 = vadd.f32 %v2420, %v2493
    %v2568 = vxor.u32 %v2567, 2147483648
    %v2569 = vmul.f32 %v2568, 1.442695
    %v2570 = vpow.pop %v2569
    %v2571 = vadd.f32 %v2570, 1.0
    %v2572 = vrcp.pop %v2571
    %v2573 = vmul.f32 1.0, %v2572
    %v2574 = vadd.f32 %v2421, %v2495
    %v2575 = vxor.u32 %v2574, 2147483648
    %v2576 = vmul.f32 %v2575, 1.442695
    %v2577 = vpow.pop %v2576
    %v2578 = vadd.f32 %v2577, 1.0
    %v2579 = vrcp.pop %v2578
    %v2580 = vmul.f32 1.0, %v2579
    %v2581 = vmul.f32 %v2573, %v2564
    %v2582 = vadd.f32 %v2422, %v2581
    %v2583 = vtanh.pop %v2582
    %v2584 = vsub.f32 %v2232, %v2583
    %v2585 = vmul.f32 %v2580, %v2584
    %v2586 = vadd.f32 %v2583, %v2585
    %2587 = vmatprep.subr.mxu0 %v755
    %2588 = vmatpush1.msra.mxu0 %v754
    %2589 = vmatprep.subr.mxu0 %v758
    %2590 = vmatpush1.msra.mxu0 %v757
    %2591 = vmatprep.subr.mxu0 %v761
    %2592 = vmatpush1.msra.mxu0 %v760
    %2593 = vmatprep.subr.mxu0 %v764
    %2594 = vmatpush1.msra.mxu0 %v763
    %2595 = vmatprep.subr.mxu0 %v767
    %2596 = vmatpush1.msra.mxu0 %v766
    %2597 = vmatprep.subr.mxu0 %v770
    %2598 = vmatpush1.msra.mxu0 %v769
    %2599 = vmatprep.subr.mxu0 %v773
    %2600 = vmatpush1.msra.mxu0 %v772
    %2601 = vmatprep.subr.mxu0 %v776
    %2602 = vmatpush1.msra.mxu0 %v775
    %2603 = vmatprep.subr.mxu0 %v779
    %2604 = vmatpush1.msra.mxu0 %v778
    %2605 = vmatprep.subr.mxu0 %v782
    %2606 = vmatpush1.msra.mxu0 %v781
    %2607 = vmatprep.subr.mxu0 %v785
    %2608 = vmatpush1.msra.mxu0 %v784
    %2609 = vmatprep.subr.mxu0 %v788
    %2610 = vmatpush1.msra.mxu0 %v787
    %2611 = vmatprep.subr.mxu0 %v791
    %2612 = vmatpush1.msra.mxu0 %v790
    %2613 = vmatprep.subr.mxu0 %v794
    %2614 = vmatpush1.msra.mxu0 %v793
    %2615 = vmatprep.subr.mxu0 %v797
    %2616 = vmatpush1.msra.mxu0 %v796
    %2617 = vmatprep.subr.mxu0 %v800
    %2618 = vmatpush1.msra.mxu0 %v799
    %2619 = vmatprep.subr.mxu0 0.0
    %2620 = vmatpush1.msra.mxu0 0.0
    %2621 = vmatprep.subr.mxu0 0.0
    %2622 = vmatpush1.msra.mxu0 0.0
    %2623 = vmatprep.subr.mxu0 0.0
    %2624 = vmatpush1.msra.mxu0 0.0
    %2625 = vmatprep.subr.mxu0 0.0
    %2626 = vmatpush1.msra.mxu0 0.0
    %2627 = vmatprep.subr.mxu0 0.0
    %2628 = vmatpush1.msra.mxu0 0.0
    %2629 = vmatprep.subr.mxu0 0.0
    %2630 = vmatpush1.msra.mxu0 0.0
    %2631 = vmatprep.subr.mxu0 0.0
    %2632 = vmatpush1.msra.mxu0 0.0
    %2633 = vmatprep.subr.mxu0 0.0
    %2634 = vmatpush1.msra.mxu0 0.0
    %2635 = vmatprep.subr.mxu0 0.0
    %2636 = vmatpush1.msra.mxu0 0.0
    %2637 = vmatprep.subr.mxu0 0.0
    %2638 = vmatpush1.msra.mxu0 0.0
    %2639 = vmatprep.subr.mxu0 0.0
    %2640 = vmatpush1.msra.mxu0 0.0
    %2641 = vmatprep.subr.mxu0 0.0
    %2642 = vmatpush1.msra.mxu0 0.0
    %2643 = vmatprep.subr.mxu0 0.0
    %2644 = vmatpush1.msra.mxu0 0.0
    %2645 = vmatprep.subr.mxu0 0.0
    %2646 = vmatpush1.msra.mxu0 0.0
    %2647 = vmatprep.subr.mxu0 0.0
    %2648 = vmatpush1.msra.mxu0 0.0
    %2649 = vmatprep.subr.mxu0 0.0
    %2650 = vmatpush1.msra.mxu0 0.0
    %2651 = vmatprep.mubr.f32.mxu0 0.0
    %2652 = vmatmul.mubr.f32.gmra.mrb[0].mxu0 %v2393
    %v2653 = vpop.f32.mrb[0].mxu0
    %v2654 = vadd.f32 %v806, %v2653
    %v2655 = vpop.f32.mrb[0].mxu0
    %v2656 = vadd.f32 %v810, %v2655
    %2657 = vdwg.mxu0
    %2658 = vmatprep.subr.mxu0 0.0
    %2659 = vmatpush1.msra.mxu0 %v756
    %2660 = vmatprep.subr.mxu0 0.0
    %2661 = vmatpush1.msra.mxu0 %v759
    %2662 = vmatprep.subr.mxu0 0.0
    %2663 = vmatpush1.msra.mxu0 %v762
    %2664 = vmatprep.subr.mxu0 0.0
    %2665 = vmatpush1.msra.mxu0 %v765
    %2666 = vmatprep.subr.mxu0 0.0
    %2667 = vmatpush1.msra.mxu0 %v768
    %2668 = vmatprep.subr.mxu0 0.0
    %2669 = vmatpush1.msra.mxu0 %v771
    %2670 = vmatprep.subr.mxu0 0.0
    %2671 = vmatpush1.msra.mxu0 %v774
    %2672 = vmatprep.subr.mxu0 0.0
    %2673 = vmatpush1.msra.mxu0 %v777
    %2674 = vmatprep.subr.mxu0 0.0
    %2675 = vmatpush1.msra.mxu0 %v780
    %2676 = vmatprep.subr.mxu0 0.0
    %2677 = vmatpush1.msra.mxu0 %v783
    %2678 = vmatprep.subr.mxu0 0.0
    %2679 = vmatpush1.msra.mxu0 %v786
    %2680 = vmatprep.subr.mxu0 0.0
    %2681 = vmatpush1.msra.mxu0 %v789
    %2682 = vmatprep.subr.mxu0 0.0
    %2683 = vmatpush1.msra.mxu0 %v792
    %2684 = vmatprep.subr.mxu0 0.0
    %2685 = vmatpush1.msra.mxu0 %v795
    %2686 = vmatprep.subr.mxu0 0.0
    %2687 = vmatpush1.msra.mxu0 %v798
    %2688 = vmatprep.subr.mxu0 0.0
    %2689 = vmatpush1.msra.mxu0 %v801
    %2690 = vmatprep.subr.mxu0 0.0
    %2691 = vmatpush1.msra.mxu0 0.0
    %2692 = vmatprep.subr.mxu0 0.0
    %2693 = vmatpush1.msra.mxu0 0.0
    %2694 = vmatprep.subr.mxu0 0.0
    %2695 = vmatpush1.msra.mxu0 0.0
    %2696 = vmatprep.subr.mxu0 0.0
    %2697 = vmatpush1.msra.mxu0 0.0
    %2698 = vmatprep.subr.mxu0 0.0
    %2699 = vmatpush1.msra.mxu0 0.0
    %2700 = vmatprep.subr.mxu0 0.0
    %2701 = vmatpush1.msra.mxu0 0.0
    %2702 = vmatprep.subr.mxu0 0.0
    %2703 = vmatpush1.msra.mxu0 0.0
    %2704 = vmatprep.subr.mxu0 0.0
    %2705 = vmatpush1.msra.mxu0 0.0
    %2706 = vmatprep.subr.mxu0 0.0
    %2707 = vmatpush1.msra.mxu0 0.0
    %2708 = vmatprep.subr.mxu0 0.0
    %2709 = vmatpush1.msra.mxu0 0.0
    %2710 = vmatprep.subr.mxu0 0.0
    %2711 = vmatpush1.msra.mxu0 0.0
    %2712 = vmatprep.subr.mxu0 0.0
    %2713 = vmatpush1.msra.mxu0 0.0
    %2714 = vmatprep.subr.mxu0 0.0
    %2715 = vmatpush1.msra.mxu0 0.0
    %2716 = vmatprep.subr.mxu0 0.0
    %2717 = vmatpush1.msra.mxu0 0.0
    %2718 = vmatprep.subr.mxu0 0.0
    %2719 = vmatpush1.msra.mxu0 0.0
    %2720 = vmatprep.subr.mxu0 0.0
    %2721 = vmatpush1.msra.mxu0 0.0
    %2722 = vmatprep.mubr.f32.mxu0 0.0
    %2723 = vmatmul.mubr.f32.gmra.mrb[0].mxu0 %v2393
    %v2724 = vpop.f32.mrb[0].mxu0
    %v2725 = vadd.f32 %v814, %v2724
    %v2726 = vpop.f32.mrb[0].mxu0
    %2727 = vdwg.mxu0
    %v2728 = vadd.f32 %v2423, %v2654
    %v2729 = vxor.u32 %v2728, 2147483648
    %v2730 = vmul.f32 %v2729, 1.442695
    %v2731 = vpow.pop %v2730
    %v2732 = vadd.f32 %v2731, 1.0
    %v2733 = vrcp.pop %v2732
    %v2734 = vmul.f32 1.0, %v2733
    %v2735 = vadd.f32 %v2424, %v2656
    %v2736 = vxor.u32 %v2735, 2147483648
    %v2737 = vmul.f32 %v2736, 1.442695
    %v2738 = vpow.pop %v2737
    %v2739 = vadd.f32 %v2738, 1.0
    %v2740 = vrcp.pop %v2739
    %v2741 = vmul.f32 1.0, %v2740
    %v2742 = vmul.f32 %v2734, %v2725
    %v2743 = vadd.f32 %v2425, %v2742
    %v2744 = vtanh.pop %v2743
    %v2745 = vsub.f32 %v2393, %v2744
    %v2746 = vmul.f32 %v2741, %v2745
    %v2747 = vadd.f32 %v2744, %v2746
    %vm2748 = vcmp.ge.f32.partialorder %v2586, 0.0
    %v2749 = vmul.f32 %v2586, 0.2
    %v2750 = vsel %vm2748, %v2586, %v2749
    %s2751 = scalar_lea.vmem %s5, 5
    %v2752 = vld [vmem:[%s2751] sm:$0x1]
    %v2754 = vlaneseq
    %v2755 = vshrl.u32 %v2754, 7
    %v2756 = vsub.s32 0, %v2755
    %v2757 = vrot.slane %v2752, %v2756
    %v2759 = vmul.f32 %v2750, %v2757
    %v2760 = vadd.f32 %v2419, %v2759
    %vm2761 = vcmp.ge.f32.partialorder %v2747, 0.0
    %v2762 = vmul.f32 %v2747, 0.2
    %v2763 = vsel %vm2761, %v2747, %v2762
    %s2764 = scalar_lea.vmem %s6, 2
    %v2765 = vld [vmem:[%s2764] sm:$0x1]
    %v2767 = vlaneseq
    %v2768 = vshrl.u32 %v2767, 7
    %v2769 = vsub.s32 0, %v2768
    %v2770 = vrot.slane %v2765, %v2769
    %v2772 = vmul.f32 %v2763, %v2770
    %v2773 = vadd.f32 %v2760, %v2772
    %v2774 = vld [vmem:[#allocation2 + $0x120] sm:$0xff]
    %v2775 = vld [vmem:[#allocation2 + $0x128] sm:$0xff]
    %v2776 = vld [vmem:[#allocation2 + $0x130] sm:$0xff]
    %v2777 = vld [vmem:[#allocation2 + $0x48] sm:$0xff]
    %v2778 = vld [vmem:[#allocation2 + $0x50] sm:$0xff]
    %v2779 = vld [vmem:[#allocation2 + $0x58] sm:$0xff]
    %2780 = vmatprep.subr.mxu0 %v529
    %2781 = vmatpush1.msra.mxu0 %v528
    %2782 = vmatprep.subr.mxu0 %v532
    %2783 = vmatpush1.msra.mxu0 %v531
    %2784 = vmatprep.subr.mxu0 %v535
    %2785 = vmatpush1.msra.mxu0 %v534
    %2786 = vmatprep.subr.mxu0 %v538
    %2787 = vmatpush1.msra.mxu0 %v537
    %2788 = vmatprep.subr.mxu0 %v541
    %2789 = vmatpush1.msra.mxu0 %v540
    %2790 = vmatprep.subr.mxu0 %v544
    %2791 = vmatpush1.msra.mxu0 %v543
    %2792 = vmatprep.subr.mxu0 %v547
    %2793 = vmatpush1.msra.mxu0 %v546
    %2794 = vmatprep.subr.mxu0 %v550
    %2795 = vmatpush1.msra.mxu0 %v549
    %2796 = vmatprep.subr.mxu0 %v553
    %2797 = vmatpush1.msra.mxu0 %v552
    %2798 = vmatprep.subr.mxu0 %v556
    %2799 = vmatpush1.msra.mxu0 %v555
    %2800 = vmatprep.subr.mxu0 %v559
    %2801 = vmatpush1.msra.mxu0 %v558
    %2802 = vmatprep.subr.mxu0 %v562
    %2803 = vmatpush1.msra.mxu0 %v561
    %2804 = vmatprep.subr.mxu0 %v565
    %2805 = vmatpush1.msra.mxu0 %v564
    %2806 = vmatprep.subr.mxu0 %v568
    %2807 = vmatpush1.msra.mxu0 %v567
    %2808 = vmatprep.subr.mxu0 %v571
    %2809 = vmatpush1.msra.mxu0 %v570
    %2810 = vmatprep.subr.mxu0 %v574
    %2811 = vmatpush1.msra.mxu0 %v573
    %2812 = vmatprep.subr.mxu0 0.0
    %2813 = vmatpush1.msra.mxu0 0.0
    %2814 = vmatprep.subr.mxu0 0.0
    %2815 = vmatpush1.msra.mxu0 0.0
    %2816 = vmatprep.subr.mxu0 0.0
    %2817 = vmatpush1.msra.mxu0 0.0
    %2818 = vmatprep.subr.mxu0 0.0
    %2819 = vmatpush1.msra.mxu0 0.0
    %2820 = vmatprep.subr.mxu0 0.0
    %2821 = vmatpush1.msra.mxu0 0.0
    %2822 = vmatprep.subr.mxu0 0.0
    %2823 = vmatpush1.msra.mxu0 0.0
    %2824 = vmatprep.subr.mxu0 0.0
    %2825 = vmatpush1.msra.mxu0 0.0
    %2826 = vmatprep.subr.mxu0 0.0
    %2827 = vmatpush1.msra.mxu0 0.0
    %2828 = vmatprep.subr.mxu0 0.0
    %2829 = vmatpush1.msra.mxu0 0.0
    %2830 = vmatprep.subr.mxu0 0.0
    %2831 = vmatpush1.msra.mxu0 0.0
    %2832 = vmatprep.subr.mxu0 0.0
    %2833 = vmatpush1.msra.mxu0 0.0
    %2834 = vmatprep.subr.mxu0 0.0
    %2835 = vmatpush1.msra.mxu0 0.0
    %2836 = vmatprep.subr.mxu0 0.0
    %2837 = vmatpush1.msra.mxu0 0.0
    %2838 = vmatprep.subr.mxu0 0.0
    %2839 = vmatpush1.msra.mxu0 0.0
    %2840 = vmatprep.subr.mxu0 0.0
    %2841 = vmatpush1.msra.mxu0 0.0
    %2842 = vmatprep.subr.mxu0 0.0
    %2843 = vmatpush1.msra.mxu0 0.0
    %2844 = vmatprep.mubr.f32.mxu0 0.0
    %2845 = vmatmul.mubr.f32.gmra.mrb[0].mxu0 %v2586
    %v2846 = vpop.f32.mrb[0].mxu0
    %v2847 = vadd.f32 %v580, %v2846
    %v2848 = vpop.f32.mrb[0].mxu0
    %v2849 = vadd.f32 %v584, %v2848
    %2850 = vdwg.mxu0
    %2851 = vmatprep.subr.mxu0 0.0
    %2852 = vmatpush1.msra.mxu0 %v530
    %2853 = vmatprep.subr.mxu0 0.0
    %2854 = vmatpush1.msra.mxu0 %v533
    %2855 = vmatprep.subr.mxu0 0.0
    %2856 = vmatpush1.msra.mxu0 %v536
    %2857 = vmatprep.subr.mxu0 0.0
    %2858 = vmatpush1.msra.mxu0 %v539
    %2859 = vmatprep.subr.mxu0 0.0
    %2860 = vmatpush1.msra.mxu0 %v542
    %2861 = vmatprep.subr.mxu0 0.0
    %2862 = vmatpush1.msra.mxu0 %v545
    %2863 = vmatprep.subr.mxu0 0.0
    %2864 = vmatpush1.msra.mxu0 %v548
    %2865 = vmatprep.subr.mxu0 0.0
    %2866 = vmatpush1.msra.mxu0 %v551
    %2867 = vmatprep.subr.mxu0 0.0
    %2868 = vmatpush1.msra.mxu0 %v554
    %2869 = vmatprep.subr.mxu0 0.0
    %2870 = vmatpush1.msra.mxu0 %v557
    %2871 = vmatprep.subr.mxu0 0.0
    %2872 = vmatpush1.msra.mxu0 %v560
    %2873 = vmatprep.subr.mxu0 0.0
    %2874 = vmatpush1.msra.mxu0 %v563
    %2875 = vmatprep.subr.mxu0 0.0
    %2876 = vmatpush1.msra.mxu0 %v566
    %2877 = vmatprep.subr.mxu0 0.0
    %2878 = vmatpush1.msra.mxu0 %v569
    %2879 = vmatprep.subr.mxu0 0.0
    %2880 = vmatpush1.msra.mxu0 %v572
    %2881 = vmatprep.subr.mxu0 0.0
    %2882 = vmatpush1.msra.mxu0 %v575
    %2883 = vmatprep.subr.mxu0 0.0
    %2884 = vmatpush1.msra.mxu0 0.0
    %2885 = vmatprep.subr.mxu0 0.0
    %2886 = vmatpush1.msra.mxu0 0.0
    %2887 = vmatprep.subr.mxu0 0.0
    %2888 = vmatpush1.msra.mxu0 0.0
    %2889 = vmatprep.subr.mxu0 0.0
    %2890 = vmatpush1.msra.mxu0 0.0
    %2891 = vmatprep.subr.mxu0 0.0
    %2892 = vmatpush1.msra.mxu0 0.0
    %2893 = vmatprep.subr.mxu0 0.0
    %2894 = vmatpush1.msra.mxu0 0.0
    %2895 = vmatprep.subr.mxu0 0.0
    %2896 = vmatpush1.msra.mxu0 0.0
    %2897 = vmatprep.subr.mxu0 0.0
    %2898 = vmatpush1.msra.mxu0 0.0
    %2899 = vmatprep.subr.mxu0 0.0
    %2900 = vmatpush1.msra.mxu0 0.0
    %2901 = vmatprep.subr.mxu0 0.0
    %2902 = vmatpush1.msra.mxu0 0.0
    %2903 = vmatprep.subr.mxu0 0.0
    %2904 = vmatpush1.msra.mxu0 0.0
    %2905 = vmatprep.subr.mxu0 0.0
    %2906 = vmatpush1.msra.mxu0 0.0
    %2907 = vmatprep.subr.mxu0 0.0
    %2908 = vmatpush1.msra.mxu0 0.0
    %2909 = vmatprep.subr.mxu0 0.0
    %2910 = vmatpush1.msra.mxu0 0.0
    %2911 = vmatprep.subr.mxu0 0.0
    %2912 = vmatpush1.msra.mxu0 0.0
    %2913 = vmatprep.subr.mxu0 0.0
    %2914 = vmatpush1.msra.mxu0 0.0
    %2915 = vmatprep.mubr.f32.mxu0 0.0
    %2916 = vmatmul.mubr.f32.gmra.mrb[0].mxu0 %v2586
    %v2917 = vpop.f32.mrb[0].mxu0
    %v2918 = vadd.f32 %v588, %v2917
    %v2919 = vpop.f32.mrb[0].mxu0
    %2920 = vdwg.mxu0
    %v2921 = vadd.f32 %v2774, %v2847
    %v2922 = vxor.u32 %v2921, 2147483648
    %v2923 = vmul.f32 %v2922, 1.442695
    %v2924 = vpow.pop %v2923
    %v2925 = vadd.f32 %v2924, 1.0
    %v2926 = vrcp.pop %v2925
    %v2927 = vmul.f32 1.0, %v2926
    %v2928 = vadd.f32 %v2775, %v2849
    %v2929 = vxor.u32 %v2928, 2147483648
    %v2930 = vmul.f32 %v2929, 1.442695
    %v2931 = vpow.pop %v2930
    %v2932 = vadd.f32 %v2931, 1.0
    %v2933 = vrcp.pop %v2932
    %v2934 = vmul.f32 1.0, %v2933
    %v2935 = vmul.f32 %v2927, %v2918
    %v2936 = vadd.f32 %v2776, %v2935
    %v2937 = vtanh.pop %v2936
    %v2938 = vsub.f32 %v2586, %v2937
    %v2939 = vmul.f32 %v2934, %v2938
    %v2940 = vadd.f32 %v2937, %v2939
    %2941 = vmatprep.subr.mxu0 %v755
    %2942 = vmatpush1.msra.mxu0 %v754
    %2943 = vmatprep.subr.mxu0 %v758
    %2944 = vmatpush1.msra.mxu0 %v757
    %2945 = vmatprep.subr.mxu0 %v761
    %2946 = vmatpush1.msra.mxu0 %v760
    %2947 = vmatprep.subr.mxu0 %v764
    %2948 = vmatpush1.msra.mxu0 %v763
    %2949 = vmatprep.subr.mxu0 %v767
    %2950 = vmatpush1.msra.mxu0 %v766
    %2951 = vmatprep.subr.mxu0 %v770
    %2952 = vmatpush1.msra.mxu0 %v769
    %2953 = vmatprep.subr.mxu0 %v773
    %2954 = vmatpush1.msra.mxu0 %v772
    %2955 = vmatprep.subr.mxu0 %v776
    %2956 = vmatpush1.msra.mxu0 %v775
    %2957 = vmatprep.subr.mxu0 %v779
    %2958 = vmatpush1.msra.mxu0 %v778
    %2959 = vmatprep.subr.mxu0 %v782
    %2960 = vmatpush1.msra.mxu0 %v781
    %2961 = vmatprep.subr.mxu0 %v785
    %2962 = vmatpush1.msra.mxu0 %v784
    %2963 = vmatprep.subr.mxu0 %v788
    %2964 = vmatpush1.msra.mxu0 %v787
    %2965 = vmatprep.subr.mxu0 %v791
    %2966 = vmatpush1.msra.mxu0 %v790
    %2967 = vmatprep.subr.mxu0 %v794
    %2968 = vmatpush1.msra.mxu0 %v793
    %2969 = vmatprep.subr.mxu0 %v797
    %2970 = vmatpush1.msra.mxu0 %v796
    %2971 = vmatprep.subr.mxu0 %v800
    %2972 = vmatpush1.msra.mxu0 %v799
    %2973 = vmatprep.subr.mxu0 0.0
    %2974 = vmatpush1.msra.mxu0 0.0
    %2975 = vmatprep.subr.mxu0 0.0
    %2976 = vmatpush1.msra.mxu0 0.0
    %2977 = vmatprep.subr.mxu0 0.0
    %2978 = vmatpush1.msra.mxu0 0.0
    %2979 = vmatprep.subr.mxu0 0.0
    %2980 = vmatpush1.msra.mxu0 0.0
    %2981 = vmatprep.subr.mxu0 0.0
    %2982 = vmatpush1.msra.mxu0 0.0
    %2983 = vmatprep.subr.mxu0 0.0
    %2984 = vmatpush1.msra.mxu0 0.0
    %2985 = vmatprep.subr.mxu0 0.0
    %2986 = vmatpush1.msra.mxu0 0.0
    %2987 = vmatprep.subr.mxu0 0.0
    %2988 = vmatpush1.msra.mxu0 0.0
    %2989 = vmatprep.subr.mxu0 0.0
    %2990 = vmatpush1.msra.mxu0 0.0
    %2991 = vmatprep.subr.mxu0 0.0
    %2992 = vmatpush1.msra.mxu0 0.0
    %2993 = vmatprep.subr.mxu0 0.0
    %2994 = vmatpush1.msra.mxu0 0.0
    %2995 = vmatprep.subr.mxu0 0.0
    %2996 = vmatpush1.msra.mxu0 0.0
    %2997 = vmatprep.subr.mxu0 0.0
    %2998 = vmatpush1.msra.mxu0 0.0
    %2999 = vmatprep.subr.mxu0 0.0
    %3000 = vmatpush1.msra.mxu0 0.0
    %3001 = vmatprep.subr.mxu0 0.0
    %3002 = vmatpush1.msra.mxu0 0.0
    %3003 = vmatprep.subr.mxu0 0.0
    %3004 = vmatpush1.msra.mxu0 0.0
    %3005 = vmatprep.mubr.f32.mxu0 0.0
    %3006 = vmatmul.mubr.f32.gmra.mrb[0].mxu0 %v2747
    %v3007 = vpop.f32.mrb[0].mxu0
    %v3008 = vadd.f32 %v806, %v3007
    %v3009 = vpop.f32.mrb[0].mxu0
    %v3010 = vadd.f32 %v810, %v3009
    %3011 = vdwg.mxu0
    %3012 = vmatprep.subr.mxu0 0.0
    %3013 = vmatpush1.msra.mxu0 %v756
    %3014 = vmatprep.subr.mxu0 0.0
    %3015 = vmatpush1.msra.mxu0 %v759
    %3016 = vmatprep.subr.mxu0 0.0
    %3017 = vmatpush1.msra.mxu0 %v762
    %3018 = vmatprep.subr.mxu0 0.0
    %3019 = vmatpush1.msra.mxu0 %v765
    %3020 = vmatprep.subr.mxu0 0.0
    %3021 = vmatpush1.msra.mxu0 %v768
    %3022 = vmatprep.subr.mxu0 0.0
    %3023 = vmatpush1.msra.mxu0 %v771
    %3024 = vmatprep.subr.mxu0 0.0
    %3025 = vmatpush1.msra.mxu0 %v774
    %3026 = vmatprep.subr.mxu0 0.0
    %3027 = vmatpush1.msra.mxu0 %v777
    %3028 = vmatprep.subr.mxu0 0.0
    %3029 = vmatpush1.msra.mxu0 %v780
    %3030 = vmatprep.subr.mxu0 0.0
    %3031 = vmatpush1.msra.mxu0 %v783
    %3032 = vmatprep.subr.mxu0 0.0
    %3033 = vmatpush1.msra.mxu0 %v786
    %3034 = vmatprep.subr.mxu0 0.0
    %3035 = vmatpush1.msra.mxu0 %v789
    %3036 = vmatprep.subr.mxu0 0.0
    %3037 = vmatpush1.msra.mxu0 %v792
    %3038 = vmatprep.subr.mxu0 0.0
    %3039 = vmatpush1.msra.mxu0 %v795
    %3040 = vmatprep.subr.mxu0 0.0
    %3041 = vmatpush1.msra.mxu0 %v798
    %3042 = vmatprep.subr.mxu0 0.0
    %3043 = vmatpush1.msra.mxu0 %v801
    %3044 = vmatprep.subr.mxu0 0.0
    %3045 = vmatpush1.msra.mxu0 0.0
    %3046 = vmatprep.subr.mxu0 0.0
    %3047 = vmatpush1.msra.mxu0 0.0
    %3048 = vmatprep.subr.mxu0 0.0
    %3049 = vmatpush1.msra.mxu0 0.0
    %3050 = vmatprep.subr.mxu0 0.0
    %3051 = vmatpush1.msra.mxu0 0.0
    %3052 = vmatprep.subr.mxu0 0.0
    %3053 = vmatpush1.msra.mxu0 0.0
    %3054 = vmatprep.subr.mxu0 0.0
    %3055 = vmatpush1.msra.mxu0 0.0
    %3056 = vmatprep.subr.mxu0 0.0
    %3057 = vmatpush1.msra.mxu0 0.0
    %3058 = vmatprep.subr.mxu0 0.0
    %3059 = vmatpush1.msra.mxu0 0.0
    %3060 = vmatprep.subr.mxu0 0.0
    %3061 = vmatpush1.msra.mxu0 0.0
    %3062 = vmatprep.subr.mxu0 0.0
    %3063 = vmatpush1.msra.mxu0 0.0
    %3064 = vmatprep.subr.mxu0 0.0
    %3065 = vmatpush1.msra.mxu0 0.0
    %3066 = vmatprep.subr.mxu0 0.0
    %3067 = vmatpush1.msra.mxu0 0.0
    %3068 = vmatprep.subr.mxu0 0.0
    %3069 = vmatpush1.msra.mxu0 0.0
    %3070 = vmatprep.subr.mxu0 0.0
    %3071 = vmatpush1.msra.mxu0 0.0
    %3072 = vmatprep.subr.mxu0 0.0
    %3073 = vmatpush1.msra.mxu0 0.0
    %3074 = vmatprep.subr.mxu0 0.0
    %3075 = vmatpush1.msra.mxu0 0.0
    %3076 = vmatprep.mubr.f32.mxu0 0.0
    %3077 = vmatmul.mubr.f32.gmra.mrb[0].mxu0 %v2747
    %v3078 = vpop.f32.mrb[0].mxu0
    %v3079 = vadd.f32 %v814, %v3078
    %v3080 = vpop.f32.mrb[0].mxu0
    %3081 = vdwg.mxu0
    %v3082 = vadd.f32 %v2777, %v3008
    %v3083 = vxor.u32 %v3082, 2147483648
    %v3084 = vmul.f32 %v3083, 1.442695
    %v3085 = vpow.pop %v3084
    %v3086 = vadd.f32 %v3085, 1.0
    %v3087 = vrcp.pop %v3086
    %v3088 = vmul.f32 1.0, %v3087
    %v3089 = vadd.f32 %v2778, %v3010
    %v3090 = vxor.u32 %v3089, 2147483648
    %v3091 = vmul.f32 %v3090, 1.442695
    %v3092 = vpow.pop %v3091
    %v3093 = vadd.f32 %v3092, 1.0
    %v3094 = vrcp.pop %v3093
    %v3095 = vmul.f32 1.0, %v3094
    %v3096 = vmul.f32 %v3088, %v3079
    %v3097 = vadd.f32 %v2779, %v3096
    %v3098 = vtanh.pop %v3097
    %v3099 = vsub.f32 %v2747, %v3098
    %v3100 = vmul.f32 %v3095, %v3099
    %v3101 = vadd.f32 %v3098, %v3100
    %vm3102 = vcmp.ge.f32.partialorder %v2940, 0.0
    %v3103 = vmul.f32 %v2940, 0.2
    %v3104 = vsel %vm3102, %v2940, %v3103
    %s3105 = scalar_lea.vmem %s5, 6
    %v3106 = vld [vmem:[%s3105] sm:$0x1]
    %v3108 = vlaneseq
    %v3109 = vshrl.u32 %v3108, 7
    %v3110 = vsub.s32 0, %v3109
    %v3111 = vrot.slane %v3106, %v3110
    %v3113 = vmul.f32 %v3104, %v3111
    %v3114 = vadd.f32 %v2773, %v3113
    %vm3115 = vcmp.ge.f32.partialorder %v3101, 0.0
    %v3116 = vmul.f32 %v3101, 0.2
    %v3117 = vsel %vm3115, %v3101, %v3116
    %s3118 = scalar_lea.vmem %s6, 1
    %v3119 = vld [vmem:[%s3118] sm:$0x1]
    %v3121 = vlaneseq
    %v3122 = vshrl.u32 %v3121, 7
    %v3123 = vsub.s32 0, %v3122
    %v3124 = vrot.slane %v3119, %v3123
    %v3126 = vmul.f32 %v3117, %v3124
    %v3127 = vadd.f32 %v3114, %v3126
    %v3128 = vld [vmem:[#allocation2 + $0x150] sm:$0xff]
    %v3129 = vld [vmem:[#allocation2 + $0x158] sm:$0xff]
    %v3130 = vld [vmem:[#allocation2 + $0x160] sm:$0xff]
    %v3131 = vld [vmem:[#allocation2 + $0x18] sm:$0xff]
    %v3132 = vld [vmem:[#allocation2 + $0x20] sm:$0xff]
    %v3133 = vld [vmem:[#allocation2 + $0x28] sm:$0xff]
    %3134 = vmatprep.subr.mxu0 %v529
    %3135 = vmatpush1.msra.mxu0 %v528
    %3136 = vmatprep.subr.mxu0 %v532
    %3137 = vmatpush1.msra.mxu0 %v531
    %3138 = vmatprep.subr.mxu0 %v535
    %3139 = vmatpush1.msra.mxu0 %v534
    %3140 = vmatprep.subr.mxu0 %v538
    %3141 = vmatpush1.msra.mxu0 %v537
    %3142 = vmatprep.subr.mxu0 %v541
    %3143 = vmatpush1.msra.mxu0 %v540
    %3144 = vmatprep.subr.mxu0 %v544
    %3145 = vmatpush1.msra.mxu0 %v543
    %3146 = vmatprep.subr.mxu0 %v547
    %3147 = vmatpush1.msra.mxu0 %v546
    %3148 = vmatprep.subr.mxu0 %v550
    %3149 = vmatpush1.msra.mxu0 %v549
    %3150 = vmatprep.subr.mxu0 %v553
    %3151 = vmatpush1.msra.mxu0 %v552
    %3152 = vmatprep.subr.mxu0 %v556
    %3153 = vmatpush1.msra.mxu0 %v555
    %3154 = vmatprep.subr.mxu0 %v559
    %3155 = vmatpush1.msra.mxu0 %v558
    %3156 = vmatprep.subr.mxu0 %v562
    %3157 = vmatpush1.msra.mxu0 %v561
    %3158 = vmatprep.subr.mxu0 %v565
    %3159 = vmatpush1.msra.mxu0 %v564
    %3160 = vmatprep.subr.mxu0 %v568
    %3161 = vmatpush1.msra.mxu0 %v567
    %3162 = vmatprep.subr.mxu0 %v571
    %3163 = vmatpush1.msra.mxu0 %v570
    %3164 = vmatprep.subr.mxu0 %v574
    %3165 = vmatpush1.msra.mxu0 %v573
    %3166 = vmatprep.subr.mxu0 0.0
    %3167 = vmatpush1.msra.mxu0 0.0
    %3168 = vmatprep.subr.mxu0 0.0
    %3169 = vmatpush1.msra.mxu0 0.0
    %3170 = vmatprep.subr.mxu0 0.0
    %3171 = vmatpush1.msra.mxu0 0.0
    %3172 = vmatprep.subr.mxu0 0.0
    %3173 = vmatpush1.msra.mxu0 0.0
    %3174 = vmatprep.subr.mxu0 0.0
    %3175 = vmatpush1.msra.mxu0 0.0
    %3176 = vmatprep.subr.mxu0 0.0
    %3177 = vmatpush1.msra.mxu0 0.0
    %3178 = vmatprep.subr.mxu0 0.0
    %3179 = vmatpush1.msra.mxu0 0.0
    %3180 = vmatprep.subr.mxu0 0.0
    %3181 = vmatpush1.msra.mxu0 0.0
    %3182 = vmatprep.subr.mxu0 0.0
    %3183 = vmatpush1.msra.mxu0 0.0
    %3184 = vmatprep.subr.mxu0 0.0
    %3185 = vmatpush1.msra.mxu0 0.0
    %3186 = vmatprep.subr.mxu0 0.0
    %3187 = vmatpush1.msra.mxu0 0.0
    %3188 = vmatprep.subr.mxu0 0.0
    %3189 = vmatpush1.msra.mxu0 0.0
    %3190 = vmatprep.subr.mxu0 0.0
    %3191 = vmatpush1.msra.mxu0 0.0
    %3192 = vmatprep.subr.mxu0 0.0
    %3193 = vmatpush1.msra.mxu0 0.0
    %3194 = vmatprep.subr.mxu0 0.0
    %3195 = vmatpush1.msra.mxu0 0.0
    %3196 = vmatprep.subr.mxu0 0.0
    %3197 = vmatpush1.msra.mxu0 0.0
    %3198 = vmatprep.mubr.f32.mxu0 0.0
    %3199 = vmatmul.mubr.f32.gmra.mrb[0].mxu0 %v2940
    %v3200 = vpop.f32.mrb[0].mxu0
    %v3201 = vadd.f32 %v580, %v3200
    %v3202 = vpop.f32.mrb[0].mxu0
    %v3203 = vadd.f32 %v584, %v3202
    %3204 = vdwg.mxu0
    %3205 = vmatprep.subr.mxu0 0.0
    %3206 = vmatpush1.msra.mxu0 %v530
    %3207 = vmatprep.subr.mxu0 0.0
    %3208 = vmatpush1.msra.mxu0 %v533
    %3209 = vmatprep.subr.mxu0 0.0
    %3210 = vmatpush1.msra.mxu0 %v536
    %3211 = vmatprep.subr.mxu0 0.0
    %3212 = vmatpush1.msra.mxu0 %v539
    %3213 = vmatprep.subr.mxu0 0.0
    %3214 = vmatpush1.msra.mxu0 %v542
    %3215 = vmatprep.subr.mxu0 0.0
    %3216 = vmatpush1.msra.mxu0 %v545
    %3217 = vmatprep.subr.mxu0 0.0
    %3218 = vmatpush1.msra.mxu0 %v548
    %3219 = vmatprep.subr.mxu0 0.0
    %3220 = vmatpush1.msra.mxu0 %v551
    %3221 = vmatprep.subr.mxu0 0.0
    %3222 = vmatpush1.msra.mxu0 %v554
    %3223 = vmatprep.subr.mxu0 0.0
    %3224 = vmatpush1.msra.mxu0 %v557
    %3225 = vmatprep.subr.mxu0 0.0
    %3226 = vmatpush1.msra.mxu0 %v560
    %3227 = vmatprep.subr.mxu0 0.0
    %3228 = vmatpush1.msra.mxu0 %v563
    %3229 = vmatprep.subr.mxu0 0.0
    %3230 = vmatpush1.msra.mxu0 %v566
    %3231 = vmatprep.subr.mxu0 0.0
    %3232 = vmatpush1.msra.mxu0 %v569
    %3233 = vmatprep.subr.mxu0 0.0
    %3234 = vmatpush1.msra.mxu0 %v572
    %3235 = vmatprep.subr.mxu0 0.0
    %3236 = vmatpush1.msra.mxu0 %v575
    %3237 = vmatprep.subr.mxu0 0.0
    %3238 = vmatpush1.msra.mxu0 0.0
    %3239 = vmatprep.subr.mxu0 0.0
    %3240 = vmatpush1.msra.mxu0 0.0
    %3241 = vmatprep.subr.mxu0 0.0
    %3242 = vmatpush1.msra.mxu0 0.0
    %3243 = vmatprep.subr.mxu0 0.0
    %3244 = vmatpush1.msra.mxu0 0.0
    %3245 = vmatprep.subr.mxu0 0.0
    %3246 = vmatpush1.msra.mxu0 0.0
    %3247 = vmatprep.subr.mxu0 0.0
    %3248 = vmatpush1.msra.mxu0 0.0
    %3249 = vmatprep.subr.mxu0 0.0
    %3250 = vmatpush1.msra.mxu0 0.0
    %3251 = vmatprep.subr.mxu0 0.0
    %3252 = vmatpush1.msra.mxu0 0.0
    %3253 = vmatprep.subr.mxu0 0.0
    %3254 = vmatpush1.msra.mxu0 0.0
    %3255 = vmatprep.subr.mxu0 0.0
    %3256 = vmatpush1.msra.mxu0 0.0
    %3257 = vmatprep.subr.mxu0 0.0
    %3258 = vmatpush1.msra.mxu0 0.0
    %3259 = vmatprep.subr.mxu0 0.0
    %3260 = vmatpush1.msra.mxu0 0.0
    %3261 = vmatprep.subr.mxu0 0.0
    %3262 = vmatpush1.msra.mxu0 0.0
    %3263 = vmatprep.subr.mxu0 0.0
    %3264 = vmatpush1.msra.mxu0 0.0
    %3265 = vmatprep.subr.mxu0 0.0
    %3266 = vmatpush1.msra.mxu0 0.0
    %3267 = vmatprep.subr.mxu0 0.0
    %3268 = vmatpush1.msra.mxu0 0.0
    %3269 = vmatprep.mubr.f32.mxu0 0.0
    %3270 = vmatmul.mubr.f32.gmra.mrb[0].mxu0 %v2940
    %v3271 = vpop.f32.mrb[0].mxu0
    %v3272 = vadd.f32 %v588, %v3271
    %v3273 = vpop.f32.mrb[0].mxu0
    %3274 = vdwg.mxu0
    %v3275 = vadd.f32 %v3128, %v3201
    %v3276 = vxor.u32 %v3275, 2147483648
    %v3277 = vmul.f32 %v3276, 1.442695
    %v3278 = vpow.pop %v3277
    %v3279 = vadd.f32 %v3278, 1.0
    %v3280 = vrcp.pop %v3279
    %v3281 = vmul.f32 1.0, %v3280
    %v3282 = vadd.f32 %v3129, %v3203
    %v3283 = vxor.u32 %v3282, 2147483648
    %v3284 = vmul.f32 %v3283, 1.442695
    %v3285 = vpow.pop %v3284
    %v3286 = vadd.f32 %v3285, 1.0
    %v3287 = vrcp.pop %v3286
    %v3288 = vmul.f32 1.0, %v3287
    %v3289 = vmul.f32 %v3281, %v3272
    %v3290 = vadd.f32 %v3130, %v3289
    %v3291 = vtanh.pop %v3290
    %v3292 = vsub.f32 %v2940, %v3291
    %v3293 = vmul.f32 %v3288, %v3292
    %v3294 = vadd.f32 %v3291, %v3293
    %3295 = vmatprep.subr.mxu0 %v755
    %3296 = vmatpush1.msra.mxu0 %v754
    %3297 = vmatprep.subr.mxu0 %v758
    %3298 = vmatpush1.msra.mxu0 %v757
    %3299 = vmatprep.subr.mxu0 %v761
    %3300 = vmatpush1.msra.mxu0 %v760
    %3301 = vmatprep.subr.mxu0 %v764
    %3302 = vmatpush1.msra.mxu0 %v763
    %3303 = vmatprep.subr.mxu0 %v767
    %3304 = vmatpush1.msra.mxu0 %v766
    %3305 = vmatprep.subr.mxu0 %v770
    %3306 = vmatpush1.msra.mxu0 %v769
    %3307 = vmatprep.subr.mxu0 %v773
    %3308 = vmatpush1.msra.mxu0 %v772
    %3309 = vmatprep.subr.mxu0 %v776
    %3310 = vmatpush1.msra.mxu0 %v775
    %3311 = vmatprep.subr.mxu0 %v779
    %3312 = vmatpush1.msra.mxu0 %v778
    %3313 = vmatprep.subr.mxu0 %v782
    %3314 = vmatpush1.msra.mxu0 %v781
    %3315 = vmatprep.subr.mxu0 %v785
    %3316 = vmatpush1.msra.mxu0 %v784
    %3317 = vmatprep.subr.mxu0 %v788
    %3318 = vmatpush1.msra.mxu0 %v787
    %3319 = vmatprep.subr.mxu0 %v791
    %3320 = vmatpush1.msra.mxu0 %v790
    %3321 = vmatprep.subr.mxu0 %v794
    %3322 = vmatpush1.msra.mxu0 %v793
    %3323 = vmatprep.subr.mxu0 %v797
    %3324 = vmatpush1.msra.mxu0 %v796
    %3325 = vmatprep.subr.mxu0 %v800
    %3326 = vmatpush1.msra.mxu0 %v799
    %3327 = vmatprep.subr.mxu0 0.0
    %3328 = vmatpush1.msra.mxu0 0.0
    %3329 = vmatprep.subr.mxu0 0.0
    %3330 = vmatpush1.msra.mxu0 0.0
    %3331 = vmatprep.subr.mxu0 0.0
    %3332 = vmatpush1.msra.mxu0 0.0
    %3333 = vmatprep.subr.mxu0 0.0
    %3334 = vmatpush1.msra.mxu0 0.0
    %3335 = vmatprep.subr.mxu0 0.0
    %3336 = vmatpush1.msra.mxu0 0.0
    %3337 = vmatprep.subr.mxu0 0.0
    %3338 = vmatpush1.msra.mxu0 0.0
    %3339 = vmatprep.subr.mxu0 0.0
    %3340 = vmatpush1.msra.mxu0 0.0
    %3341 = vmatprep.subr.mxu0 0.0
    %3342 = vmatpush1.msra.mxu0 0.0
    %3343 = vmatprep.subr.mxu0 0.0
    %3344 = vmatpush1.msra.mxu0 0.0
    %3345 = vmatprep.subr.mxu0 0.0
    %3346 = vmatpush1.msra.mxu0 0.0
    %3347 = vmatprep.subr.mxu0 0.0
    %3348 = vmatpush1.msra.mxu0 0.0
    %3349 = vmatprep.subr.mxu0 0.0
    %3350 = vmatpush1.msra.mxu0 0.0
    %3351 = vmatprep.subr.mxu0 0.0
    %3352 = vmatpush1.msra.mxu0 0.0
    %3353 = vmatprep.subr.mxu0 0.0
    %3354 = vmatpush1.msra.mxu0 0.0
    %3355 = vmatprep.subr.mxu0 0.0
    %3356 = vmatpush1.msra.mxu0 0.0
    %3357 = vmatprep.subr.mxu0 0.0
    %3358 = vmatpush1.msra.mxu0 0.0
    %3359 = vmatprep.mubr.f32.mxu0 0.0
    %3360 = vmatmul.mubr.f32.gmra.mrb[0].mxu0 %v3101
    %v3361 = vpop.f32.mrb[0].mxu0
    %v3362 = vadd.f32 %v806, %v3361
    %v3363 = vpop.f32.mrb[0].mxu0
    %v3364 = vadd.f32 %v810, %v3363
    %3365 = vdwg.mxu0
    %3366 = vmatprep.subr.mxu0 0.0
    %3367 = vmatpush1.msra.mxu0 %v756
    %3368 = vmatprep.subr.mxu0 0.0
    %3369 = vmatpush1.msra.mxu0 %v759
    %3370 = vmatprep.subr.mxu0 0.0
    %3371 = vmatpush1.msra.mxu0 %v762
    %3372 = vmatprep.subr.mxu0 0.0
    %3373 = vmatpush1.msra.mxu0 %v765
    %3374 = vmatprep.subr.mxu0 0.0
    %3375 = vmatpush1.msra.mxu0 %v768
    %3376 = vmatprep.subr.mxu0 0.0
    %3377 = vmatpush1.msra.mxu0 %v771
    %3378 = vmatprep.subr.mxu0 0.0
    %3379 = vmatpush1.msra.mxu0 %v774
    %3380 = vmatprep.subr.mxu0 0.0
    %3381 = vmatpush1.msra.mxu0 %v777
    %3382 = vmatprep.subr.mxu0 0.0
    %3383 = vmatpush1.msra.mxu0 %v780
    %3384 = vmatprep.subr.mxu0 0.0
    %3385 = vmatpush1.msra.mxu0 %v783
    %3386 = vmatprep.subr.mxu0 0.0
    %3387 = vmatpush1.msra.mxu0 %v786
    %3388 = vmatprep.subr.mxu0 0.0
    %3389 = vmatpush1.msra.mxu0 %v789
    %3390 = vmatprep.subr.mxu0 0.0
    %3391 = vmatpush1.msra.mxu0 %v792
    %3392 = vmatprep.subr.mxu0 0.0
    %3393 = vmatpush1.msra.mxu0 %v795
    %3394 = vmatprep.subr.mxu0 0.0
    %3395 = vmatpush1.msra.mxu0 %v798
    %3396 = vmatprep.subr.mxu0 0.0
    %3397 = vmatpush1.msra.mxu0 %v801
    %3398 = vmatprep.subr.mxu0 0.0
    %3399 = vmatpush1.msra.mxu0 0.0
    %3400 = vmatprep.subr.mxu0 0.0
    %3401 = vmatpush1.msra.mxu0 0.0
    %3402 = vmatprep.subr.mxu0 0.0
    %3403 = vmatpush1.msra.mxu0 0.0
    %3404 = vmatprep.subr.mxu0 0.0
    %3405 = vmatpush1.msra.mxu0 0.0
    %3406 = vmatprep.subr.mxu0 0.0
    %3407 = vmatpush1.msra.mxu0 0.0
    %3408 = vmatprep.subr.mxu0 0.0
    %3409 = vmatpush1.msra.mxu0 0.0
    %3410 = vmatprep.subr.mxu0 0.0
    %3411 = vmatpush1.msra.mxu0 0.0
    %3412 = vmatprep.subr.mxu0 0.0
    %3413 = vmatpush1.msra.mxu0 0.0
    %3414 = vmatprep.subr.mxu0 0.0
    %3415 = vmatpush1.msra.mxu0 0.0
    %3416 = vmatprep.subr.mxu0 0.0
    %3417 = vmatpush1.msra.mxu0 0.0
    %3418 = vmatprep.subr.mxu0 0.0
    %3419 = vmatpush1.msra.mxu0 0.0
    %3420 = vmatprep.subr.mxu0 0.0
    %3421 = vmatpush1.msra.mxu0 0.0
    %3422 = vmatprep.subr.mxu0 0.0
    %3423 = vmatpush1.msra.mxu0 0.0
    %3424 = vmatprep.subr.mxu0 0.0
    %3425 = vmatpush1.msra.mxu0 0.0
    %3426 = vmatprep.subr.mxu0 0.0
    %3427 = vmatpush1.msra.mxu0 0.0
    %3428 = vmatprep.subr.mxu0 0.0
    %3429 = vmatpush1.msra.mxu0 0.0
    %3430 = vmatprep.mubr.f32.mxu0 0.0
    %3431 = vmatmul.mubr.f32.gmra.mrb[0].mxu0 %v3101
    %v3432 = vpop.f32.mrb[0].mxu0
    %v3433 = vadd.f32 %v814, %v3432
    %v3434 = vpop.f32.mrb[0].mxu0
    %3435 = vdwg.mxu0
    %v3436 = vadd.f32 %v3131, %v3362
    %v3437 = vxor.u32 %v3436, 2147483648
    %v3438 = vmul.f32 %v3437, 1.442695
    %v3439 = vpow.pop %v3438
    %v3440 = vadd.f32 %v3439, 1.0
    %v3441 = vrcp.pop %v3440
    %v3442 = vmul.f32 1.0, %v3441
    %v3443 = vadd.f32 %v3132, %v3364
    %v3444 = vxor.u32 %v3443, 2147483648
    %v3445 = vmul.f32 %v3444, 1.442695
    %v3446 = vpow.pop %v3445
    %v3447 = vadd.f32 %v3446, 1.0
    %v3448 = vrcp.pop %v3447
    %v3449 = vmul.f32 1.0, %v3448
    %v3450 = vmul.f32 %v3442, %v3433
    %v3451 = vadd.f32 %v3133, %v3450
    %v3452 = vtanh.pop %v3451
    %v3453 = vsub.f32 %v3101, %v3452
    %v3454 = vmul.f32 %v3449, %v3453
    %v3455 = vadd.f32 %v3452, %v3454
    %vm3456 = vcmp.ge.f32.partialorder %v3294, 0.0
    %v3457 = vmul.f32 %v3294, 0.2
    %v3458 = vsel %vm3456, %v3294, %v3457
    %s3459 = scalar_lea.vmem %s5, 7
    %v3460 = vld [vmem:[%s3459] sm:$0x1]
    %v3462 = vlaneseq
    %v3463 = vshrl.u32 %v3462, 7
    %v3464 = vsub.s32 0, %v3463
    %v3465 = vrot.slane %v3460, %v3464
    %v3467 = vmul.f32 %v3458, %v3465
    %v3468 = vadd.f32 %v3127, %v3467
    %vm3469 = vcmp.ge.f32.partialorder %v3455, 0.0
    %v3470 = vmul.f32 %v3455, 0.2
    %v3471 = vsel %vm3469, %v3455, %v3470
    %v3472 = vld [vmem:[%s6] sm:$0x1]
    %v3474 = vlaneseq
    %v3475 = vshrl.u32 %v3474, 7
    %v3476 = vsub.s32 0, %v3475
    %v3477 = vrot.slane %v3472, %v3476
    %v3479 = vmul.f32 %v3471, %v3477
    %v3480 = vadd.f32 %v3468, %v3479
    %3481 = vadd.xlane.f32.xlu0 %v3480
    %v3482 = vpop.xlane.xlu0 %3481
    %v3483 = vstv %s521
    %v3484 = vadd.f32 %v3482, %v3483
    %v3485 = vxor.u32 %v3484, 2147483648
    %v3486 = vmul.f32 %v3485, 1.442695
    %v3487 = vpow.pop %v3486
    %v3488 = vadd.f32 %v3487, 1.0
    %v3489 = vrcp.pop %v3488
    %v3490 = vmul.f32 1.0, %v3489
    %vm3491 = vcmask 7168
    %3492 = vst.msk [vmem:[%s8] sm:$0xff] %vm3491, %v3490
    // Predicated region
    $region38: #{discriminator_forward.1} parent=1 // pred_check
      _
    $region39: #{discriminator_forward.1} parent=1 // pred_check_branch
      %3494 = sbr.rel (0) target = $region41
    $region40: #{discriminator_forward.1} parent=1 // pred_region
      _
    $region41: #{discriminator_forward.1} parent=1 // pred_fallthru
      _
    // Predicated region
    $region42: #{discriminator_forward.1} parent=1 // pred_check
      _
    $region43: #{discriminator_forward.1} parent=1 // pred_check_branch
      %3496 = sbr.rel (0) target = $region45
    $region44: #{discriminator_forward.1} parent=1 // pred_region
      _
    $region45: #{discriminator_forward.1} parent=1 // pred_fallthru
      _
    %3497 = vsyncpa [#allocation5], 1

</llo_original>
